<compile_context>
chip_gen: v6e
topology: v6e:2x2x1
jax: 0.10.0
libtpu: 0.0.40
codegen_flags: <defaults>
</compile_context>

<pallas_src>
import functools

import jax
import jax.numpy as jnp
from jax.experimental import pallas as pl
from jax.experimental.pallas import tpu as pltpu


# ---------------- fused encoder kernel ----------------

def _encoder_kernel(x_ref, w_ref, b_ref, alpha_ref, o_ref, pad_ref, *,
                    K, H, W, Cs, num_layers, pad_top):
    """One batch element: init conv+PReLU, residual blocks, final conv.

    x_ref     : (1, H, W*Cs)   f32   input image (channels padded to Cs)
    w_ref     : (L, K*W*Cs, W*Cs) bf16  trimmed block-Toeplitz conv weights
    b_ref     : (L, 1, W*Cs)   f32   biases pre-tiled to lane width
    alpha_ref : (L,)           f32 SMEM  PReLU alphas (last entry unused)
    o_ref     : (1, H, W*Cs)   f32   output
    pad_ref   : (2*pad_top+H, W*Cs) f32 VMEM scratch, zero height-halo rows
    """
    p = K // 2
    n_total = 2 * num_layers + 2  # init + 2 per residual block + final
    WC = W * Cs

    # Zero the scratch once per image.  The interior rows [pad_top, pad_top+H)
    # are rewritten every layer; the halo rows are never written again, so they
    # stay zero for all layers.
    pad_ref[...] = jnp.zeros_like(pad_ref)

    def conv(act, l):
        # Aligned interior store (sublane offset pad_top is a multiple of 8).
        pad_ref[pad_top:pad_top + H, :] = act.astype(pad_ref.dtype)
        # K row-shifted windows, lane-concatenated -> the whole KxK "same" conv
        # is a single MXU matmul with contraction depth K*W*Cs.
        lhs = jnp.concatenate(
            [pad_ref[pad_top - p + i:pad_top - p + i + H, :] for i in range(K)],
            axis=1)                                          # (H, K*W*Cs) f32
        y = jnp.dot(lhs.astype(jnp.bfloat16), w_ref[l],
                    preferred_element_type=jnp.float32)      # (H, W*Cs) f32
        return y + b_ref[l]                                  # bias after the dot

    def prelu(v, l):
        a = alpha_ref[l]  # scalar from SMEM
        return jnp.where(v >= 0.0, v, a * v)

    # init layer: Conv2d + PReLU
    x = prelu(conv(x_ref[0], 0), 0)

    # residual blocks: (Conv+PReLU, Conv+PReLU) + skip, all resident in VMEM
    for blk in range(num_layers):
        l1 = 1 + 2 * blk
        l2 = 2 + 2 * blk
        r = prelu(conv(x, l1), l1)
        r = prelu(conv(r, l2), l2)
        x = x + r

    # final: Conv2d, no activation
    o_ref[0, :, :] = conv(x, n_total - 1).astype(o_ref.dtype)


# ---------------- weight packing (one-time, wrapper side) ----------------

def _toeplitz_conv_weight(w_hwio, W_out):
    """(K, K, C, Cout) HWIO -> (K*W_out*C, W_out*Cout) trimmed block-Toeplitz.

    For kernel row i and shifted activation LHS_i[h, r*C + c] = in[h+i-p, r, c]:
        out[h, w*Cout + co] += LHS_i[h, :] @ T[i][:, w*Cout + co]
    with T[i][(w + j - p)*C + c, w*Cout + co] = w_hwio[i, j, c, co]
    (rows corresponding to the left/right zero padding are dropped).
    """
    K, _, C, Cout = w_hwio.shape
    p = K // 2
    Wp = W_out + 2 * p
    blocks = w_hwio.reshape(K, K * C, Cout)                        # (K, K*C, Cout)
    cols = [jnp.pad(blocks, ((0, 0), (w * C, (Wp - K - w) * C), (0, 0)))
            for w in range(W_out)]                                 # (K, Wp*C, Cout)
    T = jnp.stack(cols, axis=2).reshape(K, Wp * C, W_out * Cout)
    T = T[:, p * C:(p + W_out) * C, :]       # trim width-halo contraction rows
    return T.reshape(K * W_out * C, W_out * Cout)


def pack_encoder_params(params, W):
    """Stack all layers' weights/biases/alphas into fused-kernel form."""
    K, _, Cin, Cs = params['init_w'].shape
    assert K % 2 == 1, "padding=K//2 'same' conv only matches PyTorch for odd K"
    assert Cin <= Cs

    # Zero-pad the init conv's input channels up to Cs so every layer has the
    # same (Cs -> Cs) shape (the input image gets matching zero channels).
    w0 = jnp.pad(params['init_w'], ((0, 0), (0, 0), (0, Cs - Cin), (0, 0)))

    ws = [w0]
    bs = [params['init_b']]
    al = [params['init_alpha']]
    for blk in params['res']:
        ws += [blk['w1'], blk['w2']]
        bs += [blk['b1'], blk['b2']]
        al += [blk['a1'], blk['a2']]
    ws.append(params['final_w'])
    bs.append(params['final_b'])
    al.append(jnp.float32(0.0))  # final layer has no PReLU (unused)

    # bf16 weights: halves HBM traffic and VMEM residency; MXU-native dtype.
    w_stack = jnp.stack([_toeplitz_conv_weight(w, W) for w in ws]
                        ).astype(jnp.bfloat16)                     # (L, K*W*Cs, W*Cs)
    b_stack = jnp.stack([jnp.tile(b.astype(jnp.float32), W) for b in bs])
    b_stack = b_stack[:, None, :]                                  # (L, 1, W*Cs)
    a_stack = jnp.stack([jnp.asarray(a, jnp.float32) for a in al])  # (L,)

    return {'w': w_stack, 'b': b_stack, 'alpha': a_stack,
            'K': int(K), 'Cs': int(Cs), 'Cin': int(Cin),
            'num_layers': len(params['res'])}


# ---------------- parameter construction (deterministic) ----------------

def _conv_params(key, cin, cout, k, scale=0.1):
    kw, kb = jax.random.split(key)
    w = scale * jax.random.normal(kw, (k, k, cin, cout), jnp.float32)  # HWIO
    b = scale * jax.random.normal(kb, (cout,), jnp.float32)
    return w, b


def init_encoder_params(key, config):
    cin = config['in_channels']
    cs = config['channel_size']
    k = config['kernel_size']
    nl = config['num_layers']

    keys = jax.random.split(key, 2 + 2 * nl)
    params = {}
    params['init_w'], params['init_b'] = _conv_params(keys[0], cin, cs, k)
    params['init_alpha'] = jnp.float32(0.25)            # nn.PReLU() default init

    res = []
    for li in range(nl):
        w1, b1 = _conv_params(keys[1 + 2 * li], cs, cs, k)
        w2, b2 = _conv_params(keys[2 + 2 * li], cs, cs, k)
        res.append({'w1': w1, 'b1': b1, 'a1': jnp.float32(0.25),
                    'w2': w2, 'b2': b2, 'a2': jnp.float32(0.25)})
    params['res'] = res

    params['final_w'], params['final_b'] = _conv_params(keys[-1], cs, cs, k)
    return params


# ---------------- Encoder forward (single pallas_call) ----------------

def encoder_forward(packed, x_nchw):
    """x_nchw: (B, C_in, H, W) -> (B, channel_size, H, W), matching PyTorch."""
    B, Cin, H, W = x_nchw.shape
    K = packed['K']
    Cs = packed['Cs']
    nl = packed['num_layers']
    p = K // 2
    WC = W * Cs
    L = 2 * nl + 2
    pad_top = ((p + 7) // 8) * 8          # aligned start of the scratch interior
    Hs = pad_top + H + pad_top            # scratch rows (zero height halos)

    # NCHW -> NHWC, zero-pad channels to Cs, flatten channels into lanes.
    x = jnp.transpose(x_nchw, (0, 2, 3, 1))
    x = jnp.pad(x, ((0, 0), (0, 0), (0, 0), (0, Cs - Cin)))
    x2d = x.reshape(B, H, WC).astype(jnp.float32)

    kernel = functools.partial(_encoder_kernel, K=K, H=H, W=W, Cs=Cs,
                               num_layers=nl, pad_top=pad_top)

    flops = 2 * B * L * H * (K * WC) * WC
    bytes_accessed = (x2d.size * 4 + packed['w'].size * 2 + packed['b'].size * 4
                      + packed['alpha'].size * 4 + B * H * WC * 4)

    out2d = pl.pallas_call(
        kernel,
        out_shape=jax.ShapeDtypeStruct((B, H, WC), jnp.float32),
        grid=(B,),
        in_specs=[
            pl.BlockSpec((1, H, WC), lambda b: (b, 0, 0)),
            # Grid-invariant weight stack (bf16, halo-trimmed).  Constant
            # index_map -> fetched once and reused across the batch grid.
            pl.BlockSpec((L, K * WC, WC), lambda b: (0, 0, 0)),
            pl.BlockSpec((L, 1, WC), lambda b: (0, 0, 0)),
            pl.BlockSpec(memory_space=pltpu.MemorySpace.SMEM),
        ],
        out_specs=pl.BlockSpec((1, H, WC), lambda b: (b, 0, 0)),
        scratch_shapes=[pltpu.VMEM((Hs, WC), jnp.float32)],
        compiler_params=pltpu.CompilerParams(
            dimension_semantics=("parallel",)),
        cost_estimate=pl.CostEstimate(flops=int(flops), transcendentals=0,
                                      bytes_accessed=int(bytes_accessed)),
    )(x2d, packed['w'], packed['b'], packed['alpha'])

    out = out2d.reshape(B, H, W, Cs)
    return jnp.transpose(out, (0, 3, 1, 2))  # NHWC -> NCHW


# ---------------- pure-JAX reference for correctness ----------------

def encoder_reference(params, x_nchw):
    x = jnp.transpose(x_nchw, (0, 2, 3, 1))  # NHWC

    def conv(v, w, b):
        y = jax.lax.conv_general_dilated(
            v, w, window_strides=(1, 1), padding='SAME',
            dimension_numbers=('NHWC', 'HWIO', 'NHWC'),
            precision=jax.lax.Precision.HIGHEST)
        return y + b[None, None, None, :]

    def prelu(v, a):
        return jnp.where(v >= 0, v, a * v)

    x = prelu(conv(x, params['init_w'], params['init_b']), params['init_alpha'])
    for blk in params['res']:
        r = prelu(conv(x, blk['w1'], blk['b1']), blk['a1'])
        r = prelu(conv(r, blk['w2'], blk['b2']), blk['a2'])
        x = x + r
    x = conv(x, params['final_w'], params['final_b'])
    return jnp.transpose(x, (0, 3, 1, 2))


if __name__ == "__main__":
    config = {
        'in_channels': 4,
        'num_layers': 2,
        'kernel_size': 3,
        'channel_size': 16,
    }

    key = jax.random.PRNGKey(0)
    k_param, k_x = jax.random.split(key)

    params = init_encoder_params(k_param, config)

    # PyTorch-convention input: (B, C_in, H, W)
    x = jax.random.normal(k_x, (2, config['in_channels'], 16, 16), jnp.float32)

    packed = pack_encoder_params(params, W=x.shape[3])  # one-time weight prep
    out = encoder_forward(packed, x)
    out = jax.block_until_ready(out)

    assert out.shape == (2, config['channel_size'], 16, 16), out.shape
    assert out.dtype == jnp.float32

    ref = jax.block_until_ready(encoder_reference(params, x))
    max_err = float(jnp.max(jnp.abs(out - ref)))
    # bf16 MXU operands over a 768-deep contraction x 6 chained layers:
    # loosened tolerance vs. the f32 HIGHEST-precision reference.
    assert jnp.allclose(out, ref, rtol=2e-2, atol=5e-2), max_err

    print("KERNEL_OK")
</pallas_src>

<mosaic_0001>
module attributes {stable_mosaic.version = 11 : i64} {
  func.func @_encoder_kernel(%arg0: i32, %arg1: memref<1x16x256xf32, #tpu.memory_space<vmem>>, %arg2: memref<6x768x256xbf16, #tpu.memory_space<vmem>>, %arg3: memref<6x1x256xf32, #tpu.memory_space<vmem>>, %arg4: memref<6xf32, #tpu.memory_space<smem>>, %arg5: memref<1x16x256xf32, #tpu.memory_space<vmem>>, %arg6: memref<32x256xf32, #tpu.memory_space<vmem>>) attributes {dimension_semantics = [#tpu.dimension_semantics<parallel>], iteration_bounds = array<i64: 2>, scalar_prefetch = 0 : i64, scratch_operands = 1 : i64, tpu.core_type = #tpu.core_type<tc>, window_params = [{transform_indices = @transform_0, window_bounds = array<i64: 1, 16, 256>}, {pipeline_mode = #tpu.pipeline_mode<synchronous>, transform_indices = @transform_1, window_bounds = array<i64: 6, 768, 256>}, {pipeline_mode = #tpu.pipeline_mode<synchronous>, transform_indices = @transform_2, window_bounds = array<i64: 6, 1, 256>}, {transform_indices = @transform_3, window_bounds = array<i64: 6>}, {transform_indices = @transform_4, window_bounds = array<i64: 1, 16, 256>}]} {
    %cst = arith.constant 0.000000e+00 : f32
    %0 = vector.broadcast %cst : f32 to vector<32x256xf32>
    %c0 = arith.constant 0 : index
    %c0_0 = arith.constant 0 : index
    %1 = vector.load %arg6[%c0, %c0_0] : memref<32x256xf32, #tpu.memory_space<vmem>>, vector<32x256xf32>
    tpu.vector_store %arg6[%c0, %c0_0], %0 {strides = array<i32>} : memref<32x256xf32, #tpu.memory_space<vmem>>, vector<32x256xf32>,
    %c0_1 = arith.constant 0 : index
    %c0_2 = arith.constant 0 : index
    %c0_3 = arith.constant 0 : index
    %2 = vector.load %arg1[%c0_1, %c0_2, %c0_3] : memref<1x16x256xf32, #tpu.memory_space<vmem>>, vector<1x16x256xf32>
    %3 = vector.shape_cast %2 : vector<1x16x256xf32> to vector<16x256xf32>
    %c8 = arith.constant 8 : index
    %c0_4 = arith.constant 0 : index
    %4 = vector.load %arg6[%c8, %c0_4] : memref<32x256xf32, #tpu.memory_space<vmem>>, vector<16x256xf32>
    tpu.vector_store %arg6[%c8, %c0_4], %3 {strides = array<i32>} : memref<32x256xf32, #tpu.memory_space<vmem>>, vector<16x256xf32>,
    %c7 = arith.constant 7 : index
    %c0_5 = arith.constant 0 : index
    %5 = vector.load %arg6[%c7, %c0_5] : memref<32x256xf32, #tpu.memory_space<vmem>>, vector<16x256xf32>
    %c8_6 = arith.constant 8 : index
    %c0_7 = arith.constant 0 : index
    %6 = vector.load %arg6[%c8_6, %c0_7] : memref<32x256xf32, #tpu.memory_space<vmem>>, vector<16x256xf32>
    %c9 = arith.constant 9 : index
    %c0_8 = arith.constant 0 : index
    %7 = vector.load %arg6[%c9, %c0_8] : memref<32x256xf32, #tpu.memory_space<vmem>>, vector<16x256xf32>
    %8 = tpu.concatenate %5, %6, %7 in 1 : vector<16x256xf32>, vector<16x256xf32>, vector<16x256xf32> -> vector<16x768xf32>
    %9 = arith.truncf %8 : vector<16x768xf32> to vector<16x768xbf16>
    %c0_9 = arith.constant 0 : index
    %c0_10 = arith.constant 0 : index
    %c0_11 = arith.constant 0 : index
    %10 = vector.load %arg2[%c0_9, %c0_10, %c0_11] : memref<6x768x256xbf16, #tpu.memory_space<vmem>>, vector<1x768x256xbf16>
    %11 = vector.shape_cast %10 : vector<1x768x256xbf16> to vector<768x256xbf16>
    %cst_12 = arith.constant dense<0.000000e+00> : vector<16x256xf32>
    %12 = tpu.matmul %9, %11, %cst_12 {dimension_numbers = #tpu.dot_dimension_numbers<[1], [0], [0], [1], [0, 0, 1, 1], [], []>} : vector<16x768xbf16>, vector<768x256xbf16>, vector<16x256xf32> -> vector<16x256xf32>
    %c0_13 = arith.constant 0 : index
    %c0_14 = arith.constant 0 : index
    %c0_15 = arith.constant 0 : index
    %13 = vector.load %arg3[%c0_13, %c0_14, %c0_15] : memref<6x1x256xf32, #tpu.memory_space<vmem>>, vector<1x1x256xf32>
    %14 = vector.shape_cast %13 : vector<1x1x256xf32> to vector<1x256xf32>
    %15 = vector.broadcast %14 : vector<1x256xf32> to vector<16x256xf32>
    %16 = arith.addf %12, %15 : vector<16x256xf32>
    %c0_16 = arith.constant 0 : index
    %17 = memref.load %arg4[%c0_16] : memref<6xf32, #tpu.memory_space<smem>>
    %cst_17 = arith.constant 0.000000e+00 : f32
    %18 = vector.broadcast %cst_17 : f32 to vector<16x256xf32>
    %19 = arith.cmpf oge, %16, %18 : vector<16x256xf32>
    %20 = vector.broadcast %17 : f32 to vector<16x256xf32>
    %21 = arith.mulf %20, %16 : vector<16x256xf32>
    %22 = arith.select %19, %16, %21 : vector<16x256xi1>, vector<16x256xf32>
    %c8_18 = arith.constant 8 : index
    %c0_19 = arith.constant 0 : index
    %23 = vector.load %arg6[%c8_18, %c0_19] : memref<32x256xf32, #tpu.memory_space<vmem>>, vector<16x256xf32>
    tpu.vector_store %arg6[%c8_18, %c0_19], %22 {strides = array<i32>} : memref<32x256xf32, #tpu.memory_space<vmem>>, vector<16x256xf32>,
    %c7_20 = arith.constant 7 : index
    %c0_21 = arith.constant 0 : index
    %24 = vector.load %arg6[%c7_20, %c0_21] : memref<32x256xf32, #tpu.memory_space<vmem>>, vector<16x256xf32>
    %c8_22 = arith.constant 8 : index
    %c0_23 = arith.constant 0 : index
    %25 = vector.load %arg6[%c8_22, %c0_23] : memref<32x256xf32, #tpu.memory_space<vmem>>, vector<16x256xf32>
    %c9_24 = arith.constant 9 : index
    %c0_25 = arith.constant 0 : index
    %26 = vector.load %arg6[%c9_24, %c0_25] : memref<32x256xf32, #tpu.memory_space<vmem>>, vector<16x256xf32>
    %27 = tpu.concatenate %24, %25, %26 in 1 : vector<16x256xf32>, vector<16x256xf32>, vector<16x256xf32> -> vector<16x768xf32>
    %28 = arith.truncf %27 : vector<16x768xf32> to vector<16x768xbf16>
    %c1 = arith.constant 1 : index
    %c0_26 = arith.constant 0 : index
    %c0_27 = arith.constant 0 : index
    %29 = vector.load %arg2[%c1, %c0_26, %c0_27] : memref<6x768x256xbf16, #tpu.memory_space<vmem>>, vector<1x768x256xbf16>
    %30 = vector.shape_cast %29 : vector<1x768x256xbf16> to vector<768x256xbf16>
    %cst_28 = arith.constant dense<0.000000e+00> : vector<16x256xf32>
    %31 = tpu.matmul %28, %30, %cst_28 {dimension_numbers = #tpu.dot_dimension_numbers<[1], [0], [0], [1], [0, 0, 1, 1], [], []>} : vector<16x768xbf16>, vector<768x256xbf16>, vector<16x256xf32> -> vector<16x256xf32>
    %c1_29 = arith.constant 1 : index
    %c0_30 = arith.constant 0 : index
    %c0_31 = arith.constant 0 : index
    %32 = vector.load %arg3[%c1_29, %c0_30, %c0_31] : memref<6x1x256xf32, #tpu.memory_space<vmem>>, vector<1x1x256xf32>
    %33 = vector.shape_cast %32 : vector<1x1x256xf32> to vector<1x256xf32>
    %34 = vector.broadcast %33 : vector<1x256xf32> to vector<16x256xf32>
    %35 = arith.addf %31, %34 : vector<16x256xf32>
    %c1_32 = arith.constant 1 : index
    %36 = memref.load %arg4[%c1_32] : memref<6xf32, #tpu.memory_space<smem>>
    %cst_33 = arith.constant 0.000000e+00 : f32
    %37 = vector.broadcast %cst_33 : f32 to vector<16x256xf32>
    %38 = arith.cmpf oge, %35, %37 : vector<16x256xf32>
    %39 = vector.broadcast %36 : f32 to vector<16x256xf32>
    %40 = arith.mulf %39, %35 : vector<16x256xf32>
    %41 = arith.select %38, %35, %40 : vector<16x256xi1>, vector<16x256xf32>
    %c8_34 = arith.constant 8 : index
    %c0_35 = arith.constant 0 : index
    %42 = vector.load %arg6[%c8_34, %c0_35] : memref<32x256xf32, #tpu.memory_space<vmem>>, vector<16x256xf32>
    tpu.vector_store %arg6[%c8_34, %c0_35], %41 {strides = array<i32>} : memref<32x256xf32, #tpu.memory_space<vmem>>, vector<16x256xf32>,
    %c7_36 = arith.constant 7 : index
    %c0_37 = arith.constant 0 : index
    %43 = vector.load %arg6[%c7_36, %c0_37] : memref<32x256xf32, #tpu.memory_space<vmem>>, vector<16x256xf32>
    %c8_38 = arith.constant 8 : index
    %c0_39 = arith.constant 0 : index
    %44 = vector.load %arg6[%c8_38, %c0_39] : memref<32x256xf32, #tpu.memory_space<vmem>>, vector<16x256xf32>
    %c9_40 = arith.constant 9 : index
    %c0_41 = arith.constant 0 : index
    %45 = vector.load %arg6[%c9_40, %c0_41] : memref<32x256xf32, #tpu.memory_space<vmem>>, vector<16x256xf32>
    %46 = tpu.concatenate %43, %44, %45 in 1 : vector<16x256xf32>, vector<16x256xf32>, vector<16x256xf32> -> vector<16x768xf32>
    %47 = arith.truncf %46 : vector<16x768xf32> to vector<16x768xbf16>
    %c2 = arith.constant 2 : index
    %c0_42 = arith.constant 0 : index
    %c0_43 = arith.constant 0 : index
    %48 = vector.load %arg2[%c2, %c0_42, %c0_43] : memref<6x768x256xbf16, #tpu.memory_space<vmem>>, vector<1x768x256xbf16>
    %49 = vector.shape_cast %48 : vector<1x768x256xbf16> to vector<768x256xbf16>
    %cst_44 = arith.constant dense<0.000000e+00> : vector<16x256xf32>
    %50 = tpu.matmul %47, %49, %cst_44 {dimension_numbers = #tpu.dot_dimension_numbers<[1], [0], [0], [1], [0, 0, 1, 1], [], []>} : vector<16x768xbf16>, vector<768x256xbf16>, vector<16x256xf32> -> vector<16x256xf32>
    %c2_45 = arith.constant 2 : index
    %c0_46 = arith.constant 0 : index
    %c0_47 = arith.constant 0 : index
    %51 = vector.load %arg3[%c2_45, %c0_46, %c0_47] : memref<6x1x256xf32, #tpu.memory_space<vmem>>, vector<1x1x256xf32>
    %52 = vector.shape_cast %51 : vector<1x1x256xf32> to vector<1x256xf32>
    %53 = vector.broadcast %52 : vector<1x256xf32> to vector<16x256xf32>
    %54 = arith.addf %50, %53 : vector<16x256xf32>
    %c2_48 = arith.constant 2 : index
    %55 = memref.load %arg4[%c2_48] : memref<6xf32, #tpu.memory_space<smem>>
    %cst_49 = arith.constant 0.000000e+00 : f32
    %56 = vector.broadcast %cst_49 : f32 to vector<16x256xf32>
    %57 = arith.cmpf oge, %54, %56 : vector<16x256xf32>
    %58 = vector.broadcast %55 : f32 to vector<16x256xf32>
    %59 = arith.mulf %58, %54 : vector<16x256xf32>
    %60 = arith.select %57, %54, %59 : vector<16x256xi1>, vector<16x256xf32>
    %61 = arith.addf %22, %60 : vector<16x256xf32>
    %c8_50 = arith.constant 8 : index
    %c0_51 = arith.constant 0 : index
    %62 = vector.load %arg6[%c8_50, %c0_51] : memref<32x256xf32, #tpu.memory_space<vmem>>, vector<16x256xf32>
    tpu.vector_store %arg6[%c8_50, %c0_51], %61 {strides = array<i32>} : memref<32x256xf32, #tpu.memory_space<vmem>>, vector<16x256xf32>,
    %c7_52 = arith.constant 7 : index
    %c0_53 = arith.constant 0 : index
    %63 = vector.load %arg6[%c7_52, %c0_53] : memref<32x256xf32, #tpu.memory_space<vmem>>, vector<16x256xf32>
    %c8_54 = arith.constant 8 : index
    %c0_55 = arith.constant 0 : index
    %64 = vector.load %arg6[%c8_54, %c0_55] : memref<32x256xf32, #tpu.memory_space<vmem>>, vector<16x256xf32>
    %c9_56 = arith.constant 9 : index
    %c0_57 = arith.constant 0 : index
    %65 = vector.load %arg6[%c9_56, %c0_57] : memref<32x256xf32, #tpu.memory_space<vmem>>, vector<16x256xf32>
    %66 = tpu.concatenate %63, %64, %65 in 1 : vector<16x256xf32>, vector<16x256xf32>, vector<16x256xf32> -> vector<16x768xf32>
    %67 = arith.truncf %66 : vector<16x768xf32> to vector<16x768xbf16>
    %c3 = arith.constant 3 : index
    %c0_58 = arith.constant 0 : index
    %c0_59 = arith.constant 0 : index
    %68 = vector.load %arg2[%c3, %c0_58, %c0_59] : memref<6x768x256xbf16, #tpu.memory_space<vmem>>, vector<1x768x256xbf16>
    %69 = vector.shape_cast %68 : vector<1x768x256xbf16> to vector<768x256xbf16>
    %cst_60 = arith.constant dense<0.000000e+00> : vector<16x256xf32>
    %70 = tpu.matmul %67, %69, %cst_60 {dimension_numbers = #tpu.dot_dimension_numbers<[1], [0], [0], [1], [0, 0, 1, 1], [], []>} : vector<16x768xbf16>, vector<768x256xbf16>, vector<16x256xf32> -> vector<16x256xf32>
    %c3_61 = arith.constant 3 : index
    %c0_62 = arith.constant 0 : index
    %c0_63 = arith.constant 0 : index
    %71 = vector.load %arg3[%c3_61, %c0_62, %c0_63] : memref<6x1x256xf32, #tpu.memory_space<vmem>>, vector<1x1x256xf32>
    %72 = vector.shape_cast %71 : vector<1x1x256xf32> to vector<1x256xf32>
    %73 = vector.broadcast %72 : vector<1x256xf32> to vector<16x256xf32>
    %74 = arith.addf %70, %73 : vector<16x256xf32>
    %c3_64 = arith.constant 3 : index
    %75 = memref.load %arg4[%c3_64] : memref<6xf32, #tpu.memory_space<smem>>
    %cst_65 = arith.constant 0.000000e+00 : f32
    %76 = vector.broadcast %cst_65 : f32 to vector<16x256xf32>
    %77 = arith.cmpf oge, %74, %76 : vector<16x256xf32>
    %78 = vector.broadcast %75 : f32 to vector<16x256xf32>
    %79 = arith.mulf %78, %74 : vector<16x256xf32>
    %80 = arith.select %77, %74, %79 : vector<16x256xi1>, vector<16x256xf32>
    %c8_66 = arith.constant 8 : index
    %c0_67 = arith.constant 0 : index
    %81 = vector.load %arg6[%c8_66, %c0_67] : memref<32x256xf32, #tpu.memory_space<vmem>>, vector<16x256xf32>
    tpu.vector_store %arg6[%c8_66, %c0_67], %80 {strides = array<i32>} : memref<32x256xf32, #tpu.memory_space<vmem>>, vector<16x256xf32>,
    %c7_68 = arith.constant 7 : index
    %c0_69 = arith.constant 0 : index
    %82 = vector.load %arg6[%c7_68, %c0_69] : memref<32x256xf32, #tpu.memory_space<vmem>>, vector<16x256xf32>
    %c8_70 = arith.constant 8 : index
    %c0_71 = arith.constant 0 : index
    %83 = vector.load %arg6[%c8_70, %c0_71] : memref<32x256xf32, #tpu.memory_space<vmem>>, vector<16x256xf32>
    %c9_72 = arith.constant 9 : index
    %c0_73 = arith.constant 0 : index
    %84 = vector.load %arg6[%c9_72, %c0_73] : memref<32x256xf32, #tpu.memory_space<vmem>>, vector<16x256xf32>
    %85 = tpu.concatenate %82, %83, %84 in 1 : vector<16x256xf32>, vector<16x256xf32>, vector<16x256xf32> -> vector<16x768xf32>
    %86 = arith.truncf %85 : vector<16x768xf32> to vector<16x768xbf16>
    %c4 = arith.constant 4 : index
    %c0_74 = arith.constant 0 : index
    %c0_75 = arith.constant 0 : index
    %87 = vector.load %arg2[%c4, %c0_74, %c0_75] : memref<6x768x256xbf16, #tpu.memory_space<vmem>>, vector<1x768x256xbf16>
    %88 = vector.shape_cast %87 : vector<1x768x256xbf16> to vector<768x256xbf16>
    %cst_76 = arith.constant dense<0.000000e+00> : vector<16x256xf32>
    %89 = tpu.matmul %86, %88, %cst_76 {dimension_numbers = #tpu.dot_dimension_numbers<[1], [0], [0], [1], [0, 0, 1, 1], [], []>} : vector<16x768xbf16>, vector<768x256xbf16>, vector<16x256xf32> -> vector<16x256xf32>
    %c4_77 = arith.constant 4 : index
    %c0_78 = arith.constant 0 : index
    %c0_79 = arith.constant 0 : index
    %90 = vector.load %arg3[%c4_77, %c0_78, %c0_79] : memref<6x1x256xf32, #tpu.memory_space<vmem>>, vector<1x1x256xf32>
    %91 = vector.shape_cast %90 : vector<1x1x256xf32> to vector<1x256xf32>
    %92 = vector.broadcast %91 : vector<1x256xf32> to vector<16x256xf32>
    %93 = arith.addf %89, %92 : vector<16x256xf32>
    %c4_80 = arith.constant 4 : index
    %94 = memref.load %arg4[%c4_80] : memref<6xf32, #tpu.memory_space<smem>>
    %cst_81 = arith.constant 0.000000e+00 : f32
    %95 = vector.broadcast %cst_81 : f32 to vector<16x256xf32>
    %96 = arith.cmpf oge, %93, %95 : vector<16x256xf32>
    %97 = vector.broadcast %94 : f32 to vector<16x256xf32>
    %98 = arith.mulf %97, %93 : vector<16x256xf32>
    %99 = arith.select %96, %93, %98 : vector<16x256xi1>, vector<16x256xf32>
    %100 = arith.addf %61, %99 : vector<16x256xf32>
    %c8_82 = arith.constant 8 : index
    %c0_83 = arith.constant 0 : index
    %101 = vector.load %arg6[%c8_82, %c0_83] : memref<32x256xf32, #tpu.memory_space<vmem>>, vector<16x256xf32>
    tpu.vector_store %arg6[%c8_82, %c0_83], %100 {strides = array<i32>} : memref<32x256xf32, #tpu.memory_space<vmem>>, vector<16x256xf32>,
    %c7_84 = arith.constant 7 : index
    %c0_85 = arith.constant 0 : index
    %102 = vector.load %arg6[%c7_84, %c0_85] : memref<32x256xf32, #tpu.memory_space<vmem>>, vector<16x256xf32>
    %c8_86 = arith.constant 8 : index
    %c0_87 = arith.constant 0 : index
    %103 = vector.load %arg6[%c8_86, %c0_87] : memref<32x256xf32, #tpu.memory_space<vmem>>, vector<16x256xf32>
    %c9_88 = arith.constant 9 : index
    %c0_89 = arith.constant 0 : index
    %104 = vector.load %arg6[%c9_88, %c0_89] : memref<32x256xf32, #tpu.memory_space<vmem>>, vector<16x256xf32>
    %105 = tpu.concatenate %102, %103, %104 in 1 : vector<16x256xf32>, vector<16x256xf32>, vector<16x256xf32> -> vector<16x768xf32>
    %106 = arith.truncf %105 : vector<16x768xf32> to vector<16x768xbf16>
    %c5 = arith.constant 5 : index
    %c0_90 = arith.constant 0 : index
    %c0_91 = arith.constant 0 : index
    %107 = vector.load %arg2[%c5, %c0_90, %c0_91] : memref<6x768x256xbf16, #tpu.memory_space<vmem>>, vector<1x768x256xbf16>
    %108 = vector.shape_cast %107 : vector<1x768x256xbf16> to vector<768x256xbf16>
    %cst_92 = arith.constant dense<0.000000e+00> : vector<16x256xf32>
    %109 = tpu.matmul %106, %108, %cst_92 {dimension_numbers = #tpu.dot_dimension_numbers<[1], [0], [0], [1], [0, 0, 1, 1], [], []>} : vector<16x768xbf16>, vector<768x256xbf16>, vector<16x256xf32> -> vector<16x256xf32>
    %c5_93 = arith.constant 5 : index
    %c0_94 = arith.constant 0 : index
    %c0_95 = arith.constant 0 : index
    %110 = vector.load %arg3[%c5_93, %c0_94, %c0_95] : memref<6x1x256xf32, #tpu.memory_space<vmem>>, vector<1x1x256xf32>
    %111 = vector.shape_cast %110 : vector<1x1x256xf32> to vector<1x256xf32>
    %112 = vector.broadcast %111 : vector<1x256xf32> to vector<16x256xf32>
    %113 = arith.addf %109, %112 : vector<16x256xf32>
    %c0_96 = arith.constant 0 : index
    %c0_97 = arith.constant 0 : index
    %c0_98 = arith.constant 0 : index
    %114 = vector.load %arg5[%c0_96, %c0_97, %c0_98] : memref<1x16x256xf32, #tpu.memory_space<vmem>>, vector<1x16x256xf32>
    %115 = vector.shape_cast %114 : vector<1x16x256xf32> to vector<16x256xf32>
    %116 = vector.shape_cast %113 : vector<16x256xf32> to vector<1x16x256xf32>
    tpu.vector_store %arg5[%c0_96, %c0_97, %c0_98], %116 {strides = array<i32>} : memref<1x16x256xf32, #tpu.memory_space<vmem>>, vector<1x16x256xf32>,
    return
  }
  func.func @transform_0(%arg0: i32) -> (i32, i32, i32) {
    %c0_i32 = arith.constant 0 : i32
    %c0_i32_0 = arith.constant 0 : i32
    %c0_i32_1 = arith.constant 0 : i32
    return %arg0, %c0_i32, %c0_i32_0 : i32, i32, i32
  }
  func.func @transform_1(%arg0: i32) -> (i32, i32, i32) {
    %c0_i32 = arith.constant 0 : i32
    %c0_i32_0 = arith.constant 0 : i32
    %c0_i32_1 = arith.constant 0 : i32
    %c0_i32_2 = arith.constant 0 : i32
    return %c0_i32, %c0_i32_0, %c0_i32_1 : i32, i32, i32
  }
  func.func @transform_2(%arg0: i32) -> (i32, i32, i32) {
    %c0_i32 = arith.constant 0 : i32
    %c0_i32_0 = arith.constant 0 : i32
    %c0_i32_1 = arith.constant 0 : i32
    %c0_i32_2 = arith.constant 0 : i32
    return %c0_i32, %c0_i32_0, %c0_i32_1 : i32, i32, i32
  }
  func.func @transform_3(%arg0: i32) -> i32 {
    %c0_i32 = arith.constant 0 : i32
    %c0_i32_0 = arith.constant 0 : i32
    return %c0_i32 : i32
  }
  func.func @transform_4(%arg0: i32) -> (i32, i32, i32) {
    %c0_i32 = arith.constant 0 : i32
    %c0_i32_0 = arith.constant 0 : i32
    %c0_i32_1 = arith.constant 0 : i32
    return %arg0, %c0_i32, %c0_i32_0 : i32, i32, i32
  }
}

</mosaic_0001>

<llo_original>
// kernel: tpu_custom_call.1
$region0: #{tpu_custom_call.1}
  #allocation0 [shape = 'u32[]', space=smem, size = 0x4, offset = 0x4, fixed_abs, tag = 'smem constant byte address 0x4 - core index']
  #allocation1 [shape = 'u32[144,128]{1,0:T(1,128)}', space=vmem, size = 0x12000, scoped, tag = 'internal scratch']
  #allocation2 [shape = 'f32[32,256]{1,0:T(8,128)}', space=vmem, size = 0x8000, scoped, tag = 'scratch operand']
  %s0 = inlined_call_operand.hbm [shape: f32[2,16,256], index: 0, kind: input, shape index: {}]
  %s1 = inlined_call_operand.hbm [shape: bf16[6,768,256], index: 1, kind: input, shape index: {}]
  %s2 = inlined_call_operand.hbm [shape: f32[6,1,256], index: 2, kind: input, shape index: {}]
  %s3 = inlined_call_operand.hbm [shape: f32[6], index: 3, kind: input, shape index: {}]
  %s4 = inlined_call_operand.hbm [shape: f32[2,16,256], index: 4, kind: output, shape index: {}]
  %s5 = sld [smem:[#allocation0]]
  $region65: #{tpu_custom_call.1} parent=0
    _
  %s7 = ssub.s32 1, %s5
  %s8 = scalar_select 0, %s7, %s5
  $region1: #{tpu_custom_call.1} parent=0
    #allocation3 [shape = 'u8[32768]{0}', space=vmem, size = 0x8000, scoped, tag = 'input window, operand 0']
    #allocation4 [shape = 's32[2]{0}', space=sflag, size = 0x8, scoped, tag = 'scoped memory for tpu_custom_call.1']
    #allocation5 [shape = 's32[2]{0}', space=sflag, size = 0x8, scoped, tag = 'scoped memory for tpu_custom_call.1']
    #allocation6 [shape = 's32[2]{0}', space=sflag, size = 0x8, scoped, tag = 'scoped memory for tpu_custom_call.1']
    #allocation7 [shape = 'u8[2359296]{0}', space=vmem, size = 0x240000, scoped, tag = 'input window, operand 1, single buffered']
    #allocation8 [shape = 's32[1]{0}', space=sflag, size = 0x4, scoped, tag = 'scoped memory for tpu_custom_call.1']
    #allocation9 [shape = 'u8[6144]{0}', space=vmem, size = 0x1800, scoped, tag = 'input window, operand 2, single buffered']
    #allocation10 [shape = 'u8[512]{0}', space=smem, size = 0x200, scoped, tag = 'input window, operand 3, single buffered']
    #allocation11 [shape = 'u8[32768]{0}', space=vmem, size = 0x8000, scoped, tag = 'output window, operand 0']
    %9 = vsyncpa [#allocation4], 0
    %s10 = scalar_lea.sflag [#allocation4], 1
    %11 = vsyncpa %s10, 0
    %12 = vsyncpa [#allocation8], 0
    %13 = vsyncpa [#allocation6], 0
    %14 = vsyncpa [#allocation5], 0
    %s15 = scalar_lea.sflag [#allocation5], 1
    %16 = vsyncpa %s15, 0
    loop: start=0, step=1, limit=4
    $region2: #{tpu_custom_call.1} parent=1 // loop_pre_header
      _
    $region3: #{tpu_custom_call.1} parent=1 // loop_header
      %s18 = sphi 0, %s22
      %p19 = scmp.ge.s32.totalorder %s18, 4
      %s28 = sphi 0, %s30
      %s31 = sphi 0, %s28
      %s32 = sphi 0, %s31
      %s48 = sphi 0, %s32
      %s52 = sphi 0, %s52
      %s54 = sphi 0, %s52
      %s55 = sphi 0, %s54
      %s69 = sphi 0, %s55
      %s73 = sphi 0, %s73
      %s75 = sphi 0, %s73
      %s76 = sphi 0, %s75
      %s90 = sphi 0, %s76
      %s94 = sphi 0, %s94
      %s96 = sphi 0, %s94
      %s97 = sphi 0, %s96
      %s111 = sphi 0, %s97
      %s117 = sphi 0, %s119
      %s120 = sphi 0, %s117
      %s121 = sphi 0, %s120
      %s137 = sphi 0, %s121
    $region4: #{tpu_custom_call.1} parent=1 // loop_header_branch
      %21 = sbr.rel (%p19) target = $region8
    $region5: #{tpu_custom_call.1} parent=1 // loop_body
      %s23 = ssub.s32 %s18, 1
      %s24 = ssub.s32 %s18, 2
      %s25 = sadd.s32 %s18, 1
      %s26 = ssub.s32 %s18, %s25
      %p27 = scmp.eq.s32.totalorder %s26, 0
      %s29 = sadd.s32 %s28, 1
      %s30 = scalar_select %p27, %s28, %s29
      %p33 = pneg %p27
      %p34 = scmp.eq.s32.totalorder %s18, 1
      %p35 = por %p33, %p34
      %p36 = scmp.ne.s32.totalorder %s28, %s31
      %p37 = scmp.eq.s32.totalorder %s18, 0
      %p38 = por %p36, %p37
      %p39 = scmp.ne.s32.totalorder %s28, %s31
      %p40 = scmp.eq.s32.totalorder %s23, 1
      %p41 = por %p39, %p40
      %p42 = scmp.ne.s32.totalorder %s31, %s32
      %p43 = scmp.eq.s32.totalorder %s23, 0
      %p44 = por %p42, %p43
      %p45 = scmp.ne.s32.totalorder %s31, %s32
      %p46 = scmp.eq.s32.totalorder %s24, 1
      %p47 = por %p45, %p46
      %p49 = scmp.ne.s32.totalorder %s32, %s48
      %p50 = scmp.eq.s32.totalorder %s24, 0
      %p51 = por %p49, %p50
      %s53 = sadd.s32 %s52, 1
      %p56 = scmp.eq.s32.totalorder %s18, 1
      %p57 = scmp.ne.s32.totalorder %s52, %s54
      %p58 = scmp.eq.s32.totalorder %s18, 0
      %p59 = por %p57, %p58
      %p60 = scmp.ne.s32.totalorder %s52, %s54
      %p61 = scmp.eq.s32.totalorder %s23, 1
      %p62 = por %p60, %p61
      %p63 = scmp.ne.s32.totalorder %s54, %s55
      %p64 = scmp.eq.s32.totalorder %s23, 0
      %p65 = por %p63, %p64
      %p66 = scmp.ne.s32.totalorder %s54, %s55
      %p67 = scmp.eq.s32.totalorder %s24, 1
      %p68 = por %p66, %p67
      %p70 = scmp.ne.s32.totalorder %s55, %s69
      %p71 = scmp.eq.s32.totalorder %s24, 0
      %p72 = por %p70, %p71
      %s74 = sadd.s32 %s73, 1
      %p77 = scmp.eq.s32.totalorder %s18, 1
      %p78 = scmp.ne.s32.totalorder %s73, %s75
      %p79 = scmp.eq.s32.totalorder %s18, 0
      %p80 = por %p78, %p79
      %p81 = scmp.ne.s32.totalorder %s73, %s75
      %p82 = scmp.eq.s32.totalorder %s23, 1
      %p83 = por %p81, %p82
      %p84 = scmp.ne.s32.totalorder %s75, %s76
      %p85 = scmp.eq.s32.totalorder %s23, 0
      %p86 = por %p84, %p85
      %p87 = scmp.ne.s32.totalorder %s75, %s76
      %p88 = scmp.eq.s32.totalorder %s24, 1
      %p89 = por %p87, %p88
      %p91 = scmp.ne.s32.totalorder %s76, %s90
      %p92 = scmp.eq.s32.totalorder %s24, 0
      %p93 = por %p91, %p92
      %s95 = sadd.s32 %s94, 1
      %p98 = scmp.eq.s32.totalorder %s18, 1
      %p99 = scmp.ne.s32.totalorder %s94, %s96
      %p100 = scmp.eq.s32.totalorder %s18, 0
      %p101 = por %p99, %p100
      %p102 = scmp.ne.s32.totalorder %s94, %s96
      %p103 = scmp.eq.s32.totalorder %s23, 1
      %p104 = por %p102, %p103
      %p105 = scmp.ne.s32.totalorder %s96, %s97
      %p106 = scmp.eq.s32.totalorder %s23, 0
      %p107 = por %p105, %p106
      %p108 = scmp.ne.s32.totalorder %s96, %s97
      %p109 = scmp.eq.s32.totalorder %s24, 1
      %p110 = por %p108, %p109
      %p112 = scmp.ne.s32.totalorder %s97, %s111
      %p113 = scmp.eq.s32.totalorder %s24, 0
      %p114 = por %p112, %p113
      %s115 = ssub.s32 %s18, %s25
      %p116 = scmp.eq.s32.totalorder %s115, 0
      %s118 = sadd.s32 %s117, 1
      %s119 = scalar_select %p116, %s117, %s118
      %p122 = pneg %p116
      %p123 = scmp.eq.s32.totalorder %s18, 1
      %p124 = por %p122, %p123
      %p125 = scmp.ne.s32.totalorder %s117, %s120
      %p126 = scmp.eq.s32.totalorder %s18, 0
      %p127 = por %p125, %p126
      %p128 = scmp.ne.s32.totalorder %s117, %s120
      %p129 = scmp.eq.s32.totalorder %s23, 1
      %p130 = por %p128, %p129
      %p131 = scmp.ne.s32.totalorder %s120, %s121
      %p132 = scmp.eq.s32.totalorder %s23, 0
      %p133 = por %p131, %p132
      %p134 = scmp.ne.s32.totalorder %s120, %s121
      %p135 = scmp.eq.s32.totalorder %s24, 1
      %p136 = por %p134, %p135
      %p138 = scmp.ne.s32.totalorder %s121, %s137
      %p139 = scmp.eq.s32.totalorder %s24, 0
      %p140 = por %p138, %p139
      %p141 = scmp.le.s32.totalorder 1, %s18
      %p142 = scmp.lt.s32.totalorder %s18, 3
      %p143 = pnand %p141, %p142
      %p144 = pneg %p143
      // Predicated region
      $region9: #{tpu_custom_call.1} parent=5 // pred_check
        _
      $region10: #{tpu_custom_call.1} parent=5 // pred_check_branch
        %146 = sbr.rel (%p143) target = $region12
      $region11: #{tpu_custom_call.1} parent=5 // pred_region
        %s147 = ssub.s32 %s18, 1
        // Predicated region
        $region13: #{tpu_custom_call.1} parent=11 // pred_check
          %p148 = pneg %p65
        $region14: #{tpu_custom_call.1} parent=11 // pred_check_branch
          %150 = sbr.rel (%p148) target = $region16
        $region15: #{tpu_custom_call.1} parent=11 // pred_region
          %s152 = ssub.s32 73728, 73728
          %153 = vsyncadd [#allocation8], %s152
          %s154 = sshll.u32 [#allocation7], 4
          %s155 = int_to_ptr.vmem [resolvable:$true] %s154
          %160 = dma.hbm_to_vmem [thread:$0]  %s1, 73728, %s155, [#allocation8], 128, 128, 8
        $region16: #{tpu_custom_call.1} parent=11 // pred_fallthru
          _
        // Predicated region
        $region17: #{tpu_custom_call.1} parent=11 // pred_check
          %p161 = pneg %p86
        $region18: #{tpu_custom_call.1} parent=11 // pred_check_branch
          %163 = sbr.rel (%p161) target = $region20
        $region19: #{tpu_custom_call.1} parent=11 // pred_region
          %s165 = ssub.s32 192, 192
          %166 = vsyncadd [#allocation8], %s165
          %s167 = sshll.u32 [#allocation9], 4
          %s168 = int_to_ptr.vmem [resolvable:$true] %s167
          %173 = dma.hbm_to_vmem [thread:$0]  %s2, 192, %s168, [#allocation8], 32, 32, 2
        $region20: #{tpu_custom_call.1} parent=11 // pred_fallthru
          _
        // Predicated region
        $region21: #{tpu_custom_call.1} parent=11 // pred_check
          %p174 = pneg %p107
        $region22: #{tpu_custom_call.1} parent=11 // pred_check_branch
          %176 = sbr.rel (%p174) target = $region24
        $region23: #{tpu_custom_call.1} parent=11 // pred_region
          %s178 = ssub.s32 16, 16
          %179 = vsyncadd [#allocation6], %s178
          %182 = dma.hbm_to_smem %s3, 16, [#allocation10], [#allocation6]
        $region24: #{tpu_custom_call.1} parent=11 // pred_fallthru
          _
      $region12: #{tpu_custom_call.1} parent=5 // pred_fallthru
        _
      %p183 = scmp.lt.s32.totalorder %s18, 2
      // Predicated region
      $region25: #{tpu_custom_call.1} parent=5 // pred_check
        %p184 = pneg %p183
      $region26: #{tpu_custom_call.1} parent=5 // pred_check_branch
        %186 = sbr.rel (%p184) target = $region28
      $region27: #{tpu_custom_call.1} parent=5 // pred_region
        // Predicated region
        $region29: #{tpu_custom_call.1} parent=27 // pred_check
          %p187 = pneg %p38
        $region30: #{tpu_custom_call.1} parent=27 // pred_check_branch
          %189 = sbr.rel (%p187) target = $region32
        $region31: #{tpu_custom_call.1} parent=27 // pred_region
          %s190 = sand.u32 %s28, 1
          %s191 = scalar_lea.sflag [#allocation4], %s190
          %s192 = sand.u32 %s28, 1
          %s193 = smul.addr %s192, 32
          %s194 = scalar_lea.vmem [#allocation3], %s193
          %s196 = ssub.s32 512, 512
          %197 = vsyncadd %s191, %s196
          %s198 = smul.addr %s18, 4
          %s199 = smul.addr %s198, 128
          %s200 = scalar_lea.hbm %s0, %s199
          %s201 = sshll.u32 %s194, 4
          %s202 = int_to_ptr.vmem [resolvable:$true] %s201
          %207 = dma.hbm_to_vmem [thread:$0]  %s200, 512, %s202, %s191, 256, 256, 16
        $region32: #{tpu_custom_call.1} parent=27 // pred_fallthru
          _
      $region28: #{tpu_custom_call.1} parent=5 // pred_fallthru
        _
      %p208 = scmp.le.s32.totalorder 1, %s18
      %p209 = scmp.lt.s32.totalorder %s18, 3
      %p210 = pnand %p208, %p209
      %p211 = pneg %p210
      // Predicated region
      $region33: #{tpu_custom_call.1} parent=5 // pred_check
        _
      $region34: #{tpu_custom_call.1} parent=5 // pred_check_branch
        %213 = sbr.rel (%p210) target = $region36
      $region35: #{tpu_custom_call.1} parent=5 // pred_region
        %s214 = ssub.s32 %s18, 1
        %s215 = sand.u32 %s31, 1
        %s216 = scalar_lea.sflag [#allocation4], %s215
        %s217 = sand.u32 %s31, 1
        %s218 = smul.addr %s217, 32
        %s219 = scalar_lea.vmem [#allocation3], %s218
        // Predicated region
        $region37: #{tpu_custom_call.1} parent=35 // pred_check
          %p220 = pneg %p44
        $region38: #{tpu_custom_call.1} parent=35 // pred_check_branch
          %222 = sbr.rel (%p220) target = $region40
        $region39: #{tpu_custom_call.1} parent=35 // pred_region
          %223 = dma.done %s216, 512
        $region40: #{tpu_custom_call.1} parent=35 // pred_fallthru
          _
        // Predicated region
        $region41: #{tpu_custom_call.1} parent=35 // pred_check
          %p224 = pneg %p65
        $region42: #{tpu_custom_call.1} parent=35 // pred_check_branch
          %226 = sbr.rel (%p224) target = $region44
        $region43: #{tpu_custom_call.1} parent=35 // pred_region
          %227 = dma.done [#allocation8], 73728
        $region44: #{tpu_custom_call.1} parent=35 // pred_fallthru
          _
        // Predicated region
        $region45: #{tpu_custom_call.1} parent=35 // pred_check
          %p228 = pneg %p86
        $region46: #{tpu_custom_call.1} parent=35 // pred_check_branch
          %230 = sbr.rel (%p228) target = $region48
        $region47: #{tpu_custom_call.1} parent=35 // pred_region
          %231 = dma.done [#allocation8], 192
        $region48: #{tpu_custom_call.1} parent=35 // pred_fallthru
          _
        // Predicated region
        $region49: #{tpu_custom_call.1} parent=35 // pred_check
          %p232 = pneg %p107
        $region50: #{tpu_custom_call.1} parent=35 // pred_check_branch
          %234 = sbr.rel (%p232) target = $region52
        $region51: #{tpu_custom_call.1} parent=35 // pred_region
          %235 = dma.done [#allocation6], 16
        $region52: #{tpu_custom_call.1} parent=35 // pred_fallthru
          _
        %236 = sfence
        %s237 = sand.u32 %s31, 1
        %s238 = scalar_lea.sflag [#allocation4], %s237
        %s239 = sand.u32 %s31, 1
        %s240 = smul.addr %s239, 32
        %s241 = scalar_lea.vmem [#allocation3], %s240
        %p242 = pneg %p44
        %p243 = pneg %p41
        %p244 = pneg %p65
        %p245 = pneg %p62
        %p246 = pneg %p86
        %p247 = pneg %p83
        %p248 = pneg %p107
        %p249 = pneg %p104
        %p250 = pneg %p133
        %p251 = pneg %p130
        %s252 = sand.u32 %s120, 1
        %s253 = scalar_lea.sflag [#allocation5], %s252
        %s254 = sand.u32 %s120, 1
        %s255 = smul.addr %s254, 32
        %s256 = scalar_lea.vmem [#allocation11], %s255
        %257 = vst [vmem:[#allocation2] sm:$0xff] 0.0
        %258 = vst [vmem:[#allocation2 + $0x8] sm:$0xff] 0.0
        %259 = vst [vmem:[#allocation2 + $0x10] sm:$0xff] 0.0
        %260 = vst [vmem:[#allocation2 + $0x18] sm:$0xff] 0.0
        %261 = vst [vmem:[#allocation2 + $0x20] sm:$0xff] 0.0
        %262 = vst [vmem:[#allocation2 + $0x28] sm:$0xff] 0.0
        %263 = vst [vmem:[#allocation2 + $0x30] sm:$0xff] 0.0
        %264 = vst [vmem:[#allocation2 + $0x38] sm:$0xff] 0.0
        %v265 = vld [vmem:[%s219] sm:$0xff]
        %v266 = vld [vmem:[%s219 + $0x8] sm:$0xff]
        %v267 = vld [vmem:[%s219 + $0x10] sm:$0xff]
        %v268 = vld [vmem:[%s219 + $0x18] sm:$0xff]
        %269 = vst [vmem:[#allocation2 + $0x10] sm:$0xff] %v265
        %270 = vst [vmem:[#allocation2 + $0x18] sm:$0xff] %v266
        %271 = vst [vmem:[#allocation2 + $0x20] sm:$0xff] %v267
        %272 = vst [vmem:[#allocation2 + $0x28] sm:$0xff] %v268
        %v273 = vld [vmem:[#allocation2] sm:$0x80]
        %v274 = vld [vmem:[#allocation2 + $0x8] sm:$0x80]
        %v275 = vld [vmem:[#allocation2 + $0x10] sm:$0xff]
        %v276 = vld [vmem:[#allocation2 + $0x18] sm:$0xff]
        %v277 = vld [vmem:[#allocation2 + $0x20] sm:$0x7f]
        %v278 = vld [vmem:[#allocation2 + $0x28] sm:$0x7f]
        %v279 = vld [vmem:[#allocation2 + $0x20] sm:$0xff]
        %v280 = vld [vmem:[#allocation2 + $0x28] sm:$0xff]
        %v281 = vld [vmem:[#allocation2 + $0x10] sm:$0xfe]
        %v282 = vld [vmem:[#allocation2 + $0x18] sm:$0xfe]
        %v283 = vld [vmem:[#allocation2 + $0x20] sm:$0xff]
        %v284 = vld [vmem:[#allocation2 + $0x28] sm:$0xff]
        %v285 = vld [vmem:[#allocation2 + $0x30] sm:$0x1]
        %v286 = vld [vmem:[#allocation2 + $0x38] sm:$0x1]
        %vm291 = vcmask 1046528
        %v292 = vrot.slane %v275, 1
        %v293 = vrot.slane %v276, 1
        %v294 = vrot.slane %v279, 1
        %v295 = vsel %vm291, %v292, %v294
        %v296 = vrot.slane %v280, 1
        %v297 = vsel %vm291, %v293, %v296
        %vm310 = vcmask 1045504
        %v311 = vrot.slane %v281, 2
        %v312 = vrot.slane %v282, 2
        %v313 = vrot.slane %v283, 2
        %v314 = vsel %vm310, %v311, %v313
        %v315 = vrot.slane %v284, 2
        %v316 = vsel %vm310, %v312, %v315
        %v317 = vrot.slane %v285, 2
        %v318 = vsel %vm310, %v313, %v317
        %v319 = vrot.slane %v286, 2
        %v320 = vsel %vm310, %v315, %v319
        %v327 = vpack.c.bf16 %v275, %v273
        %v328 = vpack.c.bf16 %v276, %v274
        %v329 = vpack.c.bf16 %v295, %v292
        %v330 = vpack.c.bf16 %v297, %v293
        %v331 = vpack.c.bf16 %v314, %v311
        %v332 = vpack.c.bf16 %v316, %v312
        %v333 = vpack.c.bf16 %v277, %v277
        %v334 = vpack.c.bf16 %v278, %v278
        %v335 = vpack.c.bf16 %v294, %v294
        %v336 = vpack.c.bf16 %v296, %v296
        %v337 = vpack.c.bf16 %v318, %v318
        %v338 = vpack.c.bf16 %v320, %v320
        %v339 = vld [vmem:[#allocation7] sm:$0xff]
        %v340 = vld [vmem:[#allocation7 + $0x8] sm:$0xff]
        %v341 = vld [vmem:[#allocation7 + $0x10] sm:$0xff]
        %v342 = vld [vmem:[#allocation7 + $0x18] sm:$0xff]
        %v343 = vld [vmem:[#allocation7 + $0x20] sm:$0xff]
        %v344 = vld [vmem:[#allocation7 + $0x28] sm:$0xff]
        %v345 = vld [vmem:[#allocation7 + $0x30] sm:$0xff]
        %v346 = vld [vmem:[#allocation7 + $0x38] sm:$0xff]
        %v347 = vld [vmem:[#allocation7 + $0x40] sm:$0xff]
        %v348 = vld [vmem:[#allocation7 + $0x48] sm:$0xff]
        %v349 = vld [vmem:[#allocation7 + $0x50] sm:$0xff]
        %v350 = vld [vmem:[#allocation7 + $0x58] sm:$0xff]
        %v351 = vld [vmem:[#allocation7 + $0x60] sm:$0xff]
        %v352 = vld [vmem:[#allocation7 + $0x68] sm:$0xff]
        %v353 = vld [vmem:[#allocation7 + $0x70] sm:$0xff]
        %v354 = vld [vmem:[#allocation7 + $0x78] sm:$0xff]
        %v355 = vld [vmem:[#allocation7 + $0x80] sm:$0xff]
        %v356 = vld [vmem:[#allocation7 + $0x88] sm:$0xff]
        %v357 = vld [vmem:[#allocation7 + $0x90] sm:$0xff]
        %v358 = vld [vmem:[#allocation7 + $0x98] sm:$0xff]
        %v359 = vld [vmem:[#allocation7 + $0xa0] sm:$0xff]
        %v360 = vld [vmem:[#allocation7 + $0xa8] sm:$0xff]
        %v361 = vld [vmem:[#allocation7 + $0xb0] sm:$0xff]
        %v362 = vld [vmem:[#allocation7 + $0xb8] sm:$0xff]
        %v363 = vld [vmem:[#allocation7 + $0xc0] sm:$0xff]
        %v364 = vld [vmem:[#allocation7 + $0xc8] sm:$0xff]
        %v365 = vld [vmem:[#allocation7 + $0xd0] sm:$0xff]
        %v366 = vld [vmem:[#allocation7 + $0xd8] sm:$0xff]
        %v367 = vld [vmem:[#allocation7 + $0xe0] sm:$0xff]
        %v368 = vld [vmem:[#allocation7 + $0xe8] sm:$0xff]
        %v369 = vld [vmem:[#allocation7 + $0xf0] sm:$0xff]
        %v370 = vld [vmem:[#allocation7 + $0xf8] sm:$0xff]
        %v371 = vld [vmem:[#allocation7 + $0x100] sm:$0xff]
        %v372 = vld [vmem:[#allocation7 + $0x108] sm:$0xff]
        %v373 = vld [vmem:[#allocation7 + $0x110] sm:$0xff]
        %v374 = vld [vmem:[#allocation7 + $0x118] sm:$0xff]
        %v375 = vld [vmem:[#allocation7 + $0x120] sm:$0xff]
        %v376 = vld [vmem:[#allocation7 + $0x128] sm:$0xff]
        %v377 = vld [vmem:[#allocation7 + $0x130] sm:$0xff]
        %v378 = vld [vmem:[#allocation7 + $0x138] sm:$0xff]
        %v379 = vld [vmem:[#allocation7 + $0x140] sm:$0xff]
        %v380 = vld [vmem:[#allocation7 + $0x148] sm:$0xff]
        %v381 = vld [vmem:[#allocation7 + $0x150] sm:$0xff]
        %v382 = vld [vmem:[#allocation7 + $0x158] sm:$0xff]
        %v383 = vld [vmem:[#allocation7 + $0x160] sm:$0xff]
        %v384 = vld [vmem:[#allocation7 + $0x168] sm:$0xff]
        %v385 = vld [vmem:[#allocation7 + $0x170] sm:$0xff]
        %v386 = vld [vmem:[#allocation7 + $0x178] sm:$0xff]
        %v387 = vld [vmem:[#allocation7 + $0x180] sm:$0xff]
        %v388 = vld [vmem:[#allocation7 + $0x188] sm:$0xff]
        %v389 = vld [vmem:[#allocation7 + $0x190] sm:$0xff]
        %v390 = vld [vmem:[#allocation7 + $0x198] sm:$0xff]
        %v391 = vld [vmem:[#allocation7 + $0x1a0] sm:$0xff]
        %v392 = vld [vmem:[#allocation7 + $0x1a8] sm:$0xff]
        %v393 = vld [vmem:[#allocation7 + $0x1b0] sm:$0xff]
        %v394 = vld [vmem:[#allocation7 + $0x1b8] sm:$0xff]
        %v395 = vld [vmem:[#allocation7 + $0x1c0] sm:$0xff]
        %v396 = vld [vmem:[#allocation7 + $0x1c8] sm:$0xff]
        %v397 = vld [vmem:[#allocation7 + $0x1d0] sm:$0xff]
        %v398 = vld [vmem:[#allocation7 + $0x1d8] sm:$0xff]
        %v399 = vld [vmem:[#allocation7 + $0x1e0] sm:$0xff]
        %v400 = vld [vmem:[#allocation7 + $0x1e8] sm:$0xff]
        %v401 = vld [vmem:[#allocation7 + $0x1f0] sm:$0xff]
        %v402 = vld [vmem:[#allocation7 + $0x1f8] sm:$0xff]
        %v403 = vld [vmem:[#allocation7 + $0x200] sm:$0xff]
        %v404 = vld [vmem:[#allocation7 + $0x208] sm:$0xff]
        %v405 = vld [vmem:[#allocation7 + $0x210] sm:$0xff]
        %v406 = vld [vmem:[#allocation7 + $0x218] sm:$0xff]
        %v407 = vld [vmem:[#allocation7 + $0x220] sm:$0xff]
        %v408 = vld [vmem:[#allocation7 + $0x228] sm:$0xff]
        %v409 = vld [vmem:[#allocation7 + $0x230] sm:$0xff]
        %v410 = vld [vmem:[#allocation7 + $0x238] sm:$0xff]
        %v411 = vld [vmem:[#allocation7 + $0x240] sm:$0xff]
        %v412 = vld [vmem:[#allocation7 + $0x248] sm:$0xff]
        %v413 = vld [vmem:[#allocation7 + $0x250] sm:$0xff]
        %v414 = vld [vmem:[#allocation7 + $0x258] sm:$0xff]
        %v415 = vld [vmem:[#allocation7 + $0x260] sm:$0xff]
        %v416 = vld [vmem:[#allocation7 + $0x268] sm:$0xff]
        %v417 = vld [vmem:[#allocation7 + $0x270] sm:$0xff]
        %v418 = vld [vmem:[#allocation7 + $0x278] sm:$0xff]
        %v419 = vld [vmem:[#allocation7 + $0x280] sm:$0xff]
        %v420 = vld [vmem:[#allocation7 + $0x288] sm:$0xff]
        %v421 = vld [vmem:[#allocation7 + $0x290] sm:$0xff]
        %v422 = vld [vmem:[#allocation7 + $0x298] sm:$0xff]
        %v423 = vld [vmem:[#allocation7 + $0x2a0] sm:$0xff]
        %v424 = vld [vmem:[#allocation7 + $0x2a8] sm:$0xff]
        %v425 = vld [vmem:[#allocation7 + $0x2b0] sm:$0xff]
        %v426 = vld [vmem:[#allocation7 + $0x2b8] sm:$0xff]
        %v427 = vld [vmem:[#allocation7 + $0x2c0] sm:$0xff]
        %v428 = vld [vmem:[#allocation7 + $0x2c8] sm:$0xff]
        %v429 = vld [vmem:[#allocation7 + $0x2d0] sm:$0xff]
        %v430 = vld [vmem:[#allocation7 + $0x2d8] sm:$0xff]
        %v431 = vld [vmem:[#allocation7 + $0x2e0] sm:$0xff]
        %v432 = vld [vmem:[#allocation7 + $0x2e8] sm:$0xff]
        %v433 = vld [vmem:[#allocation7 + $0x2f0] sm:$0xff]
        %v434 = vld [vmem:[#allocation7 + $0x2f8] sm:$0xff]
        %v435 = vld [vmem:[#allocation9] sm:$0x3]
        %v437 = vlaneseq
        %v438 = vshrl.u32 %v437, 7
        %v439 = vsub.s32 0, %v438
        %v440 = vrot.slane %v435, %v439
        %v441 = vlaneseq
        %v442 = vshrl.u32 %v441, 7
        %v443 = vsub.s32 1, %v442
        %v444 = vrot.slane %v435, %v443
        %vm447 = vsmask.f32 4352
        %v449 = vshrl.u32 %v327, 16
        %v451 = vrot.slane %v449, 3
        %v452 = vshll.u32 %v327, 16
        %v454 = vrot.slane %v452, 4
        %v455 = vor.u32 %v451, %v454
        %v457 = vshrl.u32 %v333, 16
        %v459 = vrot.slane %v457, 3
        %v460 = vshll.u32 %v333, 16
        %v462 = vrot.slane %v460, 4
        %v463 = vor.u32 %v459, %v462
        %v464 = vsel %vm447, %v455, %v463
        %v466 = vshrl.u32 %v328, 16
        %v468 = vrot.slane %v466, 3
        %v469 = vshll.u32 %v328, 16
        %v471 = vrot.slane %v469, 4
        %v472 = vor.u32 %v468, %v471
        %v474 = vshrl.u32 %v334, 16
        %v476 = vrot.slane %v474, 3
        %v477 = vshll.u32 %v334, 16
        %v479 = vrot.slane %v477, 4
        %v480 = vor.u32 %v476, %v479
        %v481 = vsel %vm447, %v472, %v480
        %v483 = vshrl.u32 %v329, 16
        %v485 = vrot.slane %v483, 3
        %v486 = vshll.u32 %v329, 16
        %v488 = vrot.slane %v486, 4
        %v489 = vor.u32 %v485, %v488
        %v491 = vshrl.u32 %v335, 16
        %v493 = vrot.slane %v491, 3
        %v494 = vshll.u32 %v335, 16
        %v496 = vrot.slane %v494, 4
        %v497 = vor.u32 %v493, %v496
        %v498 = vsel %vm447, %v489, %v497
        %v500 = vshrl.u32 %v330, 16
        %v502 = vrot.slane %v500, 3
        %v503 = vshll.u32 %v330, 16
        %v505 = vrot.slane %v503, 4
        %v506 = vor.u32 %v502, %v505
        %v508 = vshrl.u32 %v336, 16
        %v510 = vrot.slane %v508, 3
        %v511 = vshll.u32 %v336, 16
        %v513 = vrot.slane %v511, 4
        %v514 = vor.u32 %v510, %v513
        %v515 = vsel %vm447, %v506, %v514
        %v517 = vshrl.u32 %v331, 16
        %v519 = vrot.slane %v517, 3
        %v520 = vshll.u32 %v331, 16
        %v522 = vrot.slane %v520, 4
        %v523 = vor.u32 %v519, %v522
        %v525 = vshrl.u32 %v337, 16
        %v527 = vrot.slane %v525, 3
        %v528 = vshll.u32 %v337, 16
        %v530 = vrot.slane %v528, 4
        %v531 = vor.u32 %v527, %v530
        %v532 = vsel %vm447, %v523, %v531
        %v534 = vshrl.u32 %v332, 16
        %v536 = vrot.slane %v534, 3
        %v537 = vshll.u32 %v332, 16
        %v539 = vrot.slane %v537, 4
        %v540 = vor.u32 %v536, %v539
        %v542 = vshrl.u32 %v338, 16
        %v544 = vrot.slane %v542, 3
        %v545 = vshll.u32 %v338, 16
        %v547 = vrot.slane %v545, 4
        %v548 = vor.u32 %v544, %v547
        %v549 = vsel %vm447, %v540, %v548
        %v652 = vunpack.c.l.b16 %v339
        %v653 = vunpack.c.h.b16 %v339
        %v654 = vunpack.c.l.b16 %v340
        %v655 = vunpack.c.h.b16 %v340
        %v656 = vunpack.c.l.b16 %v341
        %v657 = vunpack.c.h.b16 %v341
        %v658 = vunpack.c.l.b16 %v342
        %v659 = vunpack.c.h.b16 %v342
        %v660 = vunpack.c.l.b16 %v343
        %v661 = vunpack.c.h.b16 %v343
        %v662 = vunpack.c.l.b16 %v344
        %v663 = vunpack.c.h.b16 %v344
        %v664 = vunpack.c.l.b16 %v345
        %v665 = vunpack.c.h.b16 %v345
        %v666 = vunpack.c.l.b16 %v346
        %v667 = vunpack.c.h.b16 %v346
        %v668 = vunpack.c.l.b16 %v347
        %v669 = vunpack.c.h.b16 %v347
        %v670 = vunpack.c.l.b16 %v348
        %v671 = vunpack.c.h.b16 %v348
        %v672 = vunpack.c.l.b16 %v349
        %v673 = vunpack.c.h.b16 %v349
        %v674 = vunpack.c.l.b16 %v350
        %v675 = vunpack.c.h.b16 %v350
        %v676 = vunpack.c.l.b16 %v351
        %v677 = vunpack.c.h.b16 %v351
        %v678 = vunpack.c.l.b16 %v352
        %v679 = vunpack.c.h.b16 %v352
        %v680 = vunpack.c.l.b16 %v353
        %v681 = vunpack.c.h.b16 %v353
        %v682 = vunpack.c.l.b16 %v354
        %v683 = vunpack.c.h.b16 %v354
        %v684 = vunpack.c.l.b16 %v355
        %v685 = vunpack.c.h.b16 %v355
        %v686 = vunpack.c.l.b16 %v356
        %v687 = vunpack.c.h.b16 %v356
        %v688 = vunpack.c.l.b16 %v357
        %v689 = vunpack.c.h.b16 %v357
        %v690 = vunpack.c.l.b16 %v358
        %v691 = vunpack.c.h.b16 %v358
        %v692 = vunpack.c.l.b16 %v359
        %v693 = vunpack.c.h.b16 %v359
        %v694 = vunpack.c.l.b16 %v360
        %v695 = vunpack.c.h.b16 %v360
        %v696 = vunpack.c.l.b16 %v361
        %v697 = vunpack.c.h.b16 %v361
        %v698 = vunpack.c.l.b16 %v362
        %v699 = vunpack.c.h.b16 %v362
        %v700 = vunpack.c.l.b16 %v363
        %v701 = vunpack.c.h.b16 %v363
        %v702 = vunpack.c.l.b16 %v364
        %v703 = vunpack.c.h.b16 %v364
        %v704 = vunpack.c.l.b16 %v365
        %v705 = vunpack.c.h.b16 %v365
        %v706 = vunpack.c.l.b16 %v366
        %v707 = vunpack.c.h.b16 %v366
        %v708 = vunpack.c.l.b16 %v367
        %v709 = vunpack.c.h.b16 %v367
        %v710 = vunpack.c.l.b16 %v368
        %v711 = vunpack.c.h.b16 %v368
        %v712 = vunpack.c.l.b16 %v369
        %v713 = vunpack.c.h.b16 %v369
        %v714 = vunpack.c.l.b16 %v370
        %v715 = vunpack.c.h.b16 %v370
        %v716 = vunpack.c.l.b16 %v371
        %v717 = vunpack.c.h.b16 %v371
        %v718 = vunpack.c.l.b16 %v372
        %v719 = vunpack.c.h.b16 %v372
        %v720 = vunpack.c.l.b16 %v373
        %v721 = vunpack.c.h.b16 %v373
        %v722 = vunpack.c.l.b16 %v374
        %v723 = vunpack.c.h.b16 %v374
        %v724 = vunpack.c.l.b16 %v375
        %v725 = vunpack.c.h.b16 %v375
        %v726 = vunpack.c.l.b16 %v376
        %v727 = vunpack.c.h.b16 %v376
        %v728 = vunpack.c.l.b16 %v377
        %v729 = vunpack.c.h.b16 %v377
        %v730 = vunpack.c.l.b16 %v378
        %v731 = vunpack.c.h.b16 %v378
        %v732 = vunpack.c.l.b16 %v379
        %v733 = vunpack.c.h.b16 %v379
        %v734 = vunpack.c.l.b16 %v380
        %v735 = vunpack.c.h.b16 %v380
        %v736 = vunpack.c.l.b16 %v381
        %v737 = vunpack.c.h.b16 %v381
        %v738 = vunpack.c.l.b16 %v382
        %v739 = vunpack.c.h.b16 %v382
        %v740 = vunpack.c.l.b16 %v383
        %v741 = vunpack.c.h.b16 %v383
        %v742 = vunpack.c.l.b16 %v384
        %v743 = vunpack.c.h.b16 %v384
        %v744 = vunpack.c.l.b16 %v385
        %v745 = vunpack.c.h.b16 %v385
        %v746 = vunpack.c.l.b16 %v386
        %v747 = vunpack.c.h.b16 %v386
        %v748 = vunpack.c.l.b16 %v387
        %v749 = vunpack.c.h.b16 %v387
        %v750 = vunpack.c.l.b16 %v388
        %v751 = vunpack.c.h.b16 %v388
        %v752 = vunpack.c.l.b16 %v389
        %v753 = vunpack.c.h.b16 %v389
        %v754 = vunpack.c.l.b16 %v390
        %v755 = vunpack.c.h.b16 %v390
        %v756 = vunpack.c.l.b16 %v391
        %v757 = vunpack.c.h.b16 %v391
        %v758 = vunpack.c.l.b16 %v392
        %v759 = vunpack.c.h.b16 %v392
        %v760 = vunpack.c.l.b16 %v393
        %v761 = vunpack.c.h.b16 %v393
        %v762 = vunpack.c.l.b16 %v394
        %v763 = vunpack.c.h.b16 %v394
        %v764 = vunpack.c.l.b16 %v395
        %v765 = vunpack.c.h.b16 %v395
        %v766 = vunpack.c.l.b16 %v396
        %v767 = vunpack.c.h.b16 %v396
        %v768 = vunpack.c.l.b16 %v397
        %v769 = vunpack.c.h.b16 %v397
        %v770 = vunpack.c.l.b16 %v398
        %v771 = vunpack.c.h.b16 %v398
        %v772 = vunpack.c.l.b16 %v399
        %v773 = vunpack.c.h.b16 %v399
        %v774 = vunpack.c.l.b16 %v400
        %v775 = vunpack.c.h.b16 %v400
        %v776 = vunpack.c.l.b16 %v401
        %v777 = vunpack.c.h.b16 %v401
        %v778 = vunpack.c.l.b16 %v402
        %v779 = vunpack.c.h.b16 %v402
        %v780 = vunpack.c.l.b16 %v403
        %v781 = vunpack.c.h.b16 %v403
        %v782 = vunpack.c.l.b16 %v404
        %v783 = vunpack.c.h.b16 %v404
        %v784 = vunpack.c.l.b16 %v405
        %v785 = vunpack.c.h.b16 %v405
        %v786 = vunpack.c.l.b16 %v406
        %v787 = vunpack.c.h.b16 %v406
        %v788 = vunpack.c.l.b16 %v407
        %v789 = vunpack.c.h.b16 %v407
        %v790 = vunpack.c.l.b16 %v408
        %v791 = vunpack.c.h.b16 %v408
        %v792 = vunpack.c.l.b16 %v409
        %v793 = vunpack.c.h.b16 %v409
        %v794 = vunpack.c.l.b16 %v410
        %v795 = vunpack.c.h.b16 %v410
        %v796 = vunpack.c.l.b16 %v411
        %v797 = vunpack.c.h.b16 %v411
        %v798 = vunpack.c.l.b16 %v412
        %v799 = vunpack.c.h.b16 %v412
        %v800 = vunpack.c.l.b16 %v413
        %v801 = vunpack.c.h.b16 %v413
        %v802 = vunpack.c.l.b16 %v414
        %v803 = vunpack.c.h.b16 %v414
        %v804 = vunpack.c.l.b16 %v415
        %v805 = vunpack.c.h.b16 %v415
        %v806 = vunpack.c.l.b16 %v416
        %v807 = vunpack.c.h.b16 %v416
        %v808 = vunpack.c.l.b16 %v417
        %v809 = vunpack.c.h.b16 %v417
        %v810 = vunpack.c.l.b16 %v418
        %v811 = vunpack.c.h.b16 %v418
        %v812 = vunpack.c.l.b16 %v419
        %v813 = vunpack.c.h.b16 %v419
        %v814 = vunpack.c.l.b16 %v420
        %v815 = vunpack.c.h.b16 %v420
        %v816 = vunpack.c.l.b16 %v421
        %v817 = vunpack.c.h.b16 %v421
        %v818 = vunpack.c.l.b16 %v422
        %v819 = vunpack.c.h.b16 %v422
        %v820 = vunpack.c.l.b16 %v423
        %v821 = vunpack.c.h.b16 %v423
        %v822 = vunpack.c.l.b16 %v424
        %v823 = vunpack.c.h.b16 %v424
        %v824 = vunpack.c.l.b16 %v425
        %v825 = vunpack.c.h.b16 %v425
        %v826 = vunpack.c.l.b16 %v426
        %v827 = vunpack.c.h.b16 %v426
        %v828 = vunpack.c.l.b16 %v427
        %v829 = vunpack.c.h.b16 %v427
        %v830 = vunpack.c.l.b16 %v428
        %v831 = vunpack.c.h.b16 %v428
        %v832 = vunpack.c.l.b16 %v429
        %v833 = vunpack.c.h.b16 %v429
        %v834 = vunpack.c.l.b16 %v430
        %v835 = vunpack.c.h.b16 %v430
        %v836 = vunpack.c.l.b16 %v431
        %v837 = vunpack.c.h.b16 %v431
        %v838 = vunpack.c.l.b16 %v432
        %v839 = vunpack.c.h.b16 %v432
        %v840 = vunpack.c.l.b16 %v433
        %v841 = vunpack.c.h.b16 %v433
        %v842 = vunpack.c.l.b16 %v434
        %v843 = vunpack.c.h.b16 %v434
        %v844 = vpack.c.b16 %v654, %v652
        %v845 = vpack.c.b16 %v655, %v653
        %v846 = vpack.c.b16 %v658, %v656
        %v847 = vpack.c.b16 %v659, %v657
        %v848 = vpack.c.b16 %v662, %v660
        %v849 = vpack.c.b16 %v663, %v661
        %v850 = vpack.c.b16 %v666, %v664
        %v851 = vpack.c.b16 %v667, %v665
        %v852 = vpack.c.b16 %v670, %v668
        %v853 = vpack.c.b16 %v671, %v669
        %v854 = vpack.c.b16 %v674, %v672
        %v855 = vpack.c.b16 %v675, %v673
        %v856 = vpack.c.b16 %v678, %v676
        %v857 = vpack.c.b16 %v679, %v677
        %v858 = vpack.c.b16 %v682, %v680
        %v859 = vpack.c.b16 %v683, %v681
        %v860 = vpack.c.b16 %v686, %v684
        %v861 = vpack.c.b16 %v687, %v685
        %v862 = vpack.c.b16 %v690, %v688
        %v863 = vpack.c.b16 %v691, %v689
        %v864 = vpack.c.b16 %v694, %v692
        %v865 = vpack.c.b16 %v695, %v693
        %v866 = vpack.c.b16 %v698, %v696
        %v867 = vpack.c.b16 %v699, %v697
        %v868 = vpack.c.b16 %v702, %v700
        %v869 = vpack.c.b16 %v703, %v701
        %v870 = vpack.c.b16 %v706, %v704
        %v871 = vpack.c.b16 %v707, %v705
        %v872 = vpack.c.b16 %v710, %v708
        %v873 = vpack.c.b16 %v711, %v709
        %v874 = vpack.c.b16 %v714, %v712
        %v875 = vpack.c.b16 %v715, %v713
        %v876 = vpack.c.b16 %v718, %v716
        %v877 = vpack.c.b16 %v719, %v717
        %v878 = vpack.c.b16 %v722, %v720
        %v879 = vpack.c.b16 %v723, %v721
        %v880 = vpack.c.b16 %v726, %v724
        %v881 = vpack.c.b16 %v727, %v725
        %v882 = vpack.c.b16 %v730, %v728
        %v883 = vpack.c.b16 %v731, %v729
        %v884 = vpack.c.b16 %v734, %v732
        %v885 = vpack.c.b16 %v735, %v733
        %v886 = vpack.c.b16 %v738, %v736
        %v887 = vpack.c.b16 %v739, %v737
        %v888 = vpack.c.b16 %v742, %v740
        %v889 = vpack.c.b16 %v743, %v741
        %v890 = vpack.c.b16 %v746, %v744
        %v891 = vpack.c.b16 %v747, %v745
        %v892 = vpack.c.b16 %v750, %v748
        %v893 = vpack.c.b16 %v751, %v749
        %v894 = vpack.c.b16 %v754, %v752
        %v895 = vpack.c.b16 %v755, %v753
        %v896 = vpack.c.b16 %v758, %v756
        %v897 = vpack.c.b16 %v759, %v757
        %v898 = vpack.c.b16 %v762, %v760
        %v899 = vpack.c.b16 %v763, %v761
        %v900 = vpack.c.b16 %v766, %v764
        %v901 = vpack.c.b16 %v767, %v765
        %v902 = vpack.c.b16 %v770, %v768
        %v903 = vpack.c.b16 %v771, %v769
        %v904 = vpack.c.b16 %v774, %v772
        %v905 = vpack.c.b16 %v775, %v773
        %v906 = vpack.c.b16 %v778, %v776
        %v907 = vpack.c.b16 %v779, %v777
        %v908 = vpack.c.b16 %v782, %v780
        %v909 = vpack.c.b16 %v783, %v781
        %v910 = vpack.c.b16 %v786, %v784
        %v911 = vpack.c.b16 %v787, %v785
        %v912 = vpack.c.b16 %v790, %v788
        %v913 = vpack.c.b16 %v791, %v789
        %v914 = vpack.c.b16 %v794, %v792
        %v915 = vpack.c.b16 %v795, %v793
        %v916 = vpack.c.b16 %v798, %v796
        %v917 = vpack.c.b16 %v799, %v797
        %v918 = vpack.c.b16 %v802, %v800
        %v919 = vpack.c.b16 %v803, %v801
        %v920 = vpack.c.b16 %v806, %v804
        %v921 = vpack.c.b16 %v807, %v805
        %v922 = vpack.c.b16 %v810, %v808
        %v923 = vpack.c.b16 %v811, %v809
        %v924 = vpack.c.b16 %v814, %v812
        %v925 = vpack.c.b16 %v815, %v813
        %v926 = vpack.c.b16 %v818, %v816
        %v927 = vpack.c.b16 %v819, %v817
        %v928 = vpack.c.b16 %v822, %v820
        %v929 = vpack.c.b16 %v823, %v821
        %v930 = vpack.c.b16 %v826, %v824
        %v931 = vpack.c.b16 %v827, %v825
        %v932 = vpack.c.b16 %v830, %v828
        %v933 = vpack.c.b16 %v831, %v829
        %v934 = vpack.c.b16 %v834, %v832
        %v935 = vpack.c.b16 %v835, %v833
        %v936 = vpack.c.b16 %v838, %v836
        %v937 = vpack.c.b16 %v839, %v837
        %v938 = vpack.c.b16 %v842, %v840
        %v939 = vpack.c.b16 %v843, %v841
        %1036 = vmatprep.subr.bf16.mxu0 %v859
        %1037 = vmatpush1.bf16.msra.mxu0 %v858
        %1038 = vmatprep.subr.bf16.mxu0 %v857
        %1039 = vmatpush1.bf16.msra.mxu0 %v856
        %1040 = vmatprep.subr.bf16.mxu0 %v855
        %1041 = vmatpush1.bf16.msra.mxu0 %v854
        %1042 = vmatprep.subr.bf16.mxu0 %v853
        %1043 = vmatpush1.bf16.msra.mxu0 %v852
        %1044 = vmatprep.subr.bf16.mxu0 %v851
        %1045 = vmatpush1.bf16.msra.mxu0 %v850
        %1046 = vmatprep.subr.bf16.mxu0 %v849
        %1047 = vmatpush1.bf16.msra.mxu0 %v848
        %1048 = vmatprep.subr.bf16.mxu0 %v847
        %1049 = vmatpush1.bf16.msra.mxu0 %v846
        %1050 = vmatprep.subr.bf16.mxu0 %v845
        %1051 = vmatpush1.bf16.msra.mxu0 %v844
        %1052 = vmatprep.subr.bf16.mxu0 %v875
        %1053 = vmatpush2.bf16.msra.mxu0 %v874
        %1054 = vmatprep.subr.bf16.mxu0 %v873
        %1055 = vmatpush2.bf16.msra.mxu0 %v872
        %1056 = vmatprep.subr.bf16.mxu0 %v871
        %1057 = vmatpush2.bf16.msra.mxu0 %v870
        %1058 = vmatprep.subr.bf16.mxu0 %v869
        %1059 = vmatpush2.bf16.msra.mxu0 %v868
        %1060 = vmatprep.subr.bf16.mxu0 %v867
        %1061 = vmatpush2.bf16.msra.mxu0 %v866
        %1062 = vmatprep.subr.bf16.mxu0 %v865
        %1063 = vmatpush2.bf16.msra.mxu0 %v864
        %1064 = vmatprep.subr.bf16.mxu0 %v863
        %1065 = vmatpush2.bf16.msra.mxu0 %v862
        %1066 = vmatprep.subr.bf16.mxu0 %v861
        %1067 = vmatpush2.bf16.msra.mxu0 %v860
        %1068 = vmatprep.mubr.bf16.mxu0 %v481
        %1069 = vmatmul.mubr.bf16.gmra.mxu0 %v464
        %v1070 = vpop.f32.mrf.mxu0
        %v1071 = vadd.f32 %v440, %v1070
        %v1072 = vpop.f32.mrf.mxu0
        %v1073 = vadd.f32 %v444, %v1072
        %v1074 = vpop.f32.mrf.mxu0
        %v1075 = vadd.f32 %v440, %v1074
        %v1076 = vpop.f32.mrf.mxu0
        %v1077 = vadd.f32 %v444, %v1076
        %1078 = vdwg.mxu0
        %1079 = vmatprep.subr.bf16.mxu0 %v891
        %1080 = vmatpush1.bf16.msra.mxu0 %v890
        %1081 = vmatprep.subr.bf16.mxu0 %v889
        %1082 = vmatpush1.bf16.msra.mxu0 %v888
        %1083 = vmatprep.subr.bf16.mxu0 %v887
        %1084 = vmatpush1.bf16.msra.mxu0 %v886
        %1085 = vmatprep.subr.bf16.mxu0 %v885
        %1086 = vmatpush1.bf16.msra.mxu0 %v884
        %1087 = vmatprep.subr.bf16.mxu0 %v883
        %1088 = vmatpush1.bf16.msra.mxu0 %v882
        %1089 = vmatprep.subr.bf16.mxu0 %v881
        %1090 = vmatpush1.bf16.msra.mxu0 %v880
        %1091 = vmatprep.subr.bf16.mxu0 %v879
        %1092 = vmatpush1.bf16.msra.mxu0 %v878
        %1093 = vmatprep.subr.bf16.mxu0 %v877
        %1094 = vmatpush1.bf16.msra.mxu0 %v876
        %1095 = vmatprep.subr.bf16.mxu0 %v907
        %1096 = vmatpush2.bf16.msra.mxu0 %v906
        %1097 = vmatprep.subr.bf16.mxu0 %v905
        %1098 = vmatpush2.bf16.msra.mxu0 %v904
        %1099 = vmatprep.subr.bf16.mxu0 %v903
        %1100 = vmatpush2.bf16.msra.mxu0 %v902
        %1101 = vmatprep.subr.bf16.mxu0 %v901
        %1102 = vmatpush2.bf16.msra.mxu0 %v900
        %1103 = vmatprep.subr.bf16.mxu0 %v899
        %1104 = vmatpush2.bf16.msra.mxu0 %v898
        %1105 = vmatprep.subr.bf16.mxu0 %v897
        %1106 = vmatpush2.bf16.msra.mxu0 %v896
        %1107 = vmatprep.subr.bf16.mxu0 %v895
        %1108 = vmatpush2.bf16.msra.mxu0 %v894
        %1109 = vmatprep.subr.bf16.mxu0 %v893
        %1110 = vmatpush2.bf16.msra.mxu0 %v892
        %1111 = vmatprep.mubr.bf16.mxu0 %v515
        %1112 = vmatmul.mubr.bf16.gmra.mxu0 %v498
        %v1113 = vpop.f32.mrf.mxu0
        %v1114 = vadd.f32 %v1071, %v1113
        %v1115 = vpop.f32.mrf.mxu0
        %v1116 = vadd.f32 %v1073, %v1115
        %v1117 = vpop.f32.mrf.mxu0
        %v1118 = vadd.f32 %v1075, %v1117
        %v1119 = vpop.f32.mrf.mxu0
        %v1120 = vadd.f32 %v1077, %v1119
        %1121 = vdwg.mxu0
        %1122 = vmatprep.subr.bf16.mxu0 %v923
        %1123 = vmatpush1.bf16.msra.mxu0 %v922
        %1124 = vmatprep.subr.bf16.mxu0 %v921
        %1125 = vmatpush1.bf16.msra.mxu0 %v920
        %1126 = vmatprep.subr.bf16.mxu0 %v919
        %1127 = vmatpush1.bf16.msra.mxu0 %v918
        %1128 = vmatprep.subr.bf16.mxu0 %v917
        %1129 = vmatpush1.bf16.msra.mxu0 %v916
        %1130 = vmatprep.subr.bf16.mxu0 %v915
        %1131 = vmatpush1.bf16.msra.mxu0 %v914
        %1132 = vmatprep.subr.bf16.mxu0 %v913
        %1133 = vmatpush1.bf16.msra.mxu0 %v912
        %1134 = vmatprep.subr.bf16.mxu0 %v911
        %1135 = vmatpush1.bf16.msra.mxu0 %v910
        %1136 = vmatprep.subr.bf16.mxu0 %v909
        %1137 = vmatpush1.bf16.msra.mxu0 %v908
        %1138 = vmatprep.subr.bf16.mxu0 %v939
        %1139 = vmatpush2.bf16.msra.mxu0 %v938
        %1140 = vmatprep.subr.bf16.mxu0 %v937
        %1141 = vmatpush2.bf16.msra.mxu0 %v936
        %1142 = vmatprep.subr.bf16.mxu0 %v935
        %1143 = vmatpush2.bf16.msra.mxu0 %v934
        %1144 = vmatprep.subr.bf16.mxu0 %v933
        %1145 = vmatpush2.bf16.msra.mxu0 %v932
        %1146 = vmatprep.subr.bf16.mxu0 %v931
        %1147 = vmatpush2.bf16.msra.mxu0 %v930
        %1148 = vmatprep.subr.bf16.mxu0 %v929
        %1149 = vmatpush2.bf16.msra.mxu0 %v928
        %1150 = vmatprep.subr.bf16.mxu0 %v927
        %1151 = vmatpush2.bf16.msra.mxu0 %v926
        %1152 = vmatprep.subr.bf16.mxu0 %v925
        %1153 = vmatpush2.bf16.msra.mxu0 %v924
        %1154 = vmatprep.mubr.bf16.mxu0 %v549
        %1155 = vmatmul.mubr.bf16.gmra.mxu0 %v532
        %v1156 = vpop.f32.mrf.mxu0
        %v1157 = vadd.f32 %v1114, %v1156
        %v1158 = vpop.f32.mrf.mxu0
        %v1159 = vadd.f32 %v1116, %v1158
        %v1160 = vpop.f32.mrf.mxu0
        %v1161 = vadd.f32 %v1118, %v1160
        %v1162 = vpop.f32.mrf.mxu0
        %v1163 = vadd.f32 %v1120, %v1162
        %1164 = vdwg.mxu0
        %s1165 = sld [smem:[#allocation10]]
        %vm1166 = vcmp.ge.f32.partialorder %v1157, 0.0
        %vm1167 = vcmp.ge.f32.partialorder %v1159, 0.0
        %vm1168 = vcmp.ge.f32.partialorder %v1161, 0.0
        %vm1169 = vcmp.ge.f32.partialorder %v1163, 0.0
        %v1170 = vstv %s1165
        %v1171 = vmul.f32 %v1170, %v1157
        %v1172 = vmul.f32 %v1170, %v1159
        %v1173 = vmul.f32 %v1170, %v1161
        %v1174 = vmul.f32 %v1170, %v1163
        %v1175 = vsel %vm1166, %v1157, %v1171
        %v1176 = vsel %vm1167, %v1159, %v1172
        %v1177 = vsel %vm1168, %v1161, %v1173
        %v1178 = vsel %vm1169, %v1163, %v1174
        %1179 = vst [vmem:[#allocation2 + $0x10] sm:$0xff] %v1175
        %1180 = vst [vmem:[#allocation2 + $0x18] sm:$0xff] %v1176
        %1181 = vst [vmem:[#allocation2 + $0x20] sm:$0xff] %v1177
        %1182 = vst [vmem:[#allocation2 + $0x28] sm:$0xff] %v1178
        %v1183 = vld [vmem:[#allocation2] sm:$0x80]
        %v1184 = vld [vmem:[#allocation2 + $0x8] sm:$0x80]
        %v1185 = vld [vmem:[#allocation2 + $0x10] sm:$0xff]
        %v1186 = vld [vmem:[#allocation2 + $0x18] sm:$0xff]
        %v1187 = vld [vmem:[#allocation2 + $0x20] sm:$0x7f]
        %v1188 = vld [vmem:[#allocation2 + $0x28] sm:$0x7f]
        %v1189 = vld [vmem:[#allocation2 + $0x20] sm:$0xff]
        %v1190 = vld [vmem:[#allocation2 + $0x28] sm:$0xff]
        %v1191 = vld [vmem:[#allocation2 + $0x10] sm:$0xfe]
        %v1192 = vld [vmem:[#allocation2 + $0x18] sm:$0xfe]
        %v1193 = vld [vmem:[#allocation2 + $0x20] sm:$0xff]
        %v1194 = vld [vmem:[#allocation2 + $0x28] sm:$0xff]
        %v1195 = vld [vmem:[#allocation2 + $0x30] sm:$0x1]
        %v1196 = vld [vmem:[#allocation2 + $0x38] sm:$0x1]
        %v1201 = vrot.slane %v1185, 1
        %v1202 = vrot.slane %v1186, 1
        %v1203 = vrot.slane %v1189, 1
        %v1204 = vsel %vm291, %v1201, %v1203
        %v1205 = vrot.slane %v1190, 1
        %v1206 = vsel %vm291, %v1202, %v1205
        %v1219 = vrot.slane %v1191, 2
        %v1220 = vrot.slane %v1192, 2
        %v1221 = vrot.slane %v1193, 2
        %v1222 = vsel %vm310, %v1219, %v1221
        %v1223 = vrot.slane %v1194, 2
        %v1224 = vsel %vm310, %v1220, %v1223
        %v1225 = vrot.slane %v1195, 2
        %v1226 = vsel %vm310, %v1221, %v1225
        %v1227 = vrot.slane %v1196, 2
        %v1228 = vsel %vm310, %v1223, %v1227
        %v1235 = vpack.c.bf16 %v1185, %v1183
        %v1236 = vpack.c.bf16 %v1186, %v1184
        %v1237 = vpack.c.bf16 %v1204, %v1201
        %v1238 = vpack.c.bf16 %v1206, %v1202
        %v1239 = vpack.c.bf16 %v1222, %v1219
        %v1240 = vpack.c.bf16 %v1224, %v1220
        %v1241 = vpack.c.bf16 %v1187, %v1187
        %v1242 = vpack.c.bf16 %v1188, %v1188
        %v1243 = vpack.c.bf16 %v1203, %v1203
        %v1244 = vpack.c.bf16 %v1205, %v1205
        %v1245 = vpack.c.bf16 %v1226, %v1226
        %v1246 = vpack.c.bf16 %v1228, %v1228
        %s1247 = scalar_lea.vmem [#allocation7], 768
        %v1248 = vld [vmem:[%s1247] sm:$0xff]
        %v1249 = vld [vmem:[%s1247 + $0x8] sm:$0xff]
        %v1250 = vld [vmem:[%s1247 + $0x10] sm:$0xff]
        %v1251 = vld [vmem:[%s1247 + $0x18] sm:$0xff]
        %v1252 = vld [vmem:[%s1247 + $0x20] sm:$0xff]
        %v1253 = vld [vmem:[%s1247 + $0x28] sm:$0xff]
        %v1254 = vld [vmem:[%s1247 + $0x30] sm:$0xff]
        %v1255 = vld [vmem:[%s1247 + $0x38] sm:$0xff]
        %v1256 = vld [vmem:[%s1247 + $0x40] sm:$0xff]
        %v1257 = vld [vmem:[%s1247 + $0x48] sm:$0xff]
        %v1258 = vld [vmem:[%s1247 + $0x50] sm:$0xff]
        %v1259 = vld [vmem:[%s1247 + $0x58] sm:$0xff]
        %v1260 = vld [vmem:[%s1247 + $0x60] sm:$0xff]
        %v1261 = vld [vmem:[%s1247 + $0x68] sm:$0xff]
        %v1262 = vld [vmem:[%s1247 + $0x70] sm:$0xff]
        %v1263 = vld [vmem:[%s1247 + $0x78] sm:$0xff]
        %v1264 = vld [vmem:[%s1247 + $0x80] sm:$0xff]
        %v1265 = vld [vmem:[%s1247 + $0x88] sm:$0xff]
        %v1266 = vld [vmem:[%s1247 + $0x90] sm:$0xff]
        %v1267 = vld [vmem:[%s1247 + $0x98] sm:$0xff]
        %v1268 = vld [vmem:[%s1247 + $0xa0] sm:$0xff]
        %v1269 = vld [vmem:[%s1247 + $0xa8] sm:$0xff]
        %v1270 = vld [vmem:[%s1247 + $0xb0] sm:$0xff]
        %v1271 = vld [vmem:[%s1247 + $0xb8] sm:$0xff]
        %v1272 = vld [vmem:[%s1247 + $0xc0] sm:$0xff]
        %v1273 = vld [vmem:[%s1247 + $0xc8] sm:$0xff]
        %v1274 = vld [vmem:[%s1247 + $0xd0] sm:$0xff]
        %v1275 = vld [vmem:[%s1247 + $0xd8] sm:$0xff]
        %v1276 = vld [vmem:[%s1247 + $0xe0] sm:$0xff]
        %v1277 = vld [vmem:[%s1247 + $0xe8] sm:$0xff]
        %v1278 = vld [vmem:[%s1247 + $0xf0] sm:$0xff]
        %v1279 = vld [vmem:[%s1247 + $0xf8] sm:$0xff]
        %v1280 = vld [vmem:[%s1247 + $0x100] sm:$0xff]
        %v1281 = vld [vmem:[%s1247 + $0x108] sm:$0xff]
        %v1282 = vld [vmem:[%s1247 + $0x110] sm:$0xff]
        %v1283 = vld [vmem:[%s1247 + $0x118] sm:$0xff]
        %v1284 = vld [vmem:[%s1247 + $0x120] sm:$0xff]
        %v1285 = vld [vmem:[%s1247 + $0x128] sm:$0xff]
        %v1286 = vld [vmem:[%s1247 + $0x130] sm:$0xff]
        %v1287 = vld [vmem:[%s1247 + $0x138] sm:$0xff]
        %v1288 = vld [vmem:[%s1247 + $0x140] sm:$0xff]
        %v1289 = vld [vmem:[%s1247 + $0x148] sm:$0xff]
        %v1290 = vld [vmem:[%s1247 + $0x150] sm:$0xff]
        %v1291 = vld [vmem:[%s1247 + $0x158] sm:$0xff]
        %v1292 = vld [vmem:[%s1247 + $0x160] sm:$0xff]
        %v1293 = vld [vmem:[%s1247 + $0x168] sm:$0xff]
        %v1294 = vld [vmem:[%s1247 + $0x170] sm:$0xff]
        %v1295 = vld [vmem:[%s1247 + $0x178] sm:$0xff]
        %v1296 = vld [vmem:[%s1247 + $0x180] sm:$0xff]
        %v1297 = vld [vmem:[%s1247 + $0x188] sm:$0xff]
        %v1298 = vld [vmem:[%s1247 + $0x190] sm:$0xff]
        %v1299 = vld [vmem:[%s1247 + $0x198] sm:$0xff]
        %v1300 = vld [vmem:[%s1247 + $0x1a0] sm:$0xff]
        %v1301 = vld [vmem:[%s1247 + $0x1a8] sm:$0xff]
        %v1302 = vld [vmem:[%s1247 + $0x1b0] sm:$0xff]
        %v1303 = vld [vmem:[%s1247 + $0x1b8] sm:$0xff]
        %v1304 = vld [vmem:[%s1247 + $0x1c0] sm:$0xff]
        %v1305 = vld [vmem:[%s1247 + $0x1c8] sm:$0xff]
        %v1306 = vld [vmem:[%s1247 + $0x1d0] sm:$0xff]
        %v1307 = vld [vmem:[%s1247 + $0x1d8] sm:$0xff]
        %v1308 = vld [vmem:[%s1247 + $0x1e0] sm:$0xff]
        %v1309 = vld [vmem:[%s1247 + $0x1e8] sm:$0xff]
        %v1310 = vld [vmem:[%s1247 + $0x1f0] sm:$0xff]
        %v1311 = vld [vmem:[%s1247 + $0x1f8] sm:$0xff]
        %v1312 = vld [vmem:[%s1247 + $0x200] sm:$0xff]
        %v1313 = vld [vmem:[%s1247 + $0x208] sm:$0xff]
        %v1314 = vld [vmem:[%s1247 + $0x210] sm:$0xff]
        %v1315 = vld [vmem:[%s1247 + $0x218] sm:$0xff]
        %v1316 = vld [vmem:[%s1247 + $0x220] sm:$0xff]
        %v1317 = vld [vmem:[%s1247 + $0x228] sm:$0xff]
        %v1318 = vld [vmem:[%s1247 + $0x230] sm:$0xff]
        %v1319 = vld [vmem:[%s1247 + $0x238] sm:$0xff]
        %v1320 = vld [vmem:[%s1247 + $0x240] sm:$0xff]
        %v1321 = vld [vmem:[%s1247 + $0x248] sm:$0xff]
        %v1322 = vld [vmem:[%s1247 + $0x250] sm:$0xff]
        %v1323 = vld [vmem:[%s1247 + $0x258] sm:$0xff]
        %v1324 = vld [vmem:[%s1247 + $0x260] sm:$0xff]
        %v1325 = vld [vmem:[%s1247 + $0x268] sm:$0xff]
        %v1326 = vld [vmem:[%s1247 + $0x270] sm:$0xff]
        %v1327 = vld [vmem:[%s1247 + $0x278] sm:$0xff]
        %v1328 = vld [vmem:[%s1247 + $0x280] sm:$0xff]
        %v1329 = vld [vmem:[%s1247 + $0x288] sm:$0xff]
        %v1330 = vld [vmem:[%s1247 + $0x290] sm:$0xff]
        %v1331 = vld [vmem:[%s1247 + $0x298] sm:$0xff]
        %v1332 = vld [vmem:[%s1247 + $0x2a0] sm:$0xff]
        %v1333 = vld [vmem:[%s1247 + $0x2a8] sm:$0xff]
        %v1334 = vld [vmem:[%s1247 + $0x2b0] sm:$0xff]
        %v1335 = vld [vmem:[%s1247 + $0x2b8] sm:$0xff]
        %v1336 = vld [vmem:[%s1247 + $0x2c0] sm:$0xff]
        %v1337 = vld [vmem:[%s1247 + $0x2c8] sm:$0xff]
        %v1338 = vld [vmem:[%s1247 + $0x2d0] sm:$0xff]
        %v1339 = vld [vmem:[%s1247 + $0x2d8] sm:$0xff]
        %v1340 = vld [vmem:[%s1247 + $0x2e0] sm:$0xff]
        %v1341 = vld [vmem:[%s1247 + $0x2e8] sm:$0xff]
        %v1342 = vld [vmem:[%s1247 + $0x2f0] sm:$0xff]
        %v1343 = vld [vmem:[%s1247 + $0x2f8] sm:$0xff]
        %s1344 = scalar_lea.vmem [#allocation9], 2
        %v1345 = vld [vmem:[%s1344] sm:$0x3]
        %v1347 = vlaneseq
        %v1348 = vshrl.u32 %v1347, 7
        %v1349 = vsub.s32 0, %v1348
        %v1350 = vrot.slane %v1345, %v1349
        %v1351 = vlaneseq
        %v1352 = vshrl.u32 %v1351, 7
        %v1353 = vsub.s32 1, %v1352
        %v1354 = vrot.slane %v1345, %v1353
        %v1358 = vshrl.u32 %v1235, 16
        %v1360 = vrot.slane %v1358, 3
        %v1361 = vshll.u32 %v1235, 16
        %v1363 = vrot.slane %v1361, 4
        %v1364 = vor.u32 %v1360, %v1363
        %v1366 = vshrl.u32 %v1241, 16
        %v1368 = vrot.slane %v1366, 3
        %v1369 = vshll.u32 %v1241, 16
        %v1371 = vrot.slane %v1369, 4
        %v1372 = vor.u32 %v1368, %v1371
        %v1373 = vsel %vm447, %v1364, %v1372
        %v1375 = vshrl.u32 %v1236, 16
        %v1377 = vrot.slane %v1375, 3
        %v1378 = vshll.u32 %v1236, 16
        %v1380 = vrot.slane %v1378, 4
        %v1381 = vor.u32 %v1377, %v1380
        %v1383 = vshrl.u32 %v1242, 16
        %v1385 = vrot.slane %v1383, 3
        %v1386 = vshll.u32 %v1242, 16
        %v1388 = vrot.slane %v1386, 4
        %v1389 = vor.u32 %v1385, %v1388
        %v1390 = vsel %vm447, %v1381, %v1389
        %v1392 = vshrl.u32 %v1237, 16
        %v1394 = vrot.slane %v1392, 3
        %v1395 = vshll.u32 %v1237, 16
        %v1397 = vrot.slane %v1395, 4
        %v1398 = vor.u32 %v1394, %v1397
        %v1400 = vshrl.u32 %v1243, 16
        %v1402 = vrot.slane %v1400, 3
        %v1403 = vshll.u32 %v1243, 16
        %v1405 = vrot.slane %v1403, 4
        %v1406 = vor.u32 %v1402, %v1405
        %v1407 = vsel %vm447, %v1398, %v1406
        %v1409 = vshrl.u32 %v1238, 16
        %v1411 = vrot.slane %v1409, 3
        %v1412 = vshll.u32 %v1238, 16
        %v1414 = vrot.slane %v1412, 4
        %v1415 = vor.u32 %v1411, %v1414
        %v1417 = vshrl.u32 %v1244, 16
        %v1419 = vrot.slane %v1417, 3
        %v1420 = vshll.u32 %v1244, 16
        %v1422 = vrot.slane %v1420, 4
        %v1423 = vor.u32 %v1419, %v1422
        %v1424 = vsel %vm447, %v1415, %v1423
        %v1426 = vshrl.u32 %v1239, 16
        %v1428 = vrot.slane %v1426, 3
        %v1429 = vshll.u32 %v1239, 16
        %v1431 = vrot.slane %v1429, 4
        %v1432 = vor.u32 %v1428, %v1431
        %v1434 = vshrl.u32 %v1245, 16
        %v1436 = vrot.slane %v1434, 3
        %v1437 = vshll.u32 %v1245, 16
        %v1439 = vrot.slane %v1437, 4
        %v1440 = vor.u32 %v1436, %v1439
        %v1441 = vsel %vm447, %v1432, %v1440
        %v1443 = vshrl.u32 %v1240, 16
        %v1445 = vrot.slane %v1443, 3
        %v1446 = vshll.u32 %v1240, 16
        %v1448 = vrot.slane %v1446, 4
        %v1449 = vor.u32 %v1445, %v1448
        %v1451 = vshrl.u32 %v1246, 16
        %v1453 = vrot.slane %v1451, 3
        %v1454 = vshll.u32 %v1246, 16
        %v1456 = vrot.slane %v1454, 4
        %v1457 = vor.u32 %v1453, %v1456
        %v1458 = vsel %vm447, %v1449, %v1457
        %v1561 = vunpack.c.l.b16 %v1248
        %v1562 = vunpack.c.h.b16 %v1248
        %v1563 = vunpack.c.l.b16 %v1249
        %v1564 = vunpack.c.h.b16 %v1249
        %v1565 = vunpack.c.l.b16 %v1250
        %v1566 = vunpack.c.h.b16 %v1250
        %v1567 = vunpack.c.l.b16 %v1251
        %v1568 = vunpack.c.h.b16 %v1251
        %v1569 = vunpack.c.l.b16 %v1252
        %v1570 = vunpack.c.h.b16 %v1252
        %v1571 = vunpack.c.l.b16 %v1253
        %v1572 = vunpack.c.h.b16 %v1253
        %v1573 = vunpack.c.l.b16 %v1254
        %v1574 = vunpack.c.h.b16 %v1254
        %v1575 = vunpack.c.l.b16 %v1255
        %v1576 = vunpack.c.h.b16 %v1255
        %v1577 = vunpack.c.l.b16 %v1256
        %v1578 = vunpack.c.h.b16 %v1256
        %v1579 = vunpack.c.l.b16 %v1257
        %v1580 = vunpack.c.h.b16 %v1257
        %v1581 = vunpack.c.l.b16 %v1258
        %v1582 = vunpack.c.h.b16 %v1258
        %v1583 = vunpack.c.l.b16 %v1259
        %v1584 = vunpack.c.h.b16 %v1259
        %v1585 = vunpack.c.l.b16 %v1260
        %v1586 = vunpack.c.h.b16 %v1260
        %v1587 = vunpack.c.l.b16 %v1261
        %v1588 = vunpack.c.h.b16 %v1261
        %v1589 = vunpack.c.l.b16 %v1262
        %v1590 = vunpack.c.h.b16 %v1262
        %v1591 = vunpack.c.l.b16 %v1263
        %v1592 = vunpack.c.h.b16 %v1263
        %v1593 = vunpack.c.l.b16 %v1264
        %v1594 = vunpack.c.h.b16 %v1264
        %v1595 = vunpack.c.l.b16 %v1265
        %v1596 = vunpack.c.h.b16 %v1265
        %v1597 = vunpack.c.l.b16 %v1266
        %v1598 = vunpack.c.h.b16 %v1266
        %v1599 = vunpack.c.l.b16 %v1267
        %v1600 = vunpack.c.h.b16 %v1267
        %v1601 = vunpack.c.l.b16 %v1268
        %v1602 = vunpack.c.h.b16 %v1268
        %v1603 = vunpack.c.l.b16 %v1269
        %v1604 = vunpack.c.h.b16 %v1269
        %v1605 = vunpack.c.l.b16 %v1270
        %v1606 = vunpack.c.h.b16 %v1270
        %v1607 = vunpack.c.l.b16 %v1271
        %v1608 = vunpack.c.h.b16 %v1271
        %v1609 = vunpack.c.l.b16 %v1272
        %v1610 = vunpack.c.h.b16 %v1272
        %v1611 = vunpack.c.l.b16 %v1273
        %v1612 = vunpack.c.h.b16 %v1273
        %v1613 = vunpack.c.l.b16 %v1274
        %v1614 = vunpack.c.h.b16 %v1274
        %v1615 = vunpack.c.l.b16 %v1275
        %v1616 = vunpack.c.h.b16 %v1275
        %v1617 = vunpack.c.l.b16 %v1276
        %v1618 = vunpack.c.h.b16 %v1276
        %v1619 = vunpack.c.l.b16 %v1277
        %v1620 = vunpack.c.h.b16 %v1277
        %v1621 = vunpack.c.l.b16 %v1278
        %v1622 = vunpack.c.h.b16 %v1278
        %v1623 = vunpack.c.l.b16 %v1279
        %v1624 = vunpack.c.h.b16 %v1279
        %v1625 = vunpack.c.l.b16 %v1280
        %v1626 = vunpack.c.h.b16 %v1280
        %v1627 = vunpack.c.l.b16 %v1281
        %v1628 = vunpack.c.h.b16 %v1281
        %v1629 = vunpack.c.l.b16 %v1282
        %v1630 = vunpack.c.h.b16 %v1282
        %v1631 = vunpack.c.l.b16 %v1283
        %v1632 = vunpack.c.h.b16 %v1283
        %v1633 = vunpack.c.l.b16 %v1284
        %v1634 = vunpack.c.h.b16 %v1284
        %v1635 = vunpack.c.l.b16 %v1285
        %v1636 = vunpack.c.h.b16 %v1285
        %v1637 = vunpack.c.l.b16 %v1286
        %v1638 = vunpack.c.h.b16 %v1286
        %v1639 = vunpack.c.l.b16 %v1287
        %v1640 = vunpack.c.h.b16 %v1287
        %v1641 = vunpack.c.l.b16 %v1288
        %v1642 = vunpack.c.h.b16 %v1288
        %v1643 = vunpack.c.l.b16 %v1289
        %v1644 = vunpack.c.h.b16 %v1289
        %v1645 = vunpack.c.l.b16 %v1290
        %v1646 = vunpack.c.h.b16 %v1290
        %v1647 = vunpack.c.l.b16 %v1291
        %v1648 = vunpack.c.h.b16 %v1291
        %v1649 = vunpack.c.l.b16 %v1292
        %v1650 = vunpack.c.h.b16 %v1292
        %v1651 = vunpack.c.l.b16 %v1293
        %v1652 = vunpack.c.h.b16 %v1293
        %v1653 = vunpack.c.l.b16 %v1294
        %v1654 = vunpack.c.h.b16 %v1294
        %v1655 = vunpack.c.l.b16 %v1295
        %v1656 = vunpack.c.h.b16 %v1295
        %v1657 = vunpack.c.l.b16 %v1296
        %v1658 = vunpack.c.h.b16 %v1296
        %v1659 = vunpack.c.l.b16 %v1297
        %v1660 = vunpack.c.h.b16 %v1297
        %v1661 = vunpack.c.l.b16 %v1298
        %v1662 = vunpack.c.h.b16 %v1298
        %v1663 = vunpack.c.l.b16 %v1299
        %v1664 = vunpack.c.h.b16 %v1299
        %v1665 = vunpack.c.l.b16 %v1300
        %v1666 = vunpack.c.h.b16 %v1300
        %v1667 = vunpack.c.l.b16 %v1301
        %v1668 = vunpack.c.h.b16 %v1301
        %v1669 = vunpack.c.l.b16 %v1302
        %v1670 = vunpack.c.h.b16 %v1302
        %v1671 = vunpack.c.l.b16 %v1303
        %v1672 = vunpack.c.h.b16 %v1303
        %v1673 = vunpack.c.l.b16 %v1304
        %v1674 = vunpack.c.h.b16 %v1304
        %v1675 = vunpack.c.l.b16 %v1305
        %v1676 = vunpack.c.h.b16 %v1305
        %v1677 = vunpack.c.l.b16 %v1306
        %v1678 = vunpack.c.h.b16 %v1306
        %v1679 = vunpack.c.l.b16 %v1307
        %v1680 = vunpack.c.h.b16 %v1307
        %v1681 = vunpack.c.l.b16 %v1308
        %v1682 = vunpack.c.h.b16 %v1308
        %v1683 = vunpack.c.l.b16 %v1309
        %v1684 = vunpack.c.h.b16 %v1309
        %v1685 = vunpack.c.l.b16 %v1310
        %v1686 = vunpack.c.h.b16 %v1310
        %v1687 = vunpack.c.l.b16 %v1311
        %v1688 = vunpack.c.h.b16 %v1311
        %v1689 = vunpack.c.l.b16 %v1312
        %v1690 = vunpack.c.h.b16 %v1312
        %v1691 = vunpack.c.l.b16 %v1313
        %v1692 = vunpack.c.h.b16 %v1313
        %v1693 = vunpack.c.l.b16 %v1314
        %v1694 = vunpack.c.h.b16 %v1314
        %v1695 = vunpack.c.l.b16 %v1315
        %v1696 = vunpack.c.h.b16 %v1315
        %v1697 = vunpack.c.l.b16 %v1316
        %v1698 = vunpack.c.h.b16 %v1316
        %v1699 = vunpack.c.l.b16 %v1317
        %v1700 = vunpack.c.h.b16 %v1317
        %v1701 = vunpack.c.l.b16 %v1318
        %v1702 = vunpack.c.h.b16 %v1318
        %v1703 = vunpack.c.l.b16 %v1319
        %v1704 = vunpack.c.h.b16 %v1319
        %v1705 = vunpack.c.l.b16 %v1320
        %v1706 = vunpack.c.h.b16 %v1320
        %v1707 = vunpack.c.l.b16 %v1321
        %v1708 = vunpack.c.h.b16 %v1321
        %v1709 = vunpack.c.l.b16 %v1322
        %v1710 = vunpack.c.h.b16 %v1322
        %v1711 = vunpack.c.l.b16 %v1323
        %v1712 = vunpack.c.h.b16 %v1323
        %v1713 = vunpack.c.l.b16 %v1324
        %v1714 = vunpack.c.h.b16 %v1324
        %v1715 = vunpack.c.l.b16 %v1325
        %v1716 = vunpack.c.h.b16 %v1325
        %v1717 = vunpack.c.l.b16 %v1326
        %v1718 = vunpack.c.h.b16 %v1326
        %v1719 = vunpack.c.l.b16 %v1327
        %v1720 = vunpack.c.h.b16 %v1327
        %v1721 = vunpack.c.l.b16 %v1328
        %v1722 = vunpack.c.h.b16 %v1328
        %v1723 = vunpack.c.l.b16 %v1329
        %v1724 = vunpack.c.h.b16 %v1329
        %v1725 = vunpack.c.l.b16 %v1330
        %v1726 = vunpack.c.h.b16 %v1330
        %v1727 = vunpack.c.l.b16 %v1331
        %v1728 = vunpack.c.h.b16 %v1331
        %v1729 = vunpack.c.l.b16 %v1332
        %v1730 = vunpack.c.h.b16 %v1332
        %v1731 = vunpack.c.l.b16 %v1333
        %v1732 = vunpack.c.h.b16 %v1333
        %v1733 = vunpack.c.l.b16 %v1334
        %v1734 = vunpack.c.h.b16 %v1334
        %v1735 = vunpack.c.l.b16 %v1335
        %v1736 = vunpack.c.h.b16 %v1335
        %v1737 = vunpack.c.l.b16 %v1336
        %v1738 = vunpack.c.h.b16 %v1336
        %v1739 = vunpack.c.l.b16 %v1337
        %v1740 = vunpack.c.h.b16 %v1337
        %v1741 = vunpack.c.l.b16 %v1338
        %v1742 = vunpack.c.h.b16 %v1338
        %v1743 = vunpack.c.l.b16 %v1339
        %v1744 = vunpack.c.h.b16 %v1339
        %v1745 = vunpack.c.l.b16 %v1340
        %v1746 = vunpack.c.h.b16 %v1340
        %v1747 = vunpack.c.l.b16 %v1341
        %v1748 = vunpack.c.h.b16 %v1341
        %v1749 = vunpack.c.l.b16 %v1342
        %v1750 = vunpack.c.h.b16 %v1342
        %v1751 = vunpack.c.l.b16 %v1343
        %v1752 = vunpack.c.h.b16 %v1343
        %v1753 = vpack.c.b16 %v1563, %v1561
        %v1754 = vpack.c.b16 %v1564, %v1562
        %v1755 = vpack.c.b16 %v1567, %v1565
        %v1756 = vpack.c.b16 %v1568, %v1566
        %v1757 = vpack.c.b16 %v1571, %v1569
        %v1758 = vpack.c.b16 %v1572, %v1570
        %v1759 = vpack.c.b16 %v1575, %v1573
        %v1760 = vpack.c.b16 %v1576, %v1574
        %v1761 = vpack.c.b16 %v1579, %v1577
        %v1762 = vpack.c.b16 %v1580, %v1578
        %v1763 = vpack.c.b16 %v1583, %v1581
        %v1764 = vpack.c.b16 %v1584, %v1582
        %v1765 = vpack.c.b16 %v1587, %v1585
        %v1766 = vpack.c.b16 %v1588, %v1586
        %v1767 = vpack.c.b16 %v1591, %v1589
        %v1768 = vpack.c.b16 %v1592, %v1590
        %v1769 = vpack.c.b16 %v1595, %v1593
        %v1770 = vpack.c.b16 %v1596, %v1594
        %v1771 = vpack.c.b16 %v1599, %v1597
        %v1772 = vpack.c.b16 %v1600, %v1598
        %v1773 = vpack.c.b16 %v1603, %v1601
        %v1774 = vpack.c.b16 %v1604, %v1602
        %v1775 = vpack.c.b16 %v1607, %v1605
        %v1776 = vpack.c.b16 %v1608, %v1606
        %v1777 = vpack.c.b16 %v1611, %v1609
        %v1778 = vpack.c.b16 %v1612, %v1610
        %v1779 = vpack.c.b16 %v1615, %v1613
        %v1780 = vpack.c.b16 %v1616, %v1614
        %v1781 = vpack.c.b16 %v1619, %v1617
        %v1782 = vpack.c.b16 %v1620, %v1618
        %v1783 = vpack.c.b16 %v1623, %v1621
        %v1784 = vpack.c.b16 %v1624, %v1622
        %v1785 = vpack.c.b16 %v1627, %v1625
        %v1786 = vpack.c.b16 %v1628, %v1626
        %v1787 = vpack.c.b16 %v1631, %v1629
        %v1788 = vpack.c.b16 %v1632, %v1630
        %v1789 = vpack.c.b16 %v1635, %v1633
        %v1790 = vpack.c.b16 %v1636, %v1634
        %v1791 = vpack.c.b16 %v1639, %v1637
        %v1792 = vpack.c.b16 %v1640, %v1638
        %v1793 = vpack.c.b16 %v1643, %v1641
        %v1794 = vpack.c.b16 %v1644, %v1642
        %v1795 = vpack.c.b16 %v1647, %v1645
        %v1796 = vpack.c.b16 %v1648, %v1646
        %v1797 = vpack.c.b16 %v1651, %v1649
        %v1798 = vpack.c.b16 %v1652, %v1650
        %v1799 = vpack.c.b16 %v1655, %v1653
        %v1800 = vpack.c.b16 %v1656, %v1654
        %v1801 = vpack.c.b16 %v1659, %v1657
        %v1802 = vpack.c.b16 %v1660, %v1658
        %v1803 = vpack.c.b16 %v1663, %v1661
        %v1804 = vpack.c.b16 %v1664, %v1662
        %v1805 = vpack.c.b16 %v1667, %v1665
        %v1806 = vpack.c.b16 %v1668, %v1666
        %v1807 = vpack.c.b16 %v1671, %v1669
        %v1808 = vpack.c.b16 %v1672, %v1670
        %v1809 = vpack.c.b16 %v1675, %v1673
        %v1810 = vpack.c.b16 %v1676, %v1674
        %v1811 = vpack.c.b16 %v1679, %v1677
        %v1812 = vpack.c.b16 %v1680, %v1678
        %v1813 = vpack.c.b16 %v1683, %v1681
        %v1814 = vpack.c.b16 %v1684, %v1682
        %v1815 = vpack.c.b16 %v1687, %v1685
        %v1816 = vpack.c.b16 %v1688, %v1686
        %v1817 = vpack.c.b16 %v1691, %v1689
        %v1818 = vpack.c.b16 %v1692, %v1690
        %v1819 = vpack.c.b16 %v1695, %v1693
        %v1820 = vpack.c.b16 %v1696, %v1694
        %v1821 = vpack.c.b16 %v1699, %v1697
        %v1822 = vpack.c.b16 %v1700, %v1698
        %v1823 = vpack.c.b16 %v1703, %v1701
        %v1824 = vpack.c.b16 %v1704, %v1702
        %v1825 = vpack.c.b16 %v1707, %v1705
        %v1826 = vpack.c.b16 %v1708, %v1706
        %v1827 = vpack.c.b16 %v1711, %v1709
        %v1828 = vpack.c.b16 %v1712, %v1710
        %v1829 = vpack.c.b16 %v1715, %v1713
        %v1830 = vpack.c.b16 %v1716, %v1714
        %v1831 = vpack.c.b16 %v1719, %v1717
        %v1832 = vpack.c.b16 %v1720, %v1718
        %v1833 = vpack.c.b16 %v1723, %v1721
        %v1834 = vpack.c.b16 %v1724, %v1722
        %v1835 = vpack.c.b16 %v1727, %v1725
        %v1836 = vpack.c.b16 %v1728, %v1726
        %v1837 = vpack.c.b16 %v1731, %v1729
        %v1838 = vpack.c.b16 %v1732, %v1730
        %v1839 = vpack.c.b16 %v1735, %v1733
        %v1840 = vpack.c.b16 %v1736, %v1734
        %v1841 = vpack.c.b16 %v1739, %v1737
        %v1842 = vpack.c.b16 %v1740, %v1738
        %v1843 = vpack.c.b16 %v1743, %v1741
        %v1844 = vpack.c.b16 %v1744, %v1742
        %v1845 = vpack.c.b16 %v1747, %v1745
        %v1846 = vpack.c.b16 %v1748, %v1746
        %v1847 = vpack.c.b16 %v1751, %v1749
        %v1848 = vpack.c.b16 %v1752, %v1750
        %1945 = vmatprep.subr.bf16.mxu0 %v1768
        %1946 = vmatpush1.bf16.msra.mxu0 %v1767
        %1947 = vmatprep.subr.bf16.mxu0 %v1766
        %1948 = vmatpush1.bf16.msra.mxu0 %v1765
        %1949 = vmatprep.subr.bf16.mxu0 %v1764
        %1950 = vmatpush1.bf16.msra.mxu0 %v1763
        %1951 = vmatprep.subr.bf16.mxu0 %v1762
        %1952 = vmatpush1.bf16.msra.mxu0 %v1761
        %1953 = vmatprep.subr.bf16.mxu0 %v1760
        %1954 = vmatpush1.bf16.msra.mxu0 %v1759
        %1955 = vmatprep.subr.bf16.mxu0 %v1758
        %1956 = vmatpush1.bf16.msra.mxu0 %v1757
        %1957 = vmatprep.subr.bf16.mxu0 %v1756
        %1958 = vmatpush1.bf16.msra.mxu0 %v1755
        %1959 = vmatprep.subr.bf16.mxu0 %v1754
        %1960 = vmatpush1.bf16.msra.mxu0 %v1753
        %1961 = vmatprep.subr.bf16.mxu0 %v1784
        %1962 = vmatpush2.bf16.msra.mxu0 %v1783
        %1963 = vmatprep.subr.bf16.mxu0 %v1782
        %1964 = vmatpush2.bf16.msra.mxu0 %v1781
        %1965 = vmatprep.subr.bf16.mxu0 %v1780
        %1966 = vmatpush2.bf16.msra.mxu0 %v1779
        %1967 = vmatprep.subr.bf16.mxu0 %v1778
        %1968 = vmatpush2.bf16.msra.mxu0 %v1777
        %1969 = vmatprep.subr.bf16.mxu0 %v1776
        %1970 = vmatpush2.bf16.msra.mxu0 %v1775
        %1971 = vmatprep.subr.bf16.mxu0 %v1774
        %1972 = vmatpush2.bf16.msra.mxu0 %v1773
        %1973 = vmatprep.subr.bf16.mxu0 %v1772
        %1974 = vmatpush2.bf16.msra.mxu0 %v1771
        %1975 = vmatprep.subr.bf16.mxu0 %v1770
        %1976 = vmatpush2.bf16.msra.mxu0 %v1769
        %1977 = vmatprep.mubr.bf16.mxu0 %v1390
        %1978 = vmatmul.mubr.bf16.gmra.mxu0 %v1373
        %v1979 = vpop.f32.mrf.mxu0
        %v1980 = vadd.f32 %v1350, %v1979
        %v1981 = vpop.f32.mrf.mxu0
        %v1982 = vadd.f32 %v1354, %v1981
        %v1983 = vpop.f32.mrf.mxu0
        %v1984 = vadd.f32 %v1350, %v1983
        %v1985 = vpop.f32.mrf.mxu0
        %v1986 = vadd.f32 %v1354, %v1985
        %1987 = vdwg.mxu0
        %1988 = vmatprep.subr.bf16.mxu0 %v1800
        %1989 = vmatpush1.bf16.msra.mxu0 %v1799
        %1990 = vmatprep.subr.bf16.mxu0 %v1798
        %1991 = vmatpush1.bf16.msra.mxu0 %v1797
        %1992 = vmatprep.subr.bf16.mxu0 %v1796
        %1993 = vmatpush1.bf16.msra.mxu0 %v1795
        %1994 = vmatprep.subr.bf16.mxu0 %v1794
        %1995 = vmatpush1.bf16.msra.mxu0 %v1793
        %1996 = vmatprep.subr.bf16.mxu0 %v1792
        %1997 = vmatpush1.bf16.msra.mxu0 %v1791
        %1998 = vmatprep.subr.bf16.mxu0 %v1790
        %1999 = vmatpush1.bf16.msra.mxu0 %v1789
        %2000 = vmatprep.subr.bf16.mxu0 %v1788
        %2001 = vmatpush1.bf16.msra.mxu0 %v1787
        %2002 = vmatprep.subr.bf16.mxu0 %v1786
        %2003 = vmatpush1.bf16.msra.mxu0 %v1785
        %2004 = vmatprep.subr.bf16.mxu0 %v1816
        %2005 = vmatpush2.bf16.msra.mxu0 %v1815
        %2006 = vmatprep.subr.bf16.mxu0 %v1814
        %2007 = vmatpush2.bf16.msra.mxu0 %v1813
        %2008 = vmatprep.subr.bf16.mxu0 %v1812
        %2009 = vmatpush2.bf16.msra.mxu0 %v1811
        %2010 = vmatprep.subr.bf16.mxu0 %v1810
        %2011 = vmatpush2.bf16.msra.mxu0 %v1809
        %2012 = vmatprep.subr.bf16.mxu0 %v1808
        %2013 = vmatpush2.bf16.msra.mxu0 %v1807
        %2014 = vmatprep.subr.bf16.mxu0 %v1806
        %2015 = vmatpush2.bf16.msra.mxu0 %v1805
        %2016 = vmatprep.subr.bf16.mxu0 %v1804
        %2017 = vmatpush2.bf16.msra.mxu0 %v1803
        %2018 = vmatprep.subr.bf16.mxu0 %v1802
        %2019 = vmatpush2.bf16.msra.mxu0 %v1801
        %2020 = vmatprep.mubr.bf16.mxu0 %v1424
        %2021 = vmatmul.mubr.bf16.gmra.mxu0 %v1407
        %v2022 = vpop.f32.mrf.mxu0
        %v2023 = vadd.f32 %v1980, %v2022
        %v2024 = vpop.f32.mrf.mxu0
        %v2025 = vadd.f32 %v1982, %v2024
        %v2026 = vpop.f32.mrf.mxu0
        %v2027 = vadd.f32 %v1984, %v2026
        %v2028 = vpop.f32.mrf.mxu0
        %v2029 = vadd.f32 %v1986, %v2028
        %2030 = vdwg.mxu0
        %2031 = vmatprep.subr.bf16.mxu0 %v1832
        %2032 = vmatpush1.bf16.msra.mxu0 %v1831
        %2033 = vmatprep.subr.bf16.mxu0 %v1830
        %2034 = vmatpush1.bf16.msra.mxu0 %v1829
        %2035 = vmatprep.subr.bf16.mxu0 %v1828
        %2036 = vmatpush1.bf16.msra.mxu0 %v1827
        %2037 = vmatprep.subr.bf16.mxu0 %v1826
        %2038 = vmatpush1.bf16.msra.mxu0 %v1825
        %2039 = vmatprep.subr.bf16.mxu0 %v1824
        %2040 = vmatpush1.bf16.msra.mxu0 %v1823
        %2041 = vmatprep.subr.bf16.mxu0 %v1822
        %2042 = vmatpush1.bf16.msra.mxu0 %v1821
        %2043 = vmatprep.subr.bf16.mxu0 %v1820
        %2044 = vmatpush1.bf16.msra.mxu0 %v1819
        %2045 = vmatprep.subr.bf16.mxu0 %v1818
        %2046 = vmatpush1.bf16.msra.mxu0 %v1817
        %2047 = vmatprep.subr.bf16.mxu0 %v1848
        %2048 = vmatpush2.bf16.msra.mxu0 %v1847
        %2049 = vmatprep.subr.bf16.mxu0 %v1846
        %2050 = vmatpush2.bf16.msra.mxu0 %v1845
        %2051 = vmatprep.subr.bf16.mxu0 %v1844
        %2052 = vmatpush2.bf16.msra.mxu0 %v1843
        %2053 = vmatprep.subr.bf16.mxu0 %v1842
        %2054 = vmatpush2.bf16.msra.mxu0 %v1841
        %2055 = vmatprep.subr.bf16.mxu0 %v1840
        %2056 = vmatpush2.bf16.msra.mxu0 %v1839
        %2057 = vmatprep.subr.bf16.mxu0 %v1838
        %2058 = vmatpush2.bf16.msra.mxu0 %v1837
        %2059 = vmatprep.subr.bf16.mxu0 %v1836
        %2060 = vmatpush2.bf16.msra.mxu0 %v1835
        %2061 = vmatprep.subr.bf16.mxu0 %v1834
        %2062 = vmatpush2.bf16.msra.mxu0 %v1833
        %2063 = vmatprep.mubr.bf16.mxu0 %v1458
        %2064 = vmatmul.mubr.bf16.gmra.mxu0 %v1441
        %v2065 = vpop.f32.mrf.mxu0
        %v2066 = vadd.f32 %v2023, %v2065
        %v2067 = vpop.f32.mrf.mxu0
        %v2068 = vadd.f32 %v2025, %v2067
        %v2069 = vpop.f32.mrf.mxu0
        %v2070 = vadd.f32 %v2027, %v2069
        %v2071 = vpop.f32.mrf.mxu0
        %v2072 = vadd.f32 %v2029, %v2071
        %2073 = vdwg.mxu0
        %s2074 = sld [smem:[#allocation10 + $0x1]]
        %vm2075 = vcmp.ge.f32.partialorder %v2066, 0.0
        %vm2076 = vcmp.ge.f32.partialorder %v2068, 0.0
        %vm2077 = vcmp.ge.f32.partialorder %v2070, 0.0
        %vm2078 = vcmp.ge.f32.partialorder %v2072, 0.0
        %v2079 = vstv %s2074
        %v2080 = vmul.f32 %v2079, %v2066
        %v2081 = vmul.f32 %v2079, %v2068
        %v2082 = vmul.f32 %v2079, %v2070
        %v2083 = vmul.f32 %v2079, %v2072
        %v2084 = vsel %vm2075, %v2066, %v2080
        %v2085 = vsel %vm2076, %v2068, %v2081
        %v2086 = vsel %vm2077, %v2070, %v2082
        %v2087 = vsel %vm2078, %v2072, %v2083
        %2088 = vst [vmem:[#allocation2 + $0x10] sm:$0xff] %v2084
        %2089 = vst [vmem:[#allocation2 + $0x18] sm:$0xff] %v2085
        %2090 = vst [vmem:[#allocation2 + $0x20] sm:$0xff] %v2086
        %2091 = vst [vmem:[#allocation2 + $0x28] sm:$0xff] %v2087
        %v2092 = vld [vmem:[#allocation2] sm:$0x80]
        %v2093 = vld [vmem:[#allocation2 + $0x8] sm:$0x80]
        %v2094 = vld [vmem:[#allocation2 + $0x10] sm:$0xff]
        %v2095 = vld [vmem:[#allocation2 + $0x18] sm:$0xff]
        %v2096 = vld [vmem:[#allocation2 + $0x20] sm:$0x7f]
        %v2097 = vld [vmem:[#allocation2 + $0x28] sm:$0x7f]
        %v2098 = vld [vmem:[#allocation2 + $0x20] sm:$0xff]
        %v2099 = vld [vmem:[#allocation2 + $0x28] sm:$0xff]
        %v2100 = vld [vmem:[#allocation2 + $0x10] sm:$0xfe]
        %v2101 = vld [vmem:[#allocation2 + $0x18] sm:$0xfe]
        %v2102 = vld [vmem:[#allocation2 + $0x20] sm:$0xff]
        %v2103 = vld [vmem:[#allocation2 + $0x28] sm:$0xff]
        %v2104 = vld [vmem:[#allocation2 + $0x30] sm:$0x1]
        %v2105 = vld [vmem:[#allocation2 + $0x38] sm:$0x1]
        %v2110 = vrot.slane %v2094, 1
        %v2111 = vrot.slane %v2095, 1
        %v2112 = vrot.slane %v2098, 1
        %v2113 = vsel %vm291, %v2110, %v2112
        %v2114 = vrot.slane %v2099, 1
        %v2115 = vsel %vm291, %v2111, %v2114
        %v2128 = vrot.slane %v2100, 2
        %v2129 = vrot.slane %v2101, 2
        %v2130 = vrot.slane %v2102, 2
        %v2131 = vsel %vm310, %v2128, %v2130
        %v2132 = vrot.slane %v2103, 2
        %v2133 = vsel %vm310, %v2129, %v2132
        %v2134 = vrot.slane %v2104, 2
        %v2135 = vsel %vm310, %v2130, %v2134
        %v2136 = vrot.slane %v2105, 2
        %v2137 = vsel %vm310, %v2132, %v2136
        %v2144 = vpack.c.bf16 %v2094, %v2092
        %v2145 = vpack.c.bf16 %v2095, %v2093
        %v2146 = vpack.c.bf16 %v2113, %v2110
        %v2147 = vpack.c.bf16 %v2115, %v2111
        %v2148 = vpack.c.bf16 %v2131, %v2128
        %v2149 = vpack.c.bf16 %v2133, %v2129
        %v2150 = vpack.c.bf16 %v2096, %v2096
        %v2151 = vpack.c.bf16 %v2097, %v2097
        %v2152 = vpack.c.bf16 %v2112, %v2112
        %v2153 = vpack.c.bf16 %v2114, %v2114
        %v2154 = vpack.c.bf16 %v2135, %v2135
        %v2155 = vpack.c.bf16 %v2137, %v2137
        %s2156 = scalar_lea.vmem [#allocation7], 1536
        %v2157 = vld [vmem:[%s2156] sm:$0xff]
        %v2158 = vld [vmem:[%s2156 + $0x8] sm:$0xff]
        %v2159 = vld [vmem:[%s2156 + $0x10] sm:$0xff]
        %v2160 = vld [vmem:[%s2156 + $0x18] sm:$0xff]
        %v2161 = vld [vmem:[%s2156 + $0x20] sm:$0xff]
        %v2162 = vld [vmem:[%s2156 + $0x28] sm:$0xff]
        %v2163 = vld [vmem:[%s2156 + $0x30] sm:$0xff]
        %v2164 = vld [vmem:[%s2156 + $0x38] sm:$0xff]
        %v2165 = vld [vmem:[%s2156 + $0x40] sm:$0xff]
        %v2166 = vld [vmem:[%s2156 + $0x48] sm:$0xff]
        %v2167 = vld [vmem:[%s2156 + $0x50] sm:$0xff]
        %v2168 = vld [vmem:[%s2156 + $0x58] sm:$0xff]
        %v2169 = vld [vmem:[%s2156 + $0x60] sm:$0xff]
        %v2170 = vld [vmem:[%s2156 + $0x68] sm:$0xff]
        %v2171 = vld [vmem:[%s2156 + $0x70] sm:$0xff]
        %v2172 = vld [vmem:[%s2156 + $0x78] sm:$0xff]
        %v2173 = vld [vmem:[%s2156 + $0x80] sm:$0xff]
        %v2174 = vld [vmem:[%s2156 + $0x88] sm:$0xff]
        %v2175 = vld [vmem:[%s2156 + $0x90] sm:$0xff]
        %v2176 = vld [vmem:[%s2156 + $0x98] sm:$0xff]
        %v2177 = vld [vmem:[%s2156 + $0xa0] sm:$0xff]
        %v2178 = vld [vmem:[%s2156 + $0xa8] sm:$0xff]
        %v2179 = vld [vmem:[%s2156 + $0xb0] sm:$0xff]
        %v2180 = vld [vmem:[%s2156 + $0xb8] sm:$0xff]
        %v2181 = vld [vmem:[%s2156 + $0xc0] sm:$0xff]
        %v2182 = vld [vmem:[%s2156 + $0xc8] sm:$0xff]
        %v2183 = vld [vmem:[%s2156 + $0xd0] sm:$0xff]
        %v2184 = vld [vmem:[%s2156 + $0xd8] sm:$0xff]
        %v2185 = vld [vmem:[%s2156 + $0xe0] sm:$0xff]
        %v2186 = vld [vmem:[%s2156 + $0xe8] sm:$0xff]
        %v2187 = vld [vmem:[%s2156 + $0xf0] sm:$0xff]
        %v2188 = vld [vmem:[%s2156 + $0xf8] sm:$0xff]
        %v2189 = vld [vmem:[%s2156 + $0x100] sm:$0xff]
        %v2190 = vld [vmem:[%s2156 + $0x108] sm:$0xff]
        %v2191 = vld [vmem:[%s2156 + $0x110] sm:$0xff]
        %v2192 = vld [vmem:[%s2156 + $0x118] sm:$0xff]
        %v2193 = vld [vmem:[%s2156 + $0x120] sm:$0xff]
        %v2194 = vld [vmem:[%s2156 + $0x128] sm:$0xff]
        %v2195 = vld [vmem:[%s2156 + $0x130] sm:$0xff]
        %v2196 = vld [vmem:[%s2156 + $0x138] sm:$0xff]
        %v2197 = vld [vmem:[%s2156 + $0x140] sm:$0xff]
        %v2198 = vld [vmem:[%s2156 + $0x148] sm:$0xff]
        %v2199 = vld [vmem:[%s2156 + $0x150] sm:$0xff]
        %v2200 = vld [vmem:[%s2156 + $0x158] sm:$0xff]
        %v2201 = vld [vmem:[%s2156 + $0x160] sm:$0xff]
        %v2202 = vld [vmem:[%s2156 + $0x168] sm:$0xff]
        %v2203 = vld [vmem:[%s2156 + $0x170] sm:$0xff]
        %v2204 = vld [vmem:[%s2156 + $0x178] sm:$0xff]
        %v2205 = vld [vmem:[%s2156 + $0x180] sm:$0xff]
        %v2206 = vld [vmem:[%s2156 + $0x188] sm:$0xff]
        %v2207 = vld [vmem:[%s2156 + $0x190] sm:$0xff]
        %v2208 = vld [vmem:[%s2156 + $0x198] sm:$0xff]
        %v2209 = vld [vmem:[%s2156 + $0x1a0] sm:$0xff]
        %v2210 = vld [vmem:[%s2156 + $0x1a8] sm:$0xff]
        %v2211 = vld [vmem:[%s2156 + $0x1b0] sm:$0xff]
        %v2212 = vld [vmem:[%s2156 + $0x1b8] sm:$0xff]
        %v2213 = vld [vmem:[%s2156 + $0x1c0] sm:$0xff]
        %v2214 = vld [vmem:[%s2156 + $0x1c8] sm:$0xff]
        %v2215 = vld [vmem:[%s2156 + $0x1d0] sm:$0xff]
        %v2216 = vld [vmem:[%s2156 + $0x1d8] sm:$0xff]
        %v2217 = vld [vmem:[%s2156 + $0x1e0] sm:$0xff]
        %v2218 = vld [vmem:[%s2156 + $0x1e8] sm:$0xff]
        %v2219 = vld [vmem:[%s2156 + $0x1f0] sm:$0xff]
        %v2220 = vld [vmem:[%s2156 + $0x1f8] sm:$0xff]
        %v2221 = vld [vmem:[%s2156 + $0x200] sm:$0xff]
        %v2222 = vld [vmem:[%s2156 + $0x208] sm:$0xff]
        %v2223 = vld [vmem:[%s2156 + $0x210] sm:$0xff]
        %v2224 = vld [vmem:[%s2156 + $0x218] sm:$0xff]
        %v2225 = vld [vmem:[%s2156 + $0x220] sm:$0xff]
        %v2226 = vld [vmem:[%s2156 + $0x228] sm:$0xff]
        %v2227 = vld [vmem:[%s2156 + $0x230] sm:$0xff]
        %v2228 = vld [vmem:[%s2156 + $0x238] sm:$0xff]
        %v2229 = vld [vmem:[%s2156 + $0x240] sm:$0xff]
        %v2230 = vld [vmem:[%s2156 + $0x248] sm:$0xff]
        %v2231 = vld [vmem:[%s2156 + $0x250] sm:$0xff]
        %v2232 = vld [vmem:[%s2156 + $0x258] sm:$0xff]
        %v2233 = vld [vmem:[%s2156 + $0x260] sm:$0xff]
        %v2234 = vld [vmem:[%s2156 + $0x268] sm:$0xff]
        %v2235 = vld [vmem:[%s2156 + $0x270] sm:$0xff]
        %v2236 = vld [vmem:[%s2156 + $0x278] sm:$0xff]
        %v2237 = vld [vmem:[%s2156 + $0x280] sm:$0xff]
        %v2238 = vld [vmem:[%s2156 + $0x288] sm:$0xff]
        %v2239 = vld [vmem:[%s2156 + $0x290] sm:$0xff]
        %v2240 = vld [vmem:[%s2156 + $0x298] sm:$0xff]
        %v2241 = vld [vmem:[%s2156 + $0x2a0] sm:$0xff]
        %v2242 = vld [vmem:[%s2156 + $0x2a8] sm:$0xff]
        %v2243 = vld [vmem:[%s2156 + $0x2b0] sm:$0xff]
        %v2244 = vld [vmem:[%s2156 + $0x2b8] sm:$0xff]
        %v2245 = vld [vmem:[%s2156 + $0x2c0] sm:$0xff]
        %v2246 = vld [vmem:[%s2156 + $0x2c8] sm:$0xff]
        %v2247 = vld [vmem:[%s2156 + $0x2d0] sm:$0xff]
        %v2248 = vld [vmem:[%s2156 + $0x2d8] sm:$0xff]
        %v2249 = vld [vmem:[%s2156 + $0x2e0] sm:$0xff]
        %v2250 = vld [vmem:[%s2156 + $0x2e8] sm:$0xff]
        %v2251 = vld [vmem:[%s2156 + $0x2f0] sm:$0xff]
        %v2252 = vld [vmem:[%s2156 + $0x2f8] sm:$0xff]
        %s2253 = scalar_lea.vmem [#allocation9], 4
        %v2254 = vld [vmem:[%s2253] sm:$0x3]
        %v2256 = vlaneseq
        %v2257 = vshrl.u32 %v2256, 7
        %v2258 = vsub.s32 0, %v2257
        %v2259 = vrot.slane %v2254, %v2258
        %v2260 = vlaneseq
        %v2261 = vshrl.u32 %v2260, 7
        %v2262 = vsub.s32 1, %v2261
        %v2263 = vrot.slane %v2254, %v2262
        %v2267 = vshrl.u32 %v2144, 16
        %v2269 = vrot.slane %v2267, 3
        %v2270 = vshll.u32 %v2144, 16
        %v2272 = vrot.slane %v2270, 4
        %v2273 = vor.u32 %v2269, %v2272
        %v2275 = vshrl.u32 %v2150, 16
        %v2277 = vrot.slane %v2275, 3
        %v2278 = vshll.u32 %v2150, 16
        %v2280 = vrot.slane %v2278, 4
        %v2281 = vor.u32 %v2277, %v2280
        %v2282 = vsel %vm447, %v2273, %v2281
        %v2284 = vshrl.u32 %v2145, 16
        %v2286 = vrot.slane %v2284, 3
        %v2287 = vshll.u32 %v2145, 16
        %v2289 = vrot.slane %v2287, 4
        %v2290 = vor.u32 %v2286, %v2289
        %v2292 = vshrl.u32 %v2151, 16
        %v2294 = vrot.slane %v2292, 3
        %v2295 = vshll.u32 %v2151, 16
        %v2297 = vrot.slane %v2295, 4
        %v2298 = vor.u32 %v2294, %v2297
        %v2299 = vsel %vm447, %v2290, %v2298
        %v2301 = vshrl.u32 %v2146, 16
        %v2303 = vrot.slane %v2301, 3
        %v2304 = vshll.u32 %v2146, 16
        %v2306 = vrot.slane %v2304, 4
        %v2307 = vor.u32 %v2303, %v2306
        %v2309 = vshrl.u32 %v2152, 16
        %v2311 = vrot.slane %v2309, 3
        %v2312 = vshll.u32 %v2152, 16
        %v2314 = vrot.slane %v2312, 4
        %v2315 = vor.u32 %v2311, %v2314
        %v2316 = vsel %vm447, %v2307, %v2315
        %v2318 = vshrl.u32 %v2147, 16
        %v2320 = vrot.slane %v2318, 3
        %v2321 = vshll.u32 %v2147, 16
        %v2323 = vrot.slane %v2321, 4
        %v2324 = vor.u32 %v2320, %v2323
        %v2326 = vshrl.u32 %v2153, 16
        %v2328 = vrot.slane %v2326, 3
        %v2329 = vshll.u32 %v2153, 16
        %v2331 = vrot.slane %v2329, 4
        %v2332 = vor.u32 %v2328, %v2331
        %v2333 = vsel %vm447, %v2324, %v2332
        %v2335 = vshrl.u32 %v2148, 16
        %v2337 = vrot.slane %v2335, 3
        %v2338 = vshll.u32 %v2148, 16
        %v2340 = vrot.slane %v2338, 4
        %v2341 = vor.u32 %v2337, %v2340
        %v2343 = vshrl.u32 %v2154, 16
        %v2345 = vrot.slane %v2343, 3
        %v2346 = vshll.u32 %v2154, 16
        %v2348 = vrot.slane %v2346, 4
        %v2349 = vor.u32 %v2345, %v2348
        %v2350 = vsel %vm447, %v2341, %v2349
        %v2352 = vshrl.u32 %v2149, 16
        %v2354 = vrot.slane %v2352, 3
        %v2355 = vshll.u32 %v2149, 16
        %v2357 = vrot.slane %v2355, 4
        %v2358 = vor.u32 %v2354, %v2357
        %v2360 = vshrl.u32 %v2155, 16
        %v2362 = vrot.slane %v2360, 3
        %v2363 = vshll.u32 %v2155, 16
        %v2365 = vrot.slane %v2363, 4
        %v2366 = vor.u32 %v2362, %v2365
        %v2367 = vsel %vm447, %v2358, %v2366
        %v2470 = vunpack.c.l.b16 %v2157
        %v2471 = vunpack.c.h.b16 %v2157
        %v2472 = vunpack.c.l.b16 %v2158
        %v2473 = vunpack.c.h.b16 %v2158
        %v2474 = vunpack.c.l.b16 %v2159
        %v2475 = vunpack.c.h.b16 %v2159
        %v2476 = vunpack.c.l.b16 %v2160
        %v2477 = vunpack.c.h.b16 %v2160
        %v2478 = vunpack.c.l.b16 %v2161
        %v2479 = vunpack.c.h.b16 %v2161
        %v2480 = vunpack.c.l.b16 %v2162
        %v2481 = vunpack.c.h.b16 %v2162
        %v2482 = vunpack.c.l.b16 %v2163
        %v2483 = vunpack.c.h.b16 %v2163
        %v2484 = vunpack.c.l.b16 %v2164
        %v2485 = vunpack.c.h.b16 %v2164
        %v2486 = vunpack.c.l.b16 %v2165
        %v2487 = vunpack.c.h.b16 %v2165
        %v2488 = vunpack.c.l.b16 %v2166
        %v2489 = vunpack.c.h.b16 %v2166
        %v2490 = vunpack.c.l.b16 %v2167
        %v2491 = vunpack.c.h.b16 %v2167
        %v2492 = vunpack.c.l.b16 %v2168
        %v2493 = vunpack.c.h.b16 %v2168
        %v2494 = vunpack.c.l.b16 %v2169
        %v2495 = vunpack.c.h.b16 %v2169
        %v2496 = vunpack.c.l.b16 %v2170
        %v2497 = vunpack.c.h.b16 %v2170
        %v2498 = vunpack.c.l.b16 %v2171
        %v2499 = vunpack.c.h.b16 %v2171
        %v2500 = vunpack.c.l.b16 %v2172
        %v2501 = vunpack.c.h.b16 %v2172
        %v2502 = vunpack.c.l.b16 %v2173
        %v2503 = vunpack.c.h.b16 %v2173
        %v2504 = vunpack.c.l.b16 %v2174
        %v2505 = vunpack.c.h.b16 %v2174
        %v2506 = vunpack.c.l.b16 %v2175
        %v2507 = vunpack.c.h.b16 %v2175
        %v2508 = vunpack.c.l.b16 %v2176
        %v2509 = vunpack.c.h.b16 %v2176
        %v2510 = vunpack.c.l.b16 %v2177
        %v2511 = vunpack.c.h.b16 %v2177
        %v2512 = vunpack.c.l.b16 %v2178
        %v2513 = vunpack.c.h.b16 %v2178
        %v2514 = vunpack.c.l.b16 %v2179
        %v2515 = vunpack.c.h.b16 %v2179
        %v2516 = vunpack.c.l.b16 %v2180
        %v2517 = vunpack.c.h.b16 %v2180
        %v2518 = vunpack.c.l.b16 %v2181
        %v2519 = vunpack.c.h.b16 %v2181
        %v2520 = vunpack.c.l.b16 %v2182
        %v2521 = vunpack.c.h.b16 %v2182
        %v2522 = vunpack.c.l.b16 %v2183
        %v2523 = vunpack.c.h.b16 %v2183
        %v2524 = vunpack.c.l.b16 %v2184
        %v2525 = vunpack.c.h.b16 %v2184
        %v2526 = vunpack.c.l.b16 %v2185
        %v2527 = vunpack.c.h.b16 %v2185
        %v2528 = vunpack.c.l.b16 %v2186
        %v2529 = vunpack.c.h.b16 %v2186
        %v2530 = vunpack.c.l.b16 %v2187
        %v2531 = vunpack.c.h.b16 %v2187
        %v2532 = vunpack.c.l.b16 %v2188
        %v2533 = vunpack.c.h.b16 %v2188
        %v2534 = vunpack.c.l.b16 %v2189
        %v2535 = vunpack.c.h.b16 %v2189
        %v2536 = vunpack.c.l.b16 %v2190
        %v2537 = vunpack.c.h.b16 %v2190
        %v2538 = vunpack.c.l.b16 %v2191
        %v2539 = vunpack.c.h.b16 %v2191
        %v2540 = vunpack.c.l.b16 %v2192
        %v2541 = vunpack.c.h.b16 %v2192
        %v2542 = vunpack.c.l.b16 %v2193
        %v2543 = vunpack.c.h.b16 %v2193
        %v2544 = vunpack.c.l.b16 %v2194
        %v2545 = vunpack.c.h.b16 %v2194
        %v2546 = vunpack.c.l.b16 %v2195
        %v2547 = vunpack.c.h.b16 %v2195
        %v2548 = vunpack.c.l.b16 %v2196
        %v2549 = vunpack.c.h.b16 %v2196
        %v2550 = vunpack.c.l.b16 %v2197
        %v2551 = vunpack.c.h.b16 %v2197
        %v2552 = vunpack.c.l.b16 %v2198
        %v2553 = vunpack.c.h.b16 %v2198
        %v2554 = vunpack.c.l.b16 %v2199
        %v2555 = vunpack.c.h.b16 %v2199
        %v2556 = vunpack.c.l.b16 %v2200
        %v2557 = vunpack.c.h.b16 %v2200
        %v2558 = vunpack.c.l.b16 %v2201
        %v2559 = vunpack.c.h.b16 %v2201
        %v2560 = vunpack.c.l.b16 %v2202
        %v2561 = vunpack.c.h.b16 %v2202
        %v2562 = vunpack.c.l.b16 %v2203
        %v2563 = vunpack.c.h.b16 %v2203
        %v2564 = vunpack.c.l.b16 %v2204
        %v2565 = vunpack.c.h.b16 %v2204
        %v2566 = vunpack.c.l.b16 %v2205
        %v2567 = vunpack.c.h.b16 %v2205
        %v2568 = vunpack.c.l.b16 %v2206
        %v2569 = vunpack.c.h.b16 %v2206
        %v2570 = vunpack.c.l.b16 %v2207
        %v2571 = vunpack.c.h.b16 %v2207
        %v2572 = vunpack.c.l.b16 %v2208
        %v2573 = vunpack.c.h.b16 %v2208
        %v2574 = vunpack.c.l.b16 %v2209
        %v2575 = vunpack.c.h.b16 %v2209
        %v2576 = vunpack.c.l.b16 %v2210
        %v2577 = vunpack.c.h.b16 %v2210
        %v2578 = vunpack.c.l.b16 %v2211
        %v2579 = vunpack.c.h.b16 %v2211
        %v2580 = vunpack.c.l.b16 %v2212
        %v2581 = vunpack.c.h.b16 %v2212
        %v2582 = vunpack.c.l.b16 %v2213
        %v2583 = vunpack.c.h.b16 %v2213
        %v2584 = vunpack.c.l.b16 %v2214
        %v2585 = vunpack.c.h.b16 %v2214
        %v2586 = vunpack.c.l.b16 %v2215
        %v2587 = vunpack.c.h.b16 %v2215
        %v2588 = vunpack.c.l.b16 %v2216
        %v2589 = vunpack.c.h.b16 %v2216
        %v2590 = vunpack.c.l.b16 %v2217
        %v2591 = vunpack.c.h.b16 %v2217
        %v2592 = vunpack.c.l.b16 %v2218
        %v2593 = vunpack.c.h.b16 %v2218
        %v2594 = vunpack.c.l.b16 %v2219
        %v2595 = vunpack.c.h.b16 %v2219
        %v2596 = vunpack.c.l.b16 %v2220
        %v2597 = vunpack.c.h.b16 %v2220
        %v2598 = vunpack.c.l.b16 %v2221
        %v2599 = vunpack.c.h.b16 %v2221
        %v2600 = vunpack.c.l.b16 %v2222
        %v2601 = vunpack.c.h.b16 %v2222
        %v2602 = vunpack.c.l.b16 %v2223
        %v2603 = vunpack.c.h.b16 %v2223
        %v2604 = vunpack.c.l.b16 %v2224
        %v2605 = vunpack.c.h.b16 %v2224
        %v2606 = vunpack.c.l.b16 %v2225
        %v2607 = vunpack.c.h.b16 %v2225
        %v2608 = vunpack.c.l.b16 %v2226
        %v2609 = vunpack.c.h.b16 %v2226
        %v2610 = vunpack.c.l.b16 %v2227
        %v2611 = vunpack.c.h.b16 %v2227
        %v2612 = vunpack.c.l.b16 %v2228
        %v2613 = vunpack.c.h.b16 %v2228
        %v2614 = vunpack.c.l.b16 %v2229
        %v2615 = vunpack.c.h.b16 %v2229
        %v2616 = vunpack.c.l.b16 %v2230
        %v2617 = vunpack.c.h.b16 %v2230
        %v2618 = vunpack.c.l.b16 %v2231
        %v2619 = vunpack.c.h.b16 %v2231
        %v2620 = vunpack.c.l.b16 %v2232
        %v2621 = vunpack.c.h.b16 %v2232
        %v2622 = vunpack.c.l.b16 %v2233
        %v2623 = vunpack.c.h.b16 %v2233
        %v2624 = vunpack.c.l.b16 %v2234
        %v2625 = vunpack.c.h.b16 %v2234
        %v2626 = vunpack.c.l.b16 %v2235
        %v2627 = vunpack.c.h.b16 %v2235
        %v2628 = vunpack.c.l.b16 %v2236
        %v2629 = vunpack.c.h.b16 %v2236
        %v2630 = vunpack.c.l.b16 %v2237
        %v2631 = vunpack.c.h.b16 %v2237
        %v2632 = vunpack.c.l.b16 %v2238
        %v2633 = vunpack.c.h.b16 %v2238
        %v2634 = vunpack.c.l.b16 %v2239
        %v2635 = vunpack.c.h.b16 %v2239
        %v2636 = vunpack.c.l.b16 %v2240
        %v2637 = vunpack.c.h.b16 %v2240
        %v2638 = vunpack.c.l.b16 %v2241
        %v2639 = vunpack.c.h.b16 %v2241
        %v2640 = vunpack.c.l.b16 %v2242
        %v2641 = vunpack.c.h.b16 %v2242
        %v2642 = vunpack.c.l.b16 %v2243
        %v2643 = vunpack.c.h.b16 %v2243
        %v2644 = vunpack.c.l.b16 %v2244
        %v2645 = vunpack.c.h.b16 %v2244
        %v2646 = vunpack.c.l.b16 %v2245
        %v2647 = vunpack.c.h.b16 %v2245
        %v2648 = vunpack.c.l.b16 %v2246
        %v2649 = vunpack.c.h.b16 %v2246
        %v2650 = vunpack.c.l.b16 %v2247
        %v2651 = vunpack.c.h.b16 %v2247
        %v2652 = vunpack.c.l.b16 %v2248
        %v2653 = vunpack.c.h.b16 %v2248
        %v2654 = vunpack.c.l.b16 %v2249
        %v2655 = vunpack.c.h.b16 %v2249
        %v2656 = vunpack.c.l.b16 %v2250
        %v2657 = vunpack.c.h.b16 %v2250
        %v2658 = vunpack.c.l.b16 %v2251
        %v2659 = vunpack.c.h.b16 %v2251
        %v2660 = vunpack.c.l.b16 %v2252
        %v2661 = vunpack.c.h.b16 %v2252
        %v2662 = vpack.c.b16 %v2472, %v2470
        %v2663 = vpack.c.b16 %v2473, %v2471
        %v2664 = vpack.c.b16 %v2476, %v2474
        %v2665 = vpack.c.b16 %v2477, %v2475
        %v2666 = vpack.c.b16 %v2480, %v2478
        %v2667 = vpack.c.b16 %v2481, %v2479
        %v2668 = vpack.c.b16 %v2484, %v2482
        %v2669 = vpack.c.b16 %v2485, %v2483
        %v2670 = vpack.c.b16 %v2488, %v2486
        %v2671 = vpack.c.b16 %v2489, %v2487
        %v2672 = vpack.c.b16 %v2492, %v2490
        %v2673 = vpack.c.b16 %v2493, %v2491
        %v2674 = vpack.c.b16 %v2496, %v2494
        %v2675 = vpack.c.b16 %v2497, %v2495
        %v2676 = vpack.c.b16 %v2500, %v2498
        %v2677 = vpack.c.b16 %v2501, %v2499
        %v2678 = vpack.c.b16 %v2504, %v2502
        %v2679 = vpack.c.b16 %v2505, %v2503
        %v2680 = vpack.c.b16 %v2508, %v2506
        %v2681 = vpack.c.b16 %v2509, %v2507
        %v2682 = vpack.c.b16 %v2512, %v2510
        %v2683 = vpack.c.b16 %v2513, %v2511
        %v2684 = vpack.c.b16 %v2516, %v2514
        %v2685 = vpack.c.b16 %v2517, %v2515
        %v2686 = vpack.c.b16 %v2520, %v2518
        %v2687 = vpack.c.b16 %v2521, %v2519
        %v2688 = vpack.c.b16 %v2524, %v2522
        %v2689 = vpack.c.b16 %v2525, %v2523
        %v2690 = vpack.c.b16 %v2528, %v2526
        %v2691 = vpack.c.b16 %v2529, %v2527
        %v2692 = vpack.c.b16 %v2532, %v2530
        %v2693 = vpack.c.b16 %v2533, %v2531
        %v2694 = vpack.c.b16 %v2536, %v2534
        %v2695 = vpack.c.b16 %v2537, %v2535
        %v2696 = vpack.c.b16 %v2540, %v2538
        %v2697 = vpack.c.b16 %v2541, %v2539
        %v2698 = vpack.c.b16 %v2544, %v2542
        %v2699 = vpack.c.b16 %v2545, %v2543
        %v2700 = vpack.c.b16 %v2548, %v2546
        %v2701 = vpack.c.b16 %v2549, %v2547
        %v2702 = vpack.c.b16 %v2552, %v2550
        %v2703 = vpack.c.b16 %v2553, %v2551
        %v2704 = vpack.c.b16 %v2556, %v2554
        %v2705 = vpack.c.b16 %v2557, %v2555
        %v2706 = vpack.c.b16 %v2560, %v2558
        %v2707 = vpack.c.b16 %v2561, %v2559
        %v2708 = vpack.c.b16 %v2564, %v2562
        %v2709 = vpack.c.b16 %v2565, %v2563
        %v2710 = vpack.c.b16 %v2568, %v2566
        %v2711 = vpack.c.b16 %v2569, %v2567
        %v2712 = vpack.c.b16 %v2572, %v2570
        %v2713 = vpack.c.b16 %v2573, %v2571
        %v2714 = vpack.c.b16 %v2576, %v2574
        %v2715 = vpack.c.b16 %v2577, %v2575
        %v2716 = vpack.c.b16 %v2580, %v2578
        %v2717 = vpack.c.b16 %v2581, %v2579
        %v2718 = vpack.c.b16 %v2584, %v2582
        %v2719 = vpack.c.b16 %v2585, %v2583
        %v2720 = vpack.c.b16 %v2588, %v2586
        %v2721 = vpack.c.b16 %v2589, %v2587
        %v2722 = vpack.c.b16 %v2592, %v2590
        %v2723 = vpack.c.b16 %v2593, %v2591
        %v2724 = vpack.c.b16 %v2596, %v2594
        %v2725 = vpack.c.b16 %v2597, %v2595
        %v2726 = vpack.c.b16 %v2600, %v2598
        %v2727 = vpack.c.b16 %v2601, %v2599
        %v2728 = vpack.c.b16 %v2604, %v2602
        %v2729 = vpack.c.b16 %v2605, %v2603
        %v2730 = vpack.c.b16 %v2608, %v2606
        %v2731 = vpack.c.b16 %v2609, %v2607
        %v2732 = vpack.c.b16 %v2612, %v2610
        %v2733 = vpack.c.b16 %v2613, %v2611
        %v2734 = vpack.c.b16 %v2616, %v2614
        %v2735 = vpack.c.b16 %v2617, %v2615
        %v2736 = vpack.c.b16 %v2620, %v2618
        %v2737 = vpack.c.b16 %v2621, %v2619
        %v2738 = vpack.c.b16 %v2624, %v2622
        %v2739 = vpack.c.b16 %v2625, %v2623
        %v2740 = vpack.c.b16 %v2628, %v2626
        %v2741 = vpack.c.b16 %v2629, %v2627
        %v2742 = vpack.c.b16 %v2632, %v2630
        %v2743 = vpack.c.b16 %v2633, %v2631
        %v2744 = vpack.c.b16 %v2636, %v2634
        %v2745 = vpack.c.b16 %v2637, %v2635
        %v2746 = vpack.c.b16 %v2640, %v2638
        %v2747 = vpack.c.b16 %v2641, %v2639
        %v2748 = vpack.c.b16 %v2644, %v2642
        %v2749 = vpack.c.b16 %v2645, %v2643
        %v2750 = vpack.c.b16 %v2648, %v2646
        %v2751 = vpack.c.b16 %v2649, %v2647
        %v2752 = vpack.c.b16 %v2652, %v2650
        %v2753 = vpack.c.b16 %v2653, %v2651
        %v2754 = vpack.c.b16 %v2656, %v2654
        %v2755 = vpack.c.b16 %v2657, %v2655
        %v2756 = vpack.c.b16 %v2660, %v2658
        %v2757 = vpack.c.b16 %v2661, %v2659
        %2854 = vmatprep.subr.bf16.mxu0 %v2677
        %2855 = vmatpush1.bf16.msra.mxu0 %v2676
        %2856 = vmatprep.subr.bf16.mxu0 %v2675
        %2857 = vmatpush1.bf16.msra.mxu0 %v2674
        %2858 = vmatprep.subr.bf16.mxu0 %v2673
        %2859 = vmatpush1.bf16.msra.mxu0 %v2672
        %2860 = vmatprep.subr.bf16.mxu0 %v2671
        %2861 = vmatpush1.bf16.msra.mxu0 %v2670
        %2862 = vmatprep.subr.bf16.mxu0 %v2669
        %2863 = vmatpush1.bf16.msra.mxu0 %v2668
        %2864 = vmatprep.subr.bf16.mxu0 %v2667
        %2865 = vmatpush1.bf16.msra.mxu0 %v2666
        %2866 = vmatprep.subr.bf16.mxu0 %v2665
        %2867 = vmatpush1.bf16.msra.mxu0 %v2664
        %2868 = vmatprep.subr.bf16.mxu0 %v2663
        %2869 = vmatpush1.bf16.msra.mxu0 %v2662
        %2870 = vmatprep.subr.bf16.mxu0 %v2693
        %2871 = vmatpush2.bf16.msra.mxu0 %v2692
        %2872 = vmatprep.subr.bf16.mxu0 %v2691
        %2873 = vmatpush2.bf16.msra.mxu0 %v2690
        %2874 = vmatprep.subr.bf16.mxu0 %v2689
        %2875 = vmatpush2.bf16.msra.mxu0 %v2688
        %2876 = vmatprep.subr.bf16.mxu0 %v2687
        %2877 = vmatpush2.bf16.msra.mxu0 %v2686
        %2878 = vmatprep.subr.bf16.mxu0 %v2685
        %2879 = vmatpush2.bf16.msra.mxu0 %v2684
        %2880 = vmatprep.subr.bf16.mxu0 %v2683
        %2881 = vmatpush2.bf16.msra.mxu0 %v2682
        %2882 = vmatprep.subr.bf16.mxu0 %v2681
        %2883 = vmatpush2.bf16.msra.mxu0 %v2680
        %2884 = vmatprep.subr.bf16.mxu0 %v2679
        %2885 = vmatpush2.bf16.msra.mxu0 %v2678
        %2886 = vmatprep.mubr.bf16.mxu0 %v2299
        %2887 = vmatmul.mubr.bf16.gmra.mxu0 %v2282
        %v2888 = vpop.f32.mrf.mxu0
        %v2889 = vadd.f32 %v2259, %v2888
        %v2890 = vpop.f32.mrf.mxu0
        %v2891 = vadd.f32 %v2263, %v2890
        %v2892 = vpop.f32.mrf.mxu0
        %v2893 = vadd.f32 %v2259, %v2892
        %v2894 = vpop.f32.mrf.mxu0
        %v2895 = vadd.f32 %v2263, %v2894
        %2896 = vdwg.mxu0
        %2897 = vmatprep.subr.bf16.mxu0 %v2709
        %2898 = vmatpush1.bf16.msra.mxu0 %v2708
        %2899 = vmatprep.subr.bf16.mxu0 %v2707
        %2900 = vmatpush1.bf16.msra.mxu0 %v2706
        %2901 = vmatprep.subr.bf16.mxu0 %v2705
        %2902 = vmatpush1.bf16.msra.mxu0 %v2704
        %2903 = vmatprep.subr.bf16.mxu0 %v2703
        %2904 = vmatpush1.bf16.msra.mxu0 %v2702
        %2905 = vmatprep.subr.bf16.mxu0 %v2701
        %2906 = vmatpush1.bf16.msra.mxu0 %v2700
        %2907 = vmatprep.subr.bf16.mxu0 %v2699
        %2908 = vmatpush1.bf16.msra.mxu0 %v2698
        %2909 = vmatprep.subr.bf16.mxu0 %v2697
        %2910 = vmatpush1.bf16.msra.mxu0 %v2696
        %2911 = vmatprep.subr.bf16.mxu0 %v2695
        %2912 = vmatpush1.bf16.msra.mxu0 %v2694
        %2913 = vmatprep.subr.bf16.mxu0 %v2725
        %2914 = vmatpush2.bf16.msra.mxu0 %v2724
        %2915 = vmatprep.subr.bf16.mxu0 %v2723
        %2916 = vmatpush2.bf16.msra.mxu0 %v2722
        %2917 = vmatprep.subr.bf16.mxu0 %v2721
        %2918 = vmatpush2.bf16.msra.mxu0 %v2720
        %2919 = vmatprep.subr.bf16.mxu0 %v2719
        %2920 = vmatpush2.bf16.msra.mxu0 %v2718
        %2921 = vmatprep.subr.bf16.mxu0 %v2717
        %2922 = vmatpush2.bf16.msra.mxu0 %v2716
        %2923 = vmatprep.subr.bf16.mxu0 %v2715
        %2924 = vmatpush2.bf16.msra.mxu0 %v2714
        %2925 = vmatprep.subr.bf16.mxu0 %v2713
        %2926 = vmatpush2.bf16.msra.mxu0 %v2712
        %2927 = vmatprep.subr.bf16.mxu0 %v2711
        %2928 = vmatpush2.bf16.msra.mxu0 %v2710
        %2929 = vmatprep.mubr.bf16.mxu0 %v2333
        %2930 = vmatmul.mubr.bf16.gmra.mxu0 %v2316
        %v2931 = vpop.f32.mrf.mxu0
        %v2932 = vadd.f32 %v2889, %v2931
        %v2933 = vpop.f32.mrf.mxu0
        %v2934 = vadd.f32 %v2891, %v2933
        %v2935 = vpop.f32.mrf.mxu0
        %v2936 = vadd.f32 %v2893, %v2935
        %v2937 = vpop.f32.mrf.mxu0
        %v2938 = vadd.f32 %v2895, %v2937
        %2939 = vdwg.mxu0
        %2940 = vmatprep.subr.bf16.mxu0 %v2741
        %2941 = vmatpush1.bf16.msra.mxu0 %v2740
        %2942 = vmatprep.subr.bf16.mxu0 %v2739
        %2943 = vmatpush1.bf16.msra.mxu0 %v2738
        %2944 = vmatprep.subr.bf16.mxu0 %v2737
        %2945 = vmatpush1.bf16.msra.mxu0 %v2736
        %2946 = vmatprep.subr.bf16.mxu0 %v2735
        %2947 = vmatpush1.bf16.msra.mxu0 %v2734
        %2948 = vmatprep.subr.bf16.mxu0 %v2733
        %2949 = vmatpush1.bf16.msra.mxu0 %v2732
        %2950 = vmatprep.subr.bf16.mxu0 %v2731
        %2951 = vmatpush1.bf16.msra.mxu0 %v2730
        %2952 = vmatprep.subr.bf16.mxu0 %v2729
        %2953 = vmatpush1.bf16.msra.mxu0 %v2728
        %2954 = vmatprep.subr.bf16.mxu0 %v2727
        %2955 = vmatpush1.bf16.msra.mxu0 %v2726
        %2956 = vmatprep.subr.bf16.mxu0 %v2757
        %2957 = vmatpush2.bf16.msra.mxu0 %v2756
        %2958 = vmatprep.subr.bf16.mxu0 %v2755
        %2959 = vmatpush2.bf16.msra.mxu0 %v2754
        %2960 = vmatprep.subr.bf16.mxu0 %v2753
        %2961 = vmatpush2.bf16.msra.mxu0 %v2752
        %2962 = vmatprep.subr.bf16.mxu0 %v2751
        %2963 = vmatpush2.bf16.msra.mxu0 %v2750
        %2964 = vmatprep.subr.bf16.mxu0 %v2749
        %2965 = vmatpush2.bf16.msra.mxu0 %v2748
        %2966 = vmatprep.subr.bf16.mxu0 %v2747
        %2967 = vmatpush2.bf16.msra.mxu0 %v2746
        %2968 = vmatprep.subr.bf16.mxu0 %v2745
        %2969 = vmatpush2.bf16.msra.mxu0 %v2744
        %2970 = vmatprep.subr.bf16.mxu0 %v2743
        %2971 = vmatpush2.bf16.msra.mxu0 %v2742
        %2972 = vmatprep.mubr.bf16.mxu0 %v2367
        %2973 = vmatmul.mubr.bf16.gmra.mxu0 %v2350
        %v2974 = vpop.f32.mrf.mxu0
        %v2975 = vadd.f32 %v2932, %v2974
        %v2976 = vpop.f32.mrf.mxu0
        %v2977 = vadd.f32 %v2934, %v2976
        %v2978 = vpop.f32.mrf.mxu0
        %v2979 = vadd.f32 %v2936, %v2978
        %v2980 = vpop.f32.mrf.mxu0
        %v2981 = vadd.f32 %v2938, %v2980
        %2982 = vdwg.mxu0
        %s2983 = sld [smem:[#allocation10 + $0x2]]
        %vm2984 = vcmp.ge.f32.partialorder %v2975, 0.0
        %vm2985 = vcmp.ge.f32.partialorder %v2977, 0.0
        %vm2986 = vcmp.ge.f32.partialorder %v2979, 0.0
        %vm2987 = vcmp.ge.f32.partialorder %v2981, 0.0
        %v2988 = vstv %s2983
        %v2989 = vmul.f32 %v2988, %v2975
        %v2990 = vmul.f32 %v2988, %v2977
        %v2991 = vmul.f32 %v2988, %v2979
        %v2992 = vmul.f32 %v2988, %v2981
        %v2993 = vsel %vm2984, %v2975, %v2989
        %v2994 = vsel %vm2985, %v2977, %v2990
        %v2995 = vsel %vm2986, %v2979, %v2991
        %v2996 = vsel %vm2987, %v2981, %v2992
        %v2997 = vadd.f32 %v1175, %v2993
        %v2998 = vadd.f32 %v1176, %v2994
        %v2999 = vadd.f32 %v1177, %v2995
        %v3000 = vadd.f32 %v1178, %v2996
        %3001 = vst [vmem:[#allocation2 + $0x10] sm:$0xff] %v2997
        %3002 = vst [vmem:[#allocation2 + $0x18] sm:$0xff] %v2998
        %3003 = vst [vmem:[#allocation2 + $0x20] sm:$0xff] %v2999
        %3004 = vst [vmem:[#allocation2 + $0x28] sm:$0xff] %v3000
        %v3005 = vld [vmem:[#allocation2] sm:$0x80]
        %v3006 = vld [vmem:[#allocation2 + $0x8] sm:$0x80]
        %v3007 = vld [vmem:[#allocation2 + $0x10] sm:$0xff]
        %v3008 = vld [vmem:[#allocation2 + $0x18] sm:$0xff]
        %v3009 = vld [vmem:[#allocation2 + $0x20] sm:$0x7f]
        %v3010 = vld [vmem:[#allocation2 + $0x28] sm:$0x7f]
        %v3011 = vld [vmem:[#allocation2 + $0x20] sm:$0xff]
        %v3012 = vld [vmem:[#allocation2 + $0x28] sm:$0xff]
        %v3013 = vld [vmem:[#allocation2 + $0x10] sm:$0xfe]
        %v3014 = vld [vmem:[#allocation2 + $0x18] sm:$0xfe]
        %v3015 = vld [vmem:[#allocation2 + $0x20] sm:$0xff]
        %v3016 = vld [vmem:[#allocation2 + $0x28] sm:$0xff]
        %v3017 = vld [vmem:[#allocation2 + $0x30] sm:$0x1]
        %v3018 = vld [vmem:[#allocation2 + $0x38] sm:$0x1]
        %v3023 = vrot.slane %v3007, 1
        %v3024 = vrot.slane %v3008, 1
        %v3025 = vrot.slane %v3011, 1
        %v3026 = vsel %vm291, %v3023, %v3025
        %v3027 = vrot.slane %v3012, 1
        %v3028 = vsel %vm291, %v3024, %v3027
        %v3041 = vrot.slane %v3013, 2
        %v3042 = vrot.slane %v3014, 2
        %v3043 = vrot.slane %v3015, 2
        %v3044 = vsel %vm310, %v3041, %v3043
        %v3045 = vrot.slane %v3016, 2
        %v3046 = vsel %vm310, %v3042, %v3045
        %v3047 = vrot.slane %v3017, 2
        %v3048 = vsel %vm310, %v3043, %v3047
        %v3049 = vrot.slane %v3018, 2
        %v3050 = vsel %vm310, %v3045, %v3049
        %v3057 = vpack.c.bf16 %v3007, %v3005
        %v3058 = vpack.c.bf16 %v3008, %v3006
        %v3059 = vpack.c.bf16 %v3026, %v3023
        %v3060 = vpack.c.bf16 %v3028, %v3024
        %v3061 = vpack.c.bf16 %v3044, %v3041
        %v3062 = vpack.c.bf16 %v3046, %v3042
        %v3063 = vpack.c.bf16 %v3009, %v3009
        %v3064 = vpack.c.bf16 %v3010, %v3010
        %v3065 = vpack.c.bf16 %v3025, %v3025
        %v3066 = vpack.c.bf16 %v3027, %v3027
        %v3067 = vpack.c.bf16 %v3048, %v3048
        %v3068 = vpack.c.bf16 %v3050, %v3050
        %s3069 = scalar_lea.vmem [#allocation7], 2304
        %v3070 = vld [vmem:[%s3069] sm:$0xff]
        %v3071 = vld [vmem:[%s3069 + $0x8] sm:$0xff]
        %v3072 = vld [vmem:[%s3069 + $0x10] sm:$0xff]
        %v3073 = vld [vmem:[%s3069 + $0x18] sm:$0xff]
        %v3074 = vld [vmem:[%s3069 + $0x20] sm:$0xff]
        %v3075 = vld [vmem:[%s3069 + $0x28] sm:$0xff]
        %v3076 = vld [vmem:[%s3069 + $0x30] sm:$0xff]
        %v3077 = vld [vmem:[%s3069 + $0x38] sm:$0xff]
        %v3078 = vld [vmem:[%s3069 + $0x40] sm:$0xff]
        %v3079 = vld [vmem:[%s3069 + $0x48] sm:$0xff]
        %v3080 = vld [vmem:[%s3069 + $0x50] sm:$0xff]
        %v3081 = vld [vmem:[%s3069 + $0x58] sm:$0xff]
        %v3082 = vld [vmem:[%s3069 + $0x60] sm:$0xff]
        %v3083 = vld [vmem:[%s3069 + $0x68] sm:$0xff]
        %v3084 = vld [vmem:[%s3069 + $0x70] sm:$0xff]
        %v3085 = vld [vmem:[%s3069 + $0x78] sm:$0xff]
        %v3086 = vld [vmem:[%s3069 + $0x80] sm:$0xff]
        %v3087 = vld [vmem:[%s3069 + $0x88] sm:$0xff]
        %v3088 = vld [vmem:[%s3069 + $0x90] sm:$0xff]
        %v3089 = vld [vmem:[%s3069 + $0x98] sm:$0xff]
        %v3090 = vld [vmem:[%s3069 + $0xa0] sm:$0xff]
        %v3091 = vld [vmem:[%s3069 + $0xa8] sm:$0xff]
        %v3092 = vld [vmem:[%s3069 + $0xb0] sm:$0xff]
        %v3093 = vld [vmem:[%s3069 + $0xb8] sm:$0xff]
        %v3094 = vld [vmem:[%s3069 + $0xc0] sm:$0xff]
        %v3095 = vld [vmem:[%s3069 + $0xc8] sm:$0xff]
        %v3096 = vld [vmem:[%s3069 + $0xd0] sm:$0xff]
        %v3097 = vld [vmem:[%s3069 + $0xd8] sm:$0xff]
        %v3098 = vld [vmem:[%s3069 + $0xe0] sm:$0xff]
        %v3099 = vld [vmem:[%s3069 + $0xe8] sm:$0xff]
        %v3100 = vld [vmem:[%s3069 + $0xf0] sm:$0xff]
        %v3101 = vld [vmem:[%s3069 + $0xf8] sm:$0xff]
        %v3102 = vld [vmem:[%s3069 + $0x100] sm:$0xff]
        %v3103 = vld [vmem:[%s3069 + $0x108] sm:$0xff]
        %v3104 = vld [vmem:[%s3069 + $0x110] sm:$0xff]
        %v3105 = vld [vmem:[%s3069 + $0x118] sm:$0xff]
        %v3106 = vld [vmem:[%s3069 + $0x120] sm:$0xff]
        %v3107 = vld [vmem:[%s3069 + $0x128] sm:$0xff]
        %v3108 = vld [vmem:[%s3069 + $0x130] sm:$0xff]
        %v3109 = vld [vmem:[%s3069 + $0x138] sm:$0xff]
        %v3110 = vld [vmem:[%s3069 + $0x140] sm:$0xff]
        %v3111 = vld [vmem:[%s3069 + $0x148] sm:$0xff]
        %v3112 = vld [vmem:[%s3069 + $0x150] sm:$0xff]
        %v3113 = vld [vmem:[%s3069 + $0x158] sm:$0xff]
        %v3114 = vld [vmem:[%s3069 + $0x160] sm:$0xff]
        %v3115 = vld [vmem:[%s3069 + $0x168] sm:$0xff]
        %v3116 = vld [vmem:[%s3069 + $0x170] sm:$0xff]
        %v3117 = vld [vmem:[%s3069 + $0x178] sm:$0xff]
        %v3118 = vld [vmem:[%s3069 + $0x180] sm:$0xff]
        %v3119 = vld [vmem:[%s3069 + $0x188] sm:$0xff]
        %v3120 = vld [vmem:[%s3069 + $0x190] sm:$0xff]
        %v3121 = vld [vmem:[%s3069 + $0x198] sm:$0xff]
        %v3122 = vld [vmem:[%s3069 + $0x1a0] sm:$0xff]
        %v3123 = vld [vmem:[%s3069 + $0x1a8] sm:$0xff]
        %v3124 = vld [vmem:[%s3069 + $0x1b0] sm:$0xff]
        %v3125 = vld [vmem:[%s3069 + $0x1b8] sm:$0xff]
        %v3126 = vld [vmem:[%s3069 + $0x1c0] sm:$0xff]
        %v3127 = vld [vmem:[%s3069 + $0x1c8] sm:$0xff]
        %v3128 = vld [vmem:[%s3069 + $0x1d0] sm:$0xff]
        %v3129 = vld [vmem:[%s3069 + $0x1d8] sm:$0xff]
        %v3130 = vld [vmem:[%s3069 + $0x1e0] sm:$0xff]
        %v3131 = vld [vmem:[%s3069 + $0x1e8] sm:$0xff]
        %v3132 = vld [vmem:[%s3069 + $0x1f0] sm:$0xff]
        %v3133 = vld [vmem:[%s3069 + $0x1f8] sm:$0xff]
        %v3134 = vld [vmem:[%s3069 + $0x200] sm:$0xff]
        %v3135 = vld [vmem:[%s3069 + $0x208] sm:$0xff]
        %v3136 = vld [vmem:[%s3069 + $0x210] sm:$0xff]
        %v3137 = vld [vmem:[%s3069 + $0x218] sm:$0xff]
        %v3138 = vld [vmem:[%s3069 + $0x220] sm:$0xff]
        %v3139 = vld [vmem:[%s3069 + $0x228] sm:$0xff]
        %v3140 = vld [vmem:[%s3069 + $0x230] sm:$0xff]
        %v3141 = vld [vmem:[%s3069 + $0x238] sm:$0xff]
        %v3142 = vld [vmem:[%s3069 + $0x240] sm:$0xff]
        %v3143 = vld [vmem:[%s3069 + $0x248] sm:$0xff]
        %v3144 = vld [vmem:[%s3069 + $0x250] sm:$0xff]
        %v3145 = vld [vmem:[%s3069 + $0x258] sm:$0xff]
        %v3146 = vld [vmem:[%s3069 + $0x260] sm:$0xff]
        %v3147 = vld [vmem:[%s3069 + $0x268] sm:$0xff]
        %v3148 = vld [vmem:[%s3069 + $0x270] sm:$0xff]
        %v3149 = vld [vmem:[%s3069 + $0x278] sm:$0xff]
        %v3150 = vld [vmem:[%s3069 + $0x280] sm:$0xff]
        %v3151 = vld [vmem:[%s3069 + $0x288] sm:$0xff]
        %v3152 = vld [vmem:[%s3069 + $0x290] sm:$0xff]
        %v3153 = vld [vmem:[%s3069 + $0x298] sm:$0xff]
        %v3154 = vld [vmem:[%s3069 + $0x2a0] sm:$0xff]
        %v3155 = vld [vmem:[%s3069 + $0x2a8] sm:$0xff]
        %v3156 = vld [vmem:[%s3069 + $0x2b0] sm:$0xff]
        %v3157 = vld [vmem:[%s3069 + $0x2b8] sm:$0xff]
        %v3158 = vld [vmem:[%s3069 + $0x2c0] sm:$0xff]
        %v3159 = vld [vmem:[%s3069 + $0x2c8] sm:$0xff]
        %v3160 = vld [vmem:[%s3069 + $0x2d0] sm:$0xff]
        %v3161 = vld [vmem:[%s3069 + $0x2d8] sm:$0xff]
        %v3162 = vld [vmem:[%s3069 + $0x2e0] sm:$0xff]
        %v3163 = vld [vmem:[%s3069 + $0x2e8] sm:$0xff]
        %v3164 = vld [vmem:[%s3069 + $0x2f0] sm:$0xff]
        %v3165 = vld [vmem:[%s3069 + $0x2f8] sm:$0xff]
        %s3166 = scalar_lea.vmem [#allocation9], 6
        %v3167 = vld [vmem:[%s3166] sm:$0x3]
        %v3169 = vlaneseq
        %v3170 = vshrl.u32 %v3169, 7
        %v3171 = vsub.s32 0, %v3170
        %v3172 = vrot.slane %v3167, %v3171
        %v3173 = vlaneseq
        %v3174 = vshrl.u32 %v3173, 7
        %v3175 = vsub.s32 1, %v3174
        %v3176 = vrot.slane %v3167, %v3175
        %v3180 = vshrl.u32 %v3057, 16
        %v3182 = vrot.slane %v3180, 3
        %v3183 = vshll.u32 %v3057, 16
        %v3185 = vrot.slane %v3183, 4
        %v3186 = vor.u32 %v3182, %v3185
        %v3188 = vshrl.u32 %v3063, 16
        %v3190 = vrot.slane %v3188, 3
        %v3191 = vshll.u32 %v3063, 16
        %v3193 = vrot.slane %v3191, 4
        %v3194 = vor.u32 %v3190, %v3193
        %v3195 = vsel %vm447, %v3186, %v3194
        %v3197 = vshrl.u32 %v3058, 16
        %v3199 = vrot.slane %v3197, 3
        %v3200 = vshll.u32 %v3058, 16
        %v3202 = vrot.slane %v3200, 4
        %v3203 = vor.u32 %v3199, %v3202
        %v3205 = vshrl.u32 %v3064, 16
        %v3207 = vrot.slane %v3205, 3
        %v3208 = vshll.u32 %v3064, 16
        %v3210 = vrot.slane %v3208, 4
        %v3211 = vor.u32 %v3207, %v3210
        %v3212 = vsel %vm447, %v3203, %v3211
        %v3214 = vshrl.u32 %v3059, 16
        %v3216 = vrot.slane %v3214, 3
        %v3217 = vshll.u32 %v3059, 16
        %v3219 = vrot.slane %v3217, 4
        %v3220 = vor.u32 %v3216, %v3219
        %v3222 = vshrl.u32 %v3065, 16
        %v3224 = vrot.slane %v3222, 3
        %v3225 = vshll.u32 %v3065, 16
        %v3227 = vrot.slane %v3225, 4
        %v3228 = vor.u32 %v3224, %v3227
        %v3229 = vsel %vm447, %v3220, %v3228
        %v3231 = vshrl.u32 %v3060, 16
        %v3233 = vrot.slane %v3231, 3
        %v3234 = vshll.u32 %v3060, 16
        %v3236 = vrot.slane %v3234, 4
        %v3237 = vor.u32 %v3233, %v3236
        %v3239 = vshrl.u32 %v3066, 16
        %v3241 = vrot.slane %v3239, 3
        %v3242 = vshll.u32 %v3066, 16
        %v3244 = vrot.slane %v3242, 4
        %v3245 = vor.u32 %v3241, %v3244
        %v3246 = vsel %vm447, %v3237, %v3245
        %v3248 = vshrl.u32 %v3061, 16
        %v3250 = vrot.slane %v3248, 3
        %v3251 = vshll.u32 %v3061, 16
        %v3253 = vrot.slane %v3251, 4
        %v3254 = vor.u32 %v3250, %v3253
        %v3256 = vshrl.u32 %v3067, 16
        %v3258 = vrot.slane %v3256, 3
        %v3259 = vshll.u32 %v3067, 16
        %v3261 = vrot.slane %v3259, 4
        %v3262 = vor.u32 %v3258, %v3261
        %v3263 = vsel %vm447, %v3254, %v3262
        %v3265 = vshrl.u32 %v3062, 16
        %v3267 = vrot.slane %v3265, 3
        %v3268 = vshll.u32 %v3062, 16
        %v3270 = vrot.slane %v3268, 4
        %v3271 = vor.u32 %v3267, %v3270
        %v3273 = vshrl.u32 %v3068, 16
        %v3275 = vrot.slane %v3273, 3
        %v3276 = vshll.u32 %v3068, 16
        %v3278 = vrot.slane %v3276, 4
        %v3279 = vor.u32 %v3275, %v3278
        %v3280 = vsel %vm447, %v3271, %v3279
        %v3383 = vunpack.c.l.b16 %v3070
        %v3384 = vunpack.c.h.b16 %v3070
        %v3385 = vunpack.c.l.b16 %v3071
        %v3386 = vunpack.c.h.b16 %v3071
        %v3387 = vunpack.c.l.b16 %v3072
        %v3388 = vunpack.c.h.b16 %v3072
        %v3389 = vunpack.c.l.b16 %v3073
        %v3390 = vunpack.c.h.b16 %v3073
        %v3391 = vunpack.c.l.b16 %v3074
        %v3392 = vunpack.c.h.b16 %v3074
        %v3393 = vunpack.c.l.b16 %v3075
        %v3394 = vunpack.c.h.b16 %v3075
        %v3395 = vunpack.c.l.b16 %v3076
        %v3396 = vunpack.c.h.b16 %v3076
        %v3397 = vunpack.c.l.b16 %v3077
        %v3398 = vunpack.c.h.b16 %v3077
        %v3399 = vunpack.c.l.b16 %v3078
        %v3400 = vunpack.c.h.b16 %v3078
        %v3401 = vunpack.c.l.b16 %v3079
        %v3402 = vunpack.c.h.b16 %v3079
        %v3403 = vunpack.c.l.b16 %v3080
        %v3404 = vunpack.c.h.b16 %v3080
        %v3405 = vunpack.c.l.b16 %v3081
        %v3406 = vunpack.c.h.b16 %v3081
        %v3407 = vunpack.c.l.b16 %v3082
        %v3408 = vunpack.c.h.b16 %v3082
        %v3409 = vunpack.c.l.b16 %v3083
        %v3410 = vunpack.c.h.b16 %v3083
        %v3411 = vunpack.c.l.b16 %v3084
        %v3412 = vunpack.c.h.b16 %v3084
        %v3413 = vunpack.c.l.b16 %v3085
        %v3414 = vunpack.c.h.b16 %v3085
        %v3415 = vunpack.c.l.b16 %v3086
        %v3416 = vunpack.c.h.b16 %v3086
        %v3417 = vunpack.c.l.b16 %v3087
        %v3418 = vunpack.c.h.b16 %v3087
        %v3419 = vunpack.c.l.b16 %v3088
        %v3420 = vunpack.c.h.b16 %v3088
        %v3421 = vunpack.c.l.b16 %v3089
        %v3422 = vunpack.c.h.b16 %v3089
        %v3423 = vunpack.c.l.b16 %v3090
        %v3424 = vunpack.c.h.b16 %v3090
        %v3425 = vunpack.c.l.b16 %v3091
        %v3426 = vunpack.c.h.b16 %v3091
        %v3427 = vunpack.c.l.b16 %v3092
        %v3428 = vunpack.c.h.b16 %v3092
        %v3429 = vunpack.c.l.b16 %v3093
        %v3430 = vunpack.c.h.b16 %v3093
        %v3431 = vunpack.c.l.b16 %v3094
        %v3432 = vunpack.c.h.b16 %v3094
        %v3433 = vunpack.c.l.b16 %v3095
        %v3434 = vunpack.c.h.b16 %v3095
        %v3435 = vunpack.c.l.b16 %v3096
        %v3436 = vunpack.c.h.b16 %v3096
        %v3437 = vunpack.c.l.b16 %v3097
        %v3438 = vunpack.c.h.b16 %v3097
        %v3439 = vunpack.c.l.b16 %v3098
        %v3440 = vunpack.c.h.b16 %v3098
        %v3441 = vunpack.c.l.b16 %v3099
        %v3442 = vunpack.c.h.b16 %v3099
        %v3443 = vunpack.c.l.b16 %v3100
        %v3444 = vunpack.c.h.b16 %v3100
        %v3445 = vunpack.c.l.b16 %v3101
        %v3446 = vunpack.c.h.b16 %v3101
        %v3447 = vunpack.c.l.b16 %v3102
        %v3448 = vunpack.c.h.b16 %v3102
        %v3449 = vunpack.c.l.b16 %v3103
        %v3450 = vunpack.c.h.b16 %v3103
        %v3451 = vunpack.c.l.b16 %v3104
        %v3452 = vunpack.c.h.b16 %v3104
        %v3453 = vunpack.c.l.b16 %v3105
        %v3454 = vunpack.c.h.b16 %v3105
        %v3455 = vunpack.c.l.b16 %v3106
        %v3456 = vunpack.c.h.b16 %v3106
        %v3457 = vunpack.c.l.b16 %v3107
        %v3458 = vunpack.c.h.b16 %v3107
        %v3459 = vunpack.c.l.b16 %v3108
        %v3460 = vunpack.c.h.b16 %v3108
        %v3461 = vunpack.c.l.b16 %v3109
        %v3462 = vunpack.c.h.b16 %v3109
        %v3463 = vunpack.c.l.b16 %v3110
        %v3464 = vunpack.c.h.b16 %v3110
        %v3465 = vunpack.c.l.b16 %v3111
        %v3466 = vunpack.c.h.b16 %v3111
        %v3467 = vunpack.c.l.b16 %v3112
        %v3468 = vunpack.c.h.b16 %v3112
        %v3469 = vunpack.c.l.b16 %v3113
        %v3470 = vunpack.c.h.b16 %v3113
        %v3471 = vunpack.c.l.b16 %v3114
        %v3472 = vunpack.c.h.b16 %v3114
        %v3473 = vunpack.c.l.b16 %v3115
        %v3474 = vunpack.c.h.b16 %v3115
        %v3475 = vunpack.c.l.b16 %v3116
        %v3476 = vunpack.c.h.b16 %v3116
        %v3477 = vunpack.c.l.b16 %v3117
        %v3478 = vunpack.c.h.b16 %v3117
        %v3479 = vunpack.c.l.b16 %v3118
        %v3480 = vunpack.c.h.b16 %v3118
        %v3481 = vunpack.c.l.b16 %v3119
        %v3482 = vunpack.c.h.b16 %v3119
        %v3483 = vunpack.c.l.b16 %v3120
        %v3484 = vunpack.c.h.b16 %v3120
        %v3485 = vunpack.c.l.b16 %v3121
        %v3486 = vunpack.c.h.b16 %v3121
        %v3487 = vunpack.c.l.b16 %v3122
        %v3488 = vunpack.c.h.b16 %v3122
        %v3489 = vunpack.c.l.b16 %v3123
        %v3490 = vunpack.c.h.b16 %v3123
        %v3491 = vunpack.c.l.b16 %v3124
        %v3492 = vunpack.c.h.b16 %v3124
        %v3493 = vunpack.c.l.b16 %v3125
        %v3494 = vunpack.c.h.b16 %v3125
        %v3495 = vunpack.c.l.b16 %v3126
        %v3496 = vunpack.c.h.b16 %v3126
        %v3497 = vunpack.c.l.b16 %v3127
        %v3498 = vunpack.c.h.b16 %v3127
        %v3499 = vunpack.c.l.b16 %v3128
        %v3500 = vunpack.c.h.b16 %v3128
        %v3501 = vunpack.c.l.b16 %v3129
        %v3502 = vunpack.c.h.b16 %v3129
        %v3503 = vunpack.c.l.b16 %v3130
        %v3504 = vunpack.c.h.b16 %v3130
        %v3505 = vunpack.c.l.b16 %v3131
        %v3506 = vunpack.c.h.b16 %v3131
        %v3507 = vunpack.c.l.b16 %v3132
        %v3508 = vunpack.c.h.b16 %v3132
        %v3509 = vunpack.c.l.b16 %v3133
        %v3510 = vunpack.c.h.b16 %v3133
        %v3511 = vunpack.c.l.b16 %v3134
        %v3512 = vunpack.c.h.b16 %v3134
        %v3513 = vunpack.c.l.b16 %v3135
        %v3514 = vunpack.c.h.b16 %v3135
        %v3515 = vunpack.c.l.b16 %v3136
        %v3516 = vunpack.c.h.b16 %v3136
        %v3517 = vunpack.c.l.b16 %v3137
        %v3518 = vunpack.c.h.b16 %v3137
        %v3519 = vunpack.c.l.b16 %v3138
        %v3520 = vunpack.c.h.b16 %v3138
        %v3521 = vunpack.c.l.b16 %v3139
        %v3522 = vunpack.c.h.b16 %v3139
        %v3523 = vunpack.c.l.b16 %v3140
        %v3524 = vunpack.c.h.b16 %v3140
        %v3525 = vunpack.c.l.b16 %v3141
        %v3526 = vunpack.c.h.b16 %v3141
        %v3527 = vunpack.c.l.b16 %v3142
        %v3528 = vunpack.c.h.b16 %v3142
        %v3529 = vunpack.c.l.b16 %v3143
        %v3530 = vunpack.c.h.b16 %v3143
        %v3531 = vunpack.c.l.b16 %v3144
        %v3532 = vunpack.c.h.b16 %v3144
        %v3533 = vunpack.c.l.b16 %v3145
        %v3534 = vunpack.c.h.b16 %v3145
        %v3535 = vunpack.c.l.b16 %v3146
        %v3536 = vunpack.c.h.b16 %v3146
        %v3537 = vunpack.c.l.b16 %v3147
        %v3538 = vunpack.c.h.b16 %v3147
        %v3539 = vunpack.c.l.b16 %v3148
        %v3540 = vunpack.c.h.b16 %v3148
        %v3541 = vunpack.c.l.b16 %v3149
        %v3542 = vunpack.c.h.b16 %v3149
        %v3543 = vunpack.c.l.b16 %v3150
        %v3544 = vunpack.c.h.b16 %v3150
        %v3545 = vunpack.c.l.b16 %v3151
        %v3546 = vunpack.c.h.b16 %v3151
        %v3547 = vunpack.c.l.b16 %v3152
        %v3548 = vunpack.c.h.b16 %v3152
        %v3549 = vunpack.c.l.b16 %v3153
        %v3550 = vunpack.c.h.b16 %v3153
        %v3551 = vunpack.c.l.b16 %v3154
        %v3552 = vunpack.c.h.b16 %v3154
        %v3553 = vunpack.c.l.b16 %v3155
        %v3554 = vunpack.c.h.b16 %v3155
        %v3555 = vunpack.c.l.b16 %v3156
        %v3556 = vunpack.c.h.b16 %v3156
        %v3557 = vunpack.c.l.b16 %v3157
        %v3558 = vunpack.c.h.b16 %v3157
        %v3559 = vunpack.c.l.b16 %v3158
        %v3560 = vunpack.c.h.b16 %v3158
        %v3561 = vunpack.c.l.b16 %v3159
        %v3562 = vunpack.c.h.b16 %v3159
        %v3563 = vunpack.c.l.b16 %v3160
        %v3564 = vunpack.c.h.b16 %v3160
        %v3565 = vunpack.c.l.b16 %v3161
        %v3566 = vunpack.c.h.b16 %v3161
        %v3567 = vunpack.c.l.b16 %v3162
        %v3568 = vunpack.c.h.b16 %v3162
        %v3569 = vunpack.c.l.b16 %v3163
        %v3570 = vunpack.c.h.b16 %v3163
        %v3571 = vunpack.c.l.b16 %v3164
        %v3572 = vunpack.c.h.b16 %v3164
        %v3573 = vunpack.c.l.b16 %v3165
        %v3574 = vunpack.c.h.b16 %v3165
        %v3575 = vpack.c.b16 %v3385, %v3383
        %v3576 = vpack.c.b16 %v3386, %v3384
        %v3577 = vpack.c.b16 %v3389, %v3387
        %v3578 = vpack.c.b16 %v3390, %v3388
        %v3579 = vpack.c.b16 %v3393, %v3391
        %v3580 = vpack.c.b16 %v3394, %v3392
        %v3581 = vpack.c.b16 %v3397, %v3395
        %v3582 = vpack.c.b16 %v3398, %v3396
        %v3583 = vpack.c.b16 %v3401, %v3399
        %v3584 = vpack.c.b16 %v3402, %v3400
        %v3585 = vpack.c.b16 %v3405, %v3403
        %v3586 = vpack.c.b16 %v3406, %v3404
        %v3587 = vpack.c.b16 %v3409, %v3407
        %v3588 = vpack.c.b16 %v3410, %v3408
        %v3589 = vpack.c.b16 %v3413, %v3411
        %v3590 = vpack.c.b16 %v3414, %v3412
        %v3591 = vpack.c.b16 %v3417, %v3415
        %v3592 = vpack.c.b16 %v3418, %v3416
        %v3593 = vpack.c.b16 %v3421, %v3419
        %v3594 = vpack.c.b16 %v3422, %v3420
        %v3595 = vpack.c.b16 %v3425, %v3423
        %v3596 = vpack.c.b16 %v3426, %v3424
        %v3597 = vpack.c.b16 %v3429, %v3427
        %v3598 = vpack.c.b16 %v3430, %v3428
        %v3599 = vpack.c.b16 %v3433, %v3431
        %v3600 = vpack.c.b16 %v3434, %v3432
        %v3601 = vpack.c.b16 %v3437, %v3435
        %v3602 = vpack.c.b16 %v3438, %v3436
        %v3603 = vpack.c.b16 %v3441, %v3439
        %v3604 = vpack.c.b16 %v3442, %v3440
        %v3605 = vpack.c.b16 %v3445, %v3443
        %v3606 = vpack.c.b16 %v3446, %v3444
        %v3607 = vpack.c.b16 %v3449, %v3447
        %v3608 = vpack.c.b16 %v3450, %v3448
        %v3609 = vpack.c.b16 %v3453, %v3451
        %v3610 = vpack.c.b16 %v3454, %v3452
        %v3611 = vpack.c.b16 %v3457, %v3455
        %v3612 = vpack.c.b16 %v3458, %v3456
        %v3613 = vpack.c.b16 %v3461, %v3459
        %v3614 = vpack.c.b16 %v3462, %v3460
        %v3615 = vpack.c.b16 %v3465, %v3463
        %v3616 = vpack.c.b16 %v3466, %v3464
        %v3617 = vpack.c.b16 %v3469, %v3467
        %v3618 = vpack.c.b16 %v3470, %v3468
        %v3619 = vpack.c.b16 %v3473, %v3471
        %v3620 = vpack.c.b16 %v3474, %v3472
        %v3621 = vpack.c.b16 %v3477, %v3475
        %v3622 = vpack.c.b16 %v3478, %v3476
        %v3623 = vpack.c.b16 %v3481, %v3479
        %v3624 = vpack.c.b16 %v3482, %v3480
        %v3625 = vpack.c.b16 %v3485, %v3483
        %v3626 = vpack.c.b16 %v3486, %v3484
        %v3627 = vpack.c.b16 %v3489, %v3487
        %v3628 = vpack.c.b16 %v3490, %v3488
        %v3629 = vpack.c.b16 %v3493, %v3491
        %v3630 = vpack.c.b16 %v3494, %v3492
        %v3631 = vpack.c.b16 %v3497, %v3495
        %v3632 = vpack.c.b16 %v3498, %v3496
        %v3633 = vpack.c.b16 %v3501, %v3499
        %v3634 = vpack.c.b16 %v3502, %v3500
        %v3635 = vpack.c.b16 %v3505, %v3503
        %v3636 = vpack.c.b16 %v3506, %v3504
        %v3637 = vpack.c.b16 %v3509, %v3507
        %v3638 = vpack.c.b16 %v3510, %v3508
        %v3639 = vpack.c.b16 %v3513, %v3511
        %v3640 = vpack.c.b16 %v3514, %v3512
        %v3641 = vpack.c.b16 %v3517, %v3515
        %v3642 = vpack.c.b16 %v3518, %v3516
        %v3643 = vpack.c.b16 %v3521, %v3519
        %v3644 = vpack.c.b16 %v3522, %v3520
        %v3645 = vpack.c.b16 %v3525, %v3523
        %v3646 = vpack.c.b16 %v3526, %v3524
        %v3647 = vpack.c.b16 %v3529, %v3527
        %v3648 = vpack.c.b16 %v3530, %v3528
        %v3649 = vpack.c.b16 %v3533, %v3531
        %v3650 = vpack.c.b16 %v3534, %v3532
        %v3651 = vpack.c.b16 %v3537, %v3535
        %v3652 = vpack.c.b16 %v3538, %v3536
        %v3653 = vpack.c.b16 %v3541, %v3539
        %v3654 = vpack.c.b16 %v3542, %v3540
        %v3655 = vpack.c.b16 %v3545, %v3543
        %v3656 = vpack.c.b16 %v3546, %v3544
        %v3657 = vpack.c.b16 %v3549, %v3547
        %v3658 = vpack.c.b16 %v3550, %v3548
        %v3659 = vpack.c.b16 %v3553, %v3551
        %v3660 = vpack.c.b16 %v3554, %v3552
        %v3661 = vpack.c.b16 %v3557, %v3555
        %v3662 = vpack.c.b16 %v3558, %v3556
        %v3663 = vpack.c.b16 %v3561, %v3559
        %v3664 = vpack.c.b16 %v3562, %v3560
        %v3665 = vpack.c.b16 %v3565, %v3563
        %v3666 = vpack.c.b16 %v3566, %v3564
        %v3667 = vpack.c.b16 %v3569, %v3567
        %v3668 = vpack.c.b16 %v3570, %v3568
        %v3669 = vpack.c.b16 %v3573, %v3571
        %v3670 = vpack.c.b16 %v3574, %v3572
        %3767 = vmatprep.subr.bf16.mxu0 %v3590
        %3768 = vmatpush1.bf16.msra.mxu0 %v3589
        %3769 = vmatprep.subr.bf16.mxu0 %v3588
        %3770 = vmatpush1.bf16.msra.mxu0 %v3587
        %3771 = vmatprep.subr.bf16.mxu0 %v3586
        %3772 = vmatpush1.bf16.msra.mxu0 %v3585
        %3773 = vmatprep.subr.bf16.mxu0 %v3584
        %3774 = vmatpush1.bf16.msra.mxu0 %v3583
        %3775 = vmatprep.subr.bf16.mxu0 %v3582
        %3776 = vmatpush1.bf16.msra.mxu0 %v3581
        %3777 = vmatprep.subr.bf16.mxu0 %v3580
        %3778 = vmatpush1.bf16.msra.mxu0 %v3579
        %3779 = vmatprep.subr.bf16.mxu0 %v3578
        %3780 = vmatpush1.bf16.msra.mxu0 %v3577
        %3781 = vmatprep.subr.bf16.mxu0 %v3576
        %3782 = vmatpush1.bf16.msra.mxu0 %v3575
        %3783 = vmatprep.subr.bf16.mxu0 %v3606
        %3784 = vmatpush2.bf16.msra.mxu0 %v3605
        %3785 = vmatprep.subr.bf16.mxu0 %v3604
        %3786 = vmatpush2.bf16.msra.mxu0 %v3603
        %3787 = vmatprep.subr.bf16.mxu0 %v3602
        %3788 = vmatpush2.bf16.msra.mxu0 %v3601
        %3789 = vmatprep.subr.bf16.mxu0 %v3600
        %3790 = vmatpush2.bf16.msra.mxu0 %v3599
        %3791 = vmatprep.subr.bf16.mxu0 %v3598
        %3792 = vmatpush2.bf16.msra.mxu0 %v3597
        %3793 = vmatprep.subr.bf16.mxu0 %v3596
        %3794 = vmatpush2.bf16.msra.mxu0 %v3595
        %3795 = vmatprep.subr.bf16.mxu0 %v3594
        %3796 = vmatpush2.bf16.msra.mxu0 %v3593
        %3797 = vmatprep.subr.bf16.mxu0 %v3592
        %3798 = vmatpush2.bf16.msra.mxu0 %v3591
        %3799 = vmatprep.mubr.bf16.mxu0 %v3212
        %3800 = vmatmul.mubr.bf16.gmra.mxu0 %v3195
        %v3801 = vpop.f32.mrf.mxu0
        %v3802 = vadd.f32 %v3172, %v3801
        %v3803 = vpop.f32.mrf.mxu0
        %v3804 = vadd.f32 %v3176, %v3803
        %v3805 = vpop.f32.mrf.mxu0
        %v3806 = vadd.f32 %v3172, %v3805
        %v3807 = vpop.f32.mrf.mxu0
        %v3808 = vadd.f32 %v3176, %v3807
        %3809 = vdwg.mxu0
        %3810 = vmatprep.subr.bf16.mxu0 %v3622
        %3811 = vmatpush1.bf16.msra.mxu0 %v3621
        %3812 = vmatprep.subr.bf16.mxu0 %v3620
        %3813 = vmatpush1.bf16.msra.mxu0 %v3619
        %3814 = vmatprep.subr.bf16.mxu0 %v3618
        %3815 = vmatpush1.bf16.msra.mxu0 %v3617
        %3816 = vmatprep.subr.bf16.mxu0 %v3616
        %3817 = vmatpush1.bf16.msra.mxu0 %v3615
        %3818 = vmatprep.subr.bf16.mxu0 %v3614
        %3819 = vmatpush1.bf16.msra.mxu0 %v3613
        %3820 = vmatprep.subr.bf16.mxu0 %v3612
        %3821 = vmatpush1.bf16.msra.mxu0 %v3611
        %3822 = vmatprep.subr.bf16.mxu0 %v3610
        %3823 = vmatpush1.bf16.msra.mxu0 %v3609
        %3824 = vmatprep.subr.bf16.mxu0 %v3608
        %3825 = vmatpush1.bf16.msra.mxu0 %v3607
        %3826 = vmatprep.subr.bf16.mxu0 %v3638
        %3827 = vmatpush2.bf16.msra.mxu0 %v3637
        %3828 = vmatprep.subr.bf16.mxu0 %v3636
        %3829 = vmatpush2.bf16.msra.mxu0 %v3635
        %3830 = vmatprep.subr.bf16.mxu0 %v3634
        %3831 = vmatpush2.bf16.msra.mxu0 %v3633
        %3832 = vmatprep.subr.bf16.mxu0 %v3632
        %3833 = vmatpush2.bf16.msra.mxu0 %v3631
        %3834 = vmatprep.subr.bf16.mxu0 %v3630
        %3835 = vmatpush2.bf16.msra.mxu0 %v3629
        %3836 = vmatprep.subr.bf16.mxu0 %v3628
        %3837 = vmatpush2.bf16.msra.mxu0 %v3627
        %3838 = vmatprep.subr.bf16.mxu0 %v3626
        %3839 = vmatpush2.bf16.msra.mxu0 %v3625
        %3840 = vmatprep.subr.bf16.mxu0 %v3624
        %3841 = vmatpush2.bf16.msra.mxu0 %v3623
        %3842 = vmatprep.mubr.bf16.mxu0 %v3246
        %3843 = vmatmul.mubr.bf16.gmra.mxu0 %v3229
        %v3844 = vpop.f32.mrf.mxu0
        %v3845 = vadd.f32 %v3802, %v3844
        %v3846 = vpop.f32.mrf.mxu0
        %v3847 = vadd.f32 %v3804, %v3846
        %v3848 = vpop.f32.mrf.mxu0
        %v3849 = vadd.f32 %v3806, %v3848
        %v3850 = vpop.f32.mrf.mxu0
        %v3851 = vadd.f32 %v3808, %v3850
        %3852 = vdwg.mxu0
        %3853 = vmatprep.subr.bf16.mxu0 %v3654
        %3854 = vmatpush1.bf16.msra.mxu0 %v3653
        %3855 = vmatprep.subr.bf16.mxu0 %v3652
        %3856 = vmatpush1.bf16.msra.mxu0 %v3651
        %3857 = vmatprep.subr.bf16.mxu0 %v3650
        %3858 = vmatpush1.bf16.msra.mxu0 %v3649
        %3859 = vmatprep.subr.bf16.mxu0 %v3648
        %3860 = vmatpush1.bf16.msra.mxu0 %v3647
        %3861 = vmatprep.subr.bf16.mxu0 %v3646
        %3862 = vmatpush1.bf16.msra.mxu0 %v3645
        %3863 = vmatprep.subr.bf16.mxu0 %v3644
        %3864 = vmatpush1.bf16.msra.mxu0 %v3643
        %3865 = vmatprep.subr.bf16.mxu0 %v3642
        %3866 = vmatpush1.bf16.msra.mxu0 %v3641
        %3867 = vmatprep.subr.bf16.mxu0 %v3640
        %3868 = vmatpush1.bf16.msra.mxu0 %v3639
        %3869 = vmatprep.subr.bf16.mxu0 %v3670
        %3870 = vmatpush2.bf16.msra.mxu0 %v3669
        %3871 = vmatprep.subr.bf16.mxu0 %v3668
        %3872 = vmatpush2.bf16.msra.mxu0 %v3667
        %3873 = vmatprep.subr.bf16.mxu0 %v3666
        %3874 = vmatpush2.bf16.msra.mxu0 %v3665
        %3875 = vmatprep.subr.bf16.mxu0 %v3664
        %3876 = vmatpush2.bf16.msra.mxu0 %v3663
        %3877 = vmatprep.subr.bf16.mxu0 %v3662
        %3878 = vmatpush2.bf16.msra.mxu0 %v3661
        %3879 = vmatprep.subr.bf16.mxu0 %v3660
        %3880 = vmatpush2.bf16.msra.mxu0 %v3659
        %3881 = vmatprep.subr.bf16.mxu0 %v3658
        %3882 = vmatpush2.bf16.msra.mxu0 %v3657
        %3883 = vmatprep.subr.bf16.mxu0 %v3656
        %3884 = vmatpush2.bf16.msra.mxu0 %v3655
        %3885 = vmatprep.mubr.bf16.mxu0 %v3280
        %3886 = vmatmul.mubr.bf16.gmra.mxu0 %v3263
        %v3887 = vpop.f32.mrf.mxu0
        %v3888 = vadd.f32 %v3845, %v3887
        %v3889 = vpop.f32.mrf.mxu0
        %v3890 = vadd.f32 %v3847, %v3889
        %v3891 = vpop.f32.mrf.mxu0
        %v3892 = vadd.f32 %v3849, %v3891
        %v3893 = vpop.f32.mrf.mxu0
        %v3894 = vadd.f32 %v3851, %v3893
        %3895 = vdwg.mxu0
        %s3896 = sld [smem:[#allocation10 + $0x3]]
        %vm3897 = vcmp.ge.f32.partialorder %v3888, 0.0
        %vm3898 = vcmp.ge.f32.partialorder %v3890, 0.0
        %vm3899 = vcmp.ge.f32.partialorder %v3892, 0.0
        %vm3900 = vcmp.ge.f32.partialorder %v3894, 0.0
        %v3901 = vstv %s3896
        %v3902 = vmul.f32 %v3901, %v3888
        %v3903 = vmul.f32 %v3901, %v3890
        %v3904 = vmul.f32 %v3901, %v3892
        %v3905 = vmul.f32 %v3901, %v3894
        %v3906 = vsel %vm3897, %v3888, %v3902
        %v3907 = vsel %vm3898, %v3890, %v3903
        %v3908 = vsel %vm3899, %v3892, %v3904
        %v3909 = vsel %vm3900, %v3894, %v3905
        %3910 = vst [vmem:[#allocation2 + $0x10] sm:$0xff] %v3906
        %3911 = vst [vmem:[#allocation2 + $0x18] sm:$0xff] %v3907
        %3912 = vst [vmem:[#allocation2 + $0x20] sm:$0xff] %v3908
        %3913 = vst [vmem:[#allocation2 + $0x28] sm:$0xff] %v3909
        %v3914 = vld [vmem:[#allocation2] sm:$0x80]
        %v3915 = vld [vmem:[#allocation2 + $0x8] sm:$0x80]
        %v3916 = vld [vmem:[#allocation2 + $0x10] sm:$0xff]
        %v3917 = vld [vmem:[#allocation2 + $0x18] sm:$0xff]
        %v3918 = vld [vmem:[#allocation2 + $0x20] sm:$0x7f]
        %v3919 = vld [vmem:[#allocation2 + $0x28] sm:$0x7f]
        %v3920 = vld [vmem:[#allocation2 + $0x20] sm:$0xff]
        %v3921 = vld [vmem:[#allocation2 + $0x28] sm:$0xff]
        %v3922 = vld [vmem:[#allocation2 + $0x10] sm:$0xfe]
        %v3923 = vld [vmem:[#allocation2 + $0x18] sm:$0xfe]
        %v3924 = vld [vmem:[#allocation2 + $0x20] sm:$0xff]
        %v3925 = vld [vmem:[#allocation2 + $0x28] sm:$0xff]
        %v3926 = vld [vmem:[#allocation2 + $0x30] sm:$0x1]
        %v3927 = vld [vmem:[#allocation2 + $0x38] sm:$0x1]
        %v3932 = vrot.slane %v3916, 1
        %v3933 = vrot.slane %v3917, 1
        %v3934 = vrot.slane %v3920, 1
        %v3935 = vsel %vm291, %v3932, %v3934
        %v3936 = vrot.slane %v3921, 1
        %v3937 = vsel %vm291, %v3933, %v3936
        %v3950 = vrot.slane %v3922, 2
        %v3951 = vrot.slane %v3923, 2
        %v3952 = vrot.slane %v3924, 2
        %v3953 = vsel %vm310, %v3950, %v3952
        %v3954 = vrot.slane %v3925, 2
        %v3955 = vsel %vm310, %v3951, %v3954
        %v3956 = vrot.slane %v3926, 2
        %v3957 = vsel %vm310, %v3952, %v3956
        %v3958 = vrot.slane %v3927, 2
        %v3959 = vsel %vm310, %v3954, %v3958
        %v3966 = vpack.c.bf16 %v3916, %v3914
        %v3967 = vpack.c.bf16 %v3917, %v3915
        %v3968 = vpack.c.bf16 %v3935, %v3932
        %v3969 = vpack.c.bf16 %v3937, %v3933
        %v3970 = vpack.c.bf16 %v3953, %v3950
        %v3971 = vpack.c.bf16 %v3955, %v3951
        %v3972 = vpack.c.bf16 %v3918, %v3918
        %v3973 = vpack.c.bf16 %v3919, %v3919
        %v3974 = vpack.c.bf16 %v3934, %v3934
        %v3975 = vpack.c.bf16 %v3936, %v3936
        %v3976 = vpack.c.bf16 %v3957, %v3957
        %v3977 = vpack.c.bf16 %v3959, %v3959
        %s3978 = scalar_lea.vmem [#allocation7], 3072
        %v3979 = vld [vmem:[%s3978] sm:$0xff]
        %v3980 = vld [vmem:[%s3978 + $0x8] sm:$0xff]
        %v3981 = vld [vmem:[%s3978 + $0x10] sm:$0xff]
        %v3982 = vld [vmem:[%s3978 + $0x18] sm:$0xff]
        %v3983 = vld [vmem:[%s3978 + $0x20] sm:$0xff]
        %v3984 = vld [vmem:[%s3978 + $0x28] sm:$0xff]
        %v3985 = vld [vmem:[%s3978 + $0x30] sm:$0xff]
        %v3986 = vld [vmem:[%s3978 + $0x38] sm:$0xff]
        %v3987 = vld [vmem:[%s3978 + $0x40] sm:$0xff]
        %v3988 = vld [vmem:[%s3978 + $0x48] sm:$0xff]
        %v3989 = vld [vmem:[%s3978 + $0x50] sm:$0xff]
        %v3990 = vld [vmem:[%s3978 + $0x58] sm:$0xff]
        %v3991 = vld [vmem:[%s3978 + $0x60] sm:$0xff]
        %v3992 = vld [vmem:[%s3978 + $0x68] sm:$0xff]
        %v3993 = vld [vmem:[%s3978 + $0x70] sm:$0xff]
        %v3994 = vld [vmem:[%s3978 + $0x78] sm:$0xff]
        %v3995 = vld [vmem:[%s3978 + $0x80] sm:$0xff]
        %v3996 = vld [vmem:[%s3978 + $0x88] sm:$0xff]
        %v3997 = vld [vmem:[%s3978 + $0x90] sm:$0xff]
        %v3998 = vld [vmem:[%s3978 + $0x98] sm:$0xff]
        %v3999 = vld [vmem:[%s3978 + $0xa0] sm:$0xff]
        %v4000 = vld [vmem:[%s3978 + $0xa8] sm:$0xff]
        %v4001 = vld [vmem:[%s3978 + $0xb0] sm:$0xff]
        %v4002 = vld [vmem:[%s3978 + $0xb8] sm:$0xff]
        %v4003 = vld [vmem:[%s3978 + $0xc0] sm:$0xff]
        %v4004 = vld [vmem:[%s3978 + $0xc8] sm:$0xff]
        %v4005 = vld [vmem:[%s3978 + $0xd0] sm:$0xff]
        %v4006 = vld [vmem:[%s3978 + $0xd8] sm:$0xff]
        %v4007 = vld [vmem:[%s3978 + $0xe0] sm:$0xff]
        %v4008 = vld [vmem:[%s3978 + $0xe8] sm:$0xff]
        %v4009 = vld [vmem:[%s3978 + $0xf0] sm:$0xff]
        %v4010 = vld [vmem:[%s3978 + $0xf8] sm:$0xff]
        %v4011 = vld [vmem:[%s3978 + $0x100] sm:$0xff]
        %v4012 = vld [vmem:[%s3978 + $0x108] sm:$0xff]
        %v4013 = vld [vmem:[%s3978 + $0x110] sm:$0xff]
        %v4014 = vld [vmem:[%s3978 + $0x118] sm:$0xff]
        %v4015 = vld [vmem:[%s3978 + $0x120] sm:$0xff]
        %v4016 = vld [vmem:[%s3978 + $0x128] sm:$0xff]
        %v4017 = vld [vmem:[%s3978 + $0x130] sm:$0xff]
        %v4018 = vld [vmem:[%s3978 + $0x138] sm:$0xff]
        %v4019 = vld [vmem:[%s3978 + $0x140] sm:$0xff]
        %v4020 = vld [vmem:[%s3978 + $0x148] sm:$0xff]
        %v4021 = vld [vmem:[%s3978 + $0x150] sm:$0xff]
        %v4022 = vld [vmem:[%s3978 + $0x158] sm:$0xff]
        %v4023 = vld [vmem:[%s3978 + $0x160] sm:$0xff]
        %v4024 = vld [vmem:[%s3978 + $0x168] sm:$0xff]
        %v4025 = vld [vmem:[%s3978 + $0x170] sm:$0xff]
        %v4026 = vld [vmem:[%s3978 + $0x178] sm:$0xff]
        %v4027 = vld [vmem:[%s3978 + $0x180] sm:$0xff]
        %v4028 = vld [vmem:[%s3978 + $0x188] sm:$0xff]
        %v4029 = vld [vmem:[%s3978 + $0x190] sm:$0xff]
        %v4030 = vld [vmem:[%s3978 + $0x198] sm:$0xff]
        %v4031 = vld [vmem:[%s3978 + $0x1a0] sm:$0xff]
        %v4032 = vld [vmem:[%s3978 + $0x1a8] sm:$0xff]
        %v4033 = vld [vmem:[%s3978 + $0x1b0] sm:$0xff]
        %v4034 = vld [vmem:[%s3978 + $0x1b8] sm:$0xff]
        %v4035 = vld [vmem:[%s3978 + $0x1c0] sm:$0xff]
        %v4036 = vld [vmem:[%s3978 + $0x1c8] sm:$0xff]
        %v4037 = vld [vmem:[%s3978 + $0x1d0] sm:$0xff]
        %v4038 = vld [vmem:[%s3978 + $0x1d8] sm:$0xff]
        %v4039 = vld [vmem:[%s3978 + $0x1e0] sm:$0xff]
        %v4040 = vld [vmem:[%s3978 + $0x1e8] sm:$0xff]
        %v4041 = vld [vmem:[%s3978 + $0x1f0] sm:$0xff]
        %v4042 = vld [vmem:[%s3978 + $0x1f8] sm:$0xff]
        %v4043 = vld [vmem:[%s3978 + $0x200] sm:$0xff]
        %v4044 = vld [vmem:[%s3978 + $0x208] sm:$0xff]
        %v4045 = vld [vmem:[%s3978 + $0x210] sm:$0xff]
        %v4046 = vld [vmem:[%s3978 + $0x218] sm:$0xff]
        %v4047 = vld [vmem:[%s3978 + $0x220] sm:$0xff]
        %v4048 = vld [vmem:[%s3978 + $0x228] sm:$0xff]
        %v4049 = vld [vmem:[%s3978 + $0x230] sm:$0xff]
        %v4050 = vld [vmem:[%s3978 + $0x238] sm:$0xff]
        %v4051 = vld [vmem:[%s3978 + $0x240] sm:$0xff]
        %v4052 = vld [vmem:[%s3978 + $0x248] sm:$0xff]
        %v4053 = vld [vmem:[%s3978 + $0x250] sm:$0xff]
        %v4054 = vld [vmem:[%s3978 + $0x258] sm:$0xff]
        %v4055 = vld [vmem:[%s3978 + $0x260] sm:$0xff]
        %v4056 = vld [vmem:[%s3978 + $0x268] sm:$0xff]
        %v4057 = vld [vmem:[%s3978 + $0x270] sm:$0xff]
        %v4058 = vld [vmem:[%s3978 + $0x278] sm:$0xff]
        %v4059 = vld [vmem:[%s3978 + $0x280] sm:$0xff]
        %v4060 = vld [vmem:[%s3978 + $0x288] sm:$0xff]
        %v4061 = vld [vmem:[%s3978 + $0x290] sm:$0xff]
        %v4062 = vld [vmem:[%s3978 + $0x298] sm:$0xff]
        %v4063 = vld [vmem:[%s3978 + $0x2a0] sm:$0xff]
        %v4064 = vld [vmem:[%s3978 + $0x2a8] sm:$0xff]
        %v4065 = vld [vmem:[%s3978 + $0x2b0] sm:$0xff]
        %v4066 = vld [vmem:[%s3978 + $0x2b8] sm:$0xff]
        %v4067 = vld [vmem:[%s3978 + $0x2c0] sm:$0xff]
        %v4068 = vld [vmem:[%s3978 + $0x2c8] sm:$0xff]
        %v4069 = vld [vmem:[%s3978 + $0x2d0] sm:$0xff]
        %v4070 = vld [vmem:[%s3978 + $0x2d8] sm:$0xff]
        %v4071 = vld [vmem:[%s3978 + $0x2e0] sm:$0xff]
        %v4072 = vld [vmem:[%s3978 + $0x2e8] sm:$0xff]
        %v4073 = vld [vmem:[%s3978 + $0x2f0] sm:$0xff]
        %v4074 = vld [vmem:[%s3978 + $0x2f8] sm:$0xff]
        %s4075 = scalar_lea.vmem [#allocation9], 8
        %v4076 = vld [vmem:[%s4075] sm:$0x3]
        %v4078 = vlaneseq
        %v4079 = vshrl.u32 %v4078, 7
        %v4080 = vsub.s32 0, %v4079
        %v4081 = vrot.slane %v4076, %v4080
        %v4082 = vlaneseq
        %v4083 = vshrl.u32 %v4082, 7
        %v4084 = vsub.s32 1, %v4083
        %v4085 = vrot.slane %v4076, %v4084
        %v4089 = vshrl.u32 %v3966, 16
        %v4091 = vrot.slane %v4089, 3
        %v4092 = vshll.u32 %v3966, 16
        %v4094 = vrot.slane %v4092, 4
        %v4095 = vor.u32 %v4091, %v4094
        %v4097 = vshrl.u32 %v3972, 16
        %v4099 = vrot.slane %v4097, 3
        %v4100 = vshll.u32 %v3972, 16
        %v4102 = vrot.slane %v4100, 4
        %v4103 = vor.u32 %v4099, %v4102
        %v4104 = vsel %vm447, %v4095, %v4103
        %v4106 = vshrl.u32 %v3967, 16
        %v4108 = vrot.slane %v4106, 3
        %v4109 = vshll.u32 %v3967, 16
        %v4111 = vrot.slane %v4109, 4
        %v4112 = vor.u32 %v4108, %v4111
        %v4114 = vshrl.u32 %v3973, 16
        %v4116 = vrot.slane %v4114, 3
        %v4117 = vshll.u32 %v3973, 16
        %v4119 = vrot.slane %v4117, 4
        %v4120 = vor.u32 %v4116, %v4119
        %v4121 = vsel %vm447, %v4112, %v4120
        %v4123 = vshrl.u32 %v3968, 16
        %v4125 = vrot.slane %v4123, 3
        %v4126 = vshll.u32 %v3968, 16
        %v4128 = vrot.slane %v4126, 4
        %v4129 = vor.u32 %v4125, %v4128
        %v4131 = vshrl.u32 %v3974, 16
        %v4133 = vrot.slane %v4131, 3
        %v4134 = vshll.u32 %v3974, 16
        %v4136 = vrot.slane %v4134, 4
        %v4137 = vor.u32 %v4133, %v4136
        %v4138 = vsel %vm447, %v4129, %v4137
        %v4140 = vshrl.u32 %v3969, 16
        %v4142 = vrot.slane %v4140, 3
        %v4143 = vshll.u32 %v3969, 16
        %v4145 = vrot.slane %v4143, 4
        %v4146 = vor.u32 %v4142, %v4145
        %v4148 = vshrl.u32 %v3975, 16
        %v4150 = vrot.slane %v4148, 3
        %v4151 = vshll.u32 %v3975, 16
        %v4153 = vrot.slane %v4151, 4
        %v4154 = vor.u32 %v4150, %v4153
        %v4155 = vsel %vm447, %v4146, %v4154
        %v4157 = vshrl.u32 %v3970, 16
        %v4159 = vrot.slane %v4157, 3
        %v4160 = vshll.u32 %v3970, 16
        %v4162 = vrot.slane %v4160, 4
        %v4163 = vor.u32 %v4159, %v4162
        %v4165 = vshrl.u32 %v3976, 16
        %v4167 = vrot.slane %v4165, 3
        %v4168 = vshll.u32 %v3976, 16
        %v4170 = vrot.slane %v4168, 4
        %v4171 = vor.u32 %v4167, %v4170
        %v4172 = vsel %vm447, %v4163, %v4171
        %v4174 = vshrl.u32 %v3971, 16
        %v4176 = vrot.slane %v4174, 3
        %v4177 = vshll.u32 %v3971, 16
        %v4179 = vrot.slane %v4177, 4
        %v4180 = vor.u32 %v4176, %v4179
        %v4182 = vshrl.u32 %v3977, 16
        %v4184 = vrot.slane %v4182, 3
        %v4185 = vshll.u32 %v3977, 16
        %v4187 = vrot.slane %v4185, 4
        %v4188 = vor.u32 %v4184, %v4187
        %v4189 = vsel %vm447, %v4180, %v4188
        %v4292 = vunpack.c.l.b16 %v3979
        %v4293 = vunpack.c.h.b16 %v3979
        %v4294 = vunpack.c.l.b16 %v3980
        %v4295 = vunpack.c.h.b16 %v3980
        %v4296 = vunpack.c.l.b16 %v3981
        %v4297 = vunpack.c.h.b16 %v3981
        %v4298 = vunpack.c.l.b16 %v3982
        %v4299 = vunpack.c.h.b16 %v3982
        %v4300 = vunpack.c.l.b16 %v3983
        %v4301 = vunpack.c.h.b16 %v3983
        %v4302 = vunpack.c.l.b16 %v3984
        %v4303 = vunpack.c.h.b16 %v3984
        %v4304 = vunpack.c.l.b16 %v3985
        %v4305 = vunpack.c.h.b16 %v3985
        %v4306 = vunpack.c.l.b16 %v3986
        %v4307 = vunpack.c.h.b16 %v3986
        %v4308 = vunpack.c.l.b16 %v3987
        %v4309 = vunpack.c.h.b16 %v3987
        %v4310 = vunpack.c.l.b16 %v3988
        %v4311 = vunpack.c.h.b16 %v3988
        %v4312 = vunpack.c.l.b16 %v3989
        %v4313 = vunpack.c.h.b16 %v3989
        %v4314 = vunpack.c.l.b16 %v3990
        %v4315 = vunpack.c.h.b16 %v3990
        %v4316 = vunpack.c.l.b16 %v3991
        %v4317 = vunpack.c.h.b16 %v3991
        %v4318 = vunpack.c.l.b16 %v3992
        %v4319 = vunpack.c.h.b16 %v3992
        %v4320 = vunpack.c.l.b16 %v3993
        %v4321 = vunpack.c.h.b16 %v3993
        %v4322 = vunpack.c.l.b16 %v3994
        %v4323 = vunpack.c.h.b16 %v3994
        %v4324 = vunpack.c.l.b16 %v3995
        %v4325 = vunpack.c.h.b16 %v3995
        %v4326 = vunpack.c.l.b16 %v3996
        %v4327 = vunpack.c.h.b16 %v3996
        %v4328 = vunpack.c.l.b16 %v3997
        %v4329 = vunpack.c.h.b16 %v3997
        %v4330 = vunpack.c.l.b16 %v3998
        %v4331 = vunpack.c.h.b16 %v3998
        %v4332 = vunpack.c.l.b16 %v3999
        %v4333 = vunpack.c.h.b16 %v3999
        %v4334 = vunpack.c.l.b16 %v4000
        %v4335 = vunpack.c.h.b16 %v4000
        %v4336 = vunpack.c.l.b16 %v4001
        %v4337 = vunpack.c.h.b16 %v4001
        %v4338 = vunpack.c.l.b16 %v4002
        %v4339 = vunpack.c.h.b16 %v4002
        %v4340 = vunpack.c.l.b16 %v4003
        %v4341 = vunpack.c.h.b16 %v4003
        %v4342 = vunpack.c.l.b16 %v4004
        %v4343 = vunpack.c.h.b16 %v4004
        %v4344 = vunpack.c.l.b16 %v4005
        %v4345 = vunpack.c.h.b16 %v4005
        %v4346 = vunpack.c.l.b16 %v4006
        %v4347 = vunpack.c.h.b16 %v4006
        %v4348 = vunpack.c.l.b16 %v4007
        %v4349 = vunpack.c.h.b16 %v4007
        %v4350 = vunpack.c.l.b16 %v4008
        %v4351 = vunpack.c.h.b16 %v4008
        %v4352 = vunpack.c.l.b16 %v4009
        %v4353 = vunpack.c.h.b16 %v4009
        %v4354 = vunpack.c.l.b16 %v4010
        %v4355 = vunpack.c.h.b16 %v4010
        %v4356 = vunpack.c.l.b16 %v4011
        %v4357 = vunpack.c.h.b16 %v4011
        %v4358 = vunpack.c.l.b16 %v4012
        %v4359 = vunpack.c.h.b16 %v4012
        %v4360 = vunpack.c.l.b16 %v4013
        %v4361 = vunpack.c.h.b16 %v4013
        %v4362 = vunpack.c.l.b16 %v4014
        %v4363 = vunpack.c.h.b16 %v4014
        %v4364 = vunpack.c.l.b16 %v4015
        %v4365 = vunpack.c.h.b16 %v4015
        %v4366 = vunpack.c.l.b16 %v4016
        %v4367 = vunpack.c.h.b16 %v4016
        %v4368 = vunpack.c.l.b16 %v4017
        %v4369 = vunpack.c.h.b16 %v4017
        %v4370 = vunpack.c.l.b16 %v4018
        %v4371 = vunpack.c.h.b16 %v4018
        %v4372 = vunpack.c.l.b16 %v4019
        %v4373 = vunpack.c.h.b16 %v4019
        %v4374 = vunpack.c.l.b16 %v4020
        %v4375 = vunpack.c.h.b16 %v4020
        %v4376 = vunpack.c.l.b16 %v4021
        %v4377 = vunpack.c.h.b16 %v4021
        %v4378 = vunpack.c.l.b16 %v4022
        %v4379 = vunpack.c.h.b16 %v4022
        %v4380 = vunpack.c.l.b16 %v4023
        %v4381 = vunpack.c.h.b16 %v4023
        %v4382 = vunpack.c.l.b16 %v4024
        %v4383 = vunpack.c.h.b16 %v4024
        %v4384 = vunpack.c.l.b16 %v4025
        %v4385 = vunpack.c.h.b16 %v4025
        %v4386 = vunpack.c.l.b16 %v4026
        %v4387 = vunpack.c.h.b16 %v4026
        %v4388 = vunpack.c.l.b16 %v4027
        %v4389 = vunpack.c.h.b16 %v4027
        %v4390 = vunpack.c.l.b16 %v4028
        %v4391 = vunpack.c.h.b16 %v4028
        %v4392 = vunpack.c.l.b16 %v4029
        %v4393 = vunpack.c.h.b16 %v4029
        %v4394 = vunpack.c.l.b16 %v4030
        %v4395 = vunpack.c.h.b16 %v4030
        %v4396 = vunpack.c.l.b16 %v4031
        %v4397 = vunpack.c.h.b16 %v4031
        %v4398 = vunpack.c.l.b16 %v4032
        %v4399 = vunpack.c.h.b16 %v4032
        %v4400 = vunpack.c.l.b16 %v4033
        %v4401 = vunpack.c.h.b16 %v4033
        %v4402 = vunpack.c.l.b16 %v4034
        %v4403 = vunpack.c.h.b16 %v4034
        %v4404 = vunpack.c.l.b16 %v4035
        %v4405 = vunpack.c.h.b16 %v4035
        %v4406 = vunpack.c.l.b16 %v4036
        %v4407 = vunpack.c.h.b16 %v4036
        %v4408 = vunpack.c.l.b16 %v4037
        %v4409 = vunpack.c.h.b16 %v4037
        %v4410 = vunpack.c.l.b16 %v4038
        %v4411 = vunpack.c.h.b16 %v4038
        %v4412 = vunpack.c.l.b16 %v4039
        %v4413 = vunpack.c.h.b16 %v4039
        %v4414 = vunpack.c.l.b16 %v4040
        %v4415 = vunpack.c.h.b16 %v4040
        %v4416 = vunpack.c.l.b16 %v4041
        %v4417 = vunpack.c.h.b16 %v4041
        %v4418 = vunpack.c.l.b16 %v4042
        %v4419 = vunpack.c.h.b16 %v4042
        %v4420 = vunpack.c.l.b16 %v4043
        %v4421 = vunpack.c.h.b16 %v4043
        %v4422 = vunpack.c.l.b16 %v4044
        %v4423 = vunpack.c.h.b16 %v4044
        %v4424 = vunpack.c.l.b16 %v4045
        %v4425 = vunpack.c.h.b16 %v4045
        %v4426 = vunpack.c.l.b16 %v4046
        %v4427 = vunpack.c.h.b16 %v4046
        %v4428 = vunpack.c.l.b16 %v4047
        %v4429 = vunpack.c.h.b16 %v4047
        %v4430 = vunpack.c.l.b16 %v4048
        %v4431 = vunpack.c.h.b16 %v4048
        %v4432 = vunpack.c.l.b16 %v4049
        %v4433 = vunpack.c.h.b16 %v4049
        %v4434 = vunpack.c.l.b16 %v4050
        %v4435 = vunpack.c.h.b16 %v4050
        %v4436 = vunpack.c.l.b16 %v4051
        %v4437 = vunpack.c.h.b16 %v4051
        %v4438 = vunpack.c.l.b16 %v4052
        %v4439 = vunpack.c.h.b16 %v4052
        %v4440 = vunpack.c.l.b16 %v4053
        %v4441 = vunpack.c.h.b16 %v4053
        %v4442 = vunpack.c.l.b16 %v4054
        %v4443 = vunpack.c.h.b16 %v4054
        %v4444 = vunpack.c.l.b16 %v4055
        %v4445 = vunpack.c.h.b16 %v4055
        %v4446 = vunpack.c.l.b16 %v4056
        %v4447 = vunpack.c.h.b16 %v4056
        %v4448 = vunpack.c.l.b16 %v4057
        %v4449 = vunpack.c.h.b16 %v4057
        %v4450 = vunpack.c.l.b16 %v4058
        %v4451 = vunpack.c.h.b16 %v4058
        %v4452 = vunpack.c.l.b16 %v4059
        %v4453 = vunpack.c.h.b16 %v4059
        %v4454 = vunpack.c.l.b16 %v4060
        %v4455 = vunpack.c.h.b16 %v4060
        %v4456 = vunpack.c.l.b16 %v4061
        %v4457 = vunpack.c.h.b16 %v4061
        %v4458 = vunpack.c.l.b16 %v4062
        %v4459 = vunpack.c.h.b16 %v4062
        %v4460 = vunpack.c.l.b16 %v4063
        %v4461 = vunpack.c.h.b16 %v4063
        %v4462 = vunpack.c.l.b16 %v4064
        %v4463 = vunpack.c.h.b16 %v4064
        %v4464 = vunpack.c.l.b16 %v4065
        %v4465 = vunpack.c.h.b16 %v4065
        %v4466 = vunpack.c.l.b16 %v4066
        %v4467 = vunpack.c.h.b16 %v4066
        %v4468 = vunpack.c.l.b16 %v4067
        %v4469 = vunpack.c.h.b16 %v4067
        %v4470 = vunpack.c.l.b16 %v4068
        %v4471 = vunpack.c.h.b16 %v4068
        %v4472 = vunpack.c.l.b16 %v4069
        %v4473 = vunpack.c.h.b16 %v4069
        %v4474 = vunpack.c.l.b16 %v4070
        %v4475 = vunpack.c.h.b16 %v4070
        %v4476 = vunpack.c.l.b16 %v4071
        %v4477 = vunpack.c.h.b16 %v4071
        %v4478 = vunpack.c.l.b16 %v4072
        %v4479 = vunpack.c.h.b16 %v4072
        %v4480 = vunpack.c.l.b16 %v4073
        %v4481 = vunpack.c.h.b16 %v4073
        %v4482 = vunpack.c.l.b16 %v4074
        %v4483 = vunpack.c.h.b16 %v4074
        %v4484 = vpack.c.b16 %v4294, %v4292
        %v4485 = vpack.c.b16 %v4295, %v4293
        %v4486 = vpack.c.b16 %v4298, %v4296
        %v4487 = vpack.c.b16 %v4299, %v4297
        %v4488 = vpack.c.b16 %v4302, %v4300
        %v4489 = vpack.c.b16 %v4303, %v4301
        %v4490 = vpack.c.b16 %v4306, %v4304
        %v4491 = vpack.c.b16 %v4307, %v4305
        %v4492 = vpack.c.b16 %v4310, %v4308
        %v4493 = vpack.c.b16 %v4311, %v4309
        %v4494 = vpack.c.b16 %v4314, %v4312
        %v4495 = vpack.c.b16 %v4315, %v4313
        %v4496 = vpack.c.b16 %v4318, %v4316
        %v4497 = vpack.c.b16 %v4319, %v4317
        %v4498 = vpack.c.b16 %v4322, %v4320
        %v4499 = vpack.c.b16 %v4323, %v4321
        %v4500 = vpack.c.b16 %v4326, %v4324
        %v4501 = vpack.c.b16 %v4327, %v4325
        %v4502 = vpack.c.b16 %v4330, %v4328
        %v4503 = vpack.c.b16 %v4331, %v4329
        %v4504 = vpack.c.b16 %v4334, %v4332
        %v4505 = vpack.c.b16 %v4335, %v4333
        %v4506 = vpack.c.b16 %v4338, %v4336
        %v4507 = vpack.c.b16 %v4339, %v4337
        %v4508 = vpack.c.b16 %v4342, %v4340
        %v4509 = vpack.c.b16 %v4343, %v4341
        %v4510 = vpack.c.b16 %v4346, %v4344
        %v4511 = vpack.c.b16 %v4347, %v4345
        %v4512 = vpack.c.b16 %v4350, %v4348
        %v4513 = vpack.c.b16 %v4351, %v4349
        %v4514 = vpack.c.b16 %v4354, %v4352
        %v4515 = vpack.c.b16 %v4355, %v4353
        %v4516 = vpack.c.b16 %v4358, %v4356
        %v4517 = vpack.c.b16 %v4359, %v4357
        %v4518 = vpack.c.b16 %v4362, %v4360
        %v4519 = vpack.c.b16 %v4363, %v4361
        %v4520 = vpack.c.b16 %v4366, %v4364
        %v4521 = vpack.c.b16 %v4367, %v4365
        %v4522 = vpack.c.b16 %v4370, %v4368
        %v4523 = vpack.c.b16 %v4371, %v4369
        %v4524 = vpack.c.b16 %v4374, %v4372
        %v4525 = vpack.c.b16 %v4375, %v4373
        %v4526 = vpack.c.b16 %v4378, %v4376
        %v4527 = vpack.c.b16 %v4379, %v4377
        %v4528 = vpack.c.b16 %v4382, %v4380
        %v4529 = vpack.c.b16 %v4383, %v4381
        %v4530 = vpack.c.b16 %v4386, %v4384
        %v4531 = vpack.c.b16 %v4387, %v4385
        %v4532 = vpack.c.b16 %v4390, %v4388
        %v4533 = vpack.c.b16 %v4391, %v4389
        %v4534 = vpack.c.b16 %v4394, %v4392
        %v4535 = vpack.c.b16 %v4395, %v4393
        %v4536 = vpack.c.b16 %v4398, %v4396
        %v4537 = vpack.c.b16 %v4399, %v4397
        %v4538 = vpack.c.b16 %v4402, %v4400
        %v4539 = vpack.c.b16 %v4403, %v4401
        %v4540 = vpack.c.b16 %v4406, %v4404
        %v4541 = vpack.c.b16 %v4407, %v4405
        %v4542 = vpack.c.b16 %v4410, %v4408
        %v4543 = vpack.c.b16 %v4411, %v4409
        %v4544 = vpack.c.b16 %v4414, %v4412
        %v4545 = vpack.c.b16 %v4415, %v4413
        %v4546 = vpack.c.b16 %v4418, %v4416
        %v4547 = vpack.c.b16 %v4419, %v4417
        %v4548 = vpack.c.b16 %v4422, %v4420
        %v4549 = vpack.c.b16 %v4423, %v4421
        %v4550 = vpack.c.b16 %v4426, %v4424
        %v4551 = vpack.c.b16 %v4427, %v4425
        %v4552 = vpack.c.b16 %v4430, %v4428
        %v4553 = vpack.c.b16 %v4431, %v4429
        %v4554 = vpack.c.b16 %v4434, %v4432
        %v4555 = vpack.c.b16 %v4435, %v4433
        %v4556 = vpack.c.b16 %v4438, %v4436
        %v4557 = vpack.c.b16 %v4439, %v4437
        %v4558 = vpack.c.b16 %v4442, %v4440
        %v4559 = vpack.c.b16 %v4443, %v4441
        %v4560 = vpack.c.b16 %v4446, %v4444
        %v4561 = vpack.c.b16 %v4447, %v4445
        %v4562 = vpack.c.b16 %v4450, %v4448
        %v4563 = vpack.c.b16 %v4451, %v4449
        %v4564 = vpack.c.b16 %v4454, %v4452
        %v4565 = vpack.c.b16 %v4455, %v4453
        %v4566 = vpack.c.b16 %v4458, %v4456
        %v4567 = vpack.c.b16 %v4459, %v4457
        %v4568 = vpack.c.b16 %v4462, %v4460
        %v4569 = vpack.c.b16 %v4463, %v4461
        %v4570 = vpack.c.b16 %v4466, %v4464
        %v4571 = vpack.c.b16 %v4467, %v4465
        %v4572 = vpack.c.b16 %v4470, %v4468
        %v4573 = vpack.c.b16 %v4471, %v4469
        %v4574 = vpack.c.b16 %v4474, %v4472
        %v4575 = vpack.c.b16 %v4475, %v4473
        %v4576 = vpack.c.b16 %v4478, %v4476
        %v4577 = vpack.c.b16 %v4479, %v4477
        %v4578 = vpack.c.b16 %v4482, %v4480
        %v4579 = vpack.c.b16 %v4483, %v4481
        %4676 = vmatprep.subr.bf16.mxu0 %v4499
        %4677 = vmatpush1.bf16.msra.mxu0 %v4498
        %4678 = vmatprep.subr.bf16.mxu0 %v4497
        %4679 = vmatpush1.bf16.msra.mxu0 %v4496
        %4680 = vmatprep.subr.bf16.mxu0 %v4495
        %4681 = vmatpush1.bf16.msra.mxu0 %v4494
        %4682 = vmatprep.subr.bf16.mxu0 %v4493
        %4683 = vmatpush1.bf16.msra.mxu0 %v4492
        %4684 = vmatprep.subr.bf16.mxu0 %v4491
        %4685 = vmatpush1.bf16.msra.mxu0 %v4490
        %4686 = vmatprep.subr.bf16.mxu0 %v4489
        %4687 = vmatpush1.bf16.msra.mxu0 %v4488
        %4688 = vmatprep.subr.bf16.mxu0 %v4487
        %4689 = vmatpush1.bf16.msra.mxu0 %v4486
        %4690 = vmatprep.subr.bf16.mxu0 %v4485
        %4691 = vmatpush1.bf16.msra.mxu0 %v4484
        %4692 = vmatprep.subr.bf16.mxu0 %v4515
        %4693 = vmatpush2.bf16.msra.mxu0 %v4514
        %4694 = vmatprep.subr.bf16.mxu0 %v4513
        %4695 = vmatpush2.bf16.msra.mxu0 %v4512
        %4696 = vmatprep.subr.bf16.mxu0 %v4511
        %4697 = vmatpush2.bf16.msra.mxu0 %v4510
        %4698 = vmatprep.subr.bf16.mxu0 %v4509
        %4699 = vmatpush2.bf16.msra.mxu0 %v4508
        %4700 = vmatprep.subr.bf16.mxu0 %v4507
        %4701 = vmatpush2.bf16.msra.mxu0 %v4506
        %4702 = vmatprep.subr.bf16.mxu0 %v4505
        %4703 = vmatpush2.bf16.msra.mxu0 %v4504
        %4704 = vmatprep.subr.bf16.mxu0 %v4503
        %4705 = vmatpush2.bf16.msra.mxu0 %v4502
        %4706 = vmatprep.subr.bf16.mxu0 %v4501
        %4707 = vmatpush2.bf16.msra.mxu0 %v4500
        %4708 = vmatprep.mubr.bf16.mxu0 %v4121
        %4709 = vmatmul.mubr.bf16.gmra.mxu0 %v4104
        %v4710 = vpop.f32.mrf.mxu0
        %v4711 = vadd.f32 %v4081, %v4710
        %v4712 = vpop.f32.mrf.mxu0
        %v4713 = vadd.f32 %v4085, %v4712
        %v4714 = vpop.f32.mrf.mxu0
        %v4715 = vadd.f32 %v4081, %v4714
        %v4716 = vpop.f32.mrf.mxu0
        %v4717 = vadd.f32 %v4085, %v4716
        %4718 = vdwg.mxu0
        %4719 = vmatprep.subr.bf16.mxu0 %v4531
        %4720 = vmatpush1.bf16.msra.mxu0 %v4530
        %4721 = vmatprep.subr.bf16.mxu0 %v4529
        %4722 = vmatpush1.bf16.msra.mxu0 %v4528
        %4723 = vmatprep.subr.bf16.mxu0 %v4527
        %4724 = vmatpush1.bf16.msra.mxu0 %v4526
        %4725 = vmatprep.subr.bf16.mxu0 %v4525
        %4726 = vmatpush1.bf16.msra.mxu0 %v4524
        %4727 = vmatprep.subr.bf16.mxu0 %v4523
        %4728 = vmatpush1.bf16.msra.mxu0 %v4522
        %4729 = vmatprep.subr.bf16.mxu0 %v4521
        %4730 = vmatpush1.bf16.msra.mxu0 %v4520
        %4731 = vmatprep.subr.bf16.mxu0 %v4519
        %4732 = vmatpush1.bf16.msra.mxu0 %v4518
        %4733 = vmatprep.subr.bf16.mxu0 %v4517
        %4734 = vmatpush1.bf16.msra.mxu0 %v4516
        %4735 = vmatprep.subr.bf16.mxu0 %v4547
        %4736 = vmatpush2.bf16.msra.mxu0 %v4546
        %4737 = vmatprep.subr.bf16.mxu0 %v4545
        %4738 = vmatpush2.bf16.msra.mxu0 %v4544
        %4739 = vmatprep.subr.bf16.mxu0 %v4543
        %4740 = vmatpush2.bf16.msra.mxu0 %v4542
        %4741 = vmatprep.subr.bf16.mxu0 %v4541
        %4742 = vmatpush2.bf16.msra.mxu0 %v4540
        %4743 = vmatprep.subr.bf16.mxu0 %v4539
        %4744 = vmatpush2.bf16.msra.mxu0 %v4538
        %4745 = vmatprep.subr.bf16.mxu0 %v4537
        %4746 = vmatpush2.bf16.msra.mxu0 %v4536
        %4747 = vmatprep.subr.bf16.mxu0 %v4535
        %4748 = vmatpush2.bf16.msra.mxu0 %v4534
        %4749 = vmatprep.subr.bf16.mxu0 %v4533
        %4750 = vmatpush2.bf16.msra.mxu0 %v4532
        %4751 = vmatprep.mubr.bf16.mxu0 %v4155
        %4752 = vmatmul.mubr.bf16.gmra.mxu0 %v4138
        %v4753 = vpop.f32.mrf.mxu0
        %v4754 = vadd.f32 %v4711, %v4753
        %v4755 = vpop.f32.mrf.mxu0
        %v4756 = vadd.f32 %v4713, %v4755
        %v4757 = vpop.f32.mrf.mxu0
        %v4758 = vadd.f32 %v4715, %v4757
        %v4759 = vpop.f32.mrf.mxu0
        %v4760 = vadd.f32 %v4717, %v4759
        %4761 = vdwg.mxu0
        %4762 = vmatprep.subr.bf16.mxu0 %v4563
        %4763 = vmatpush1.bf16.msra.mxu0 %v4562
        %4764 = vmatprep.subr.bf16.mxu0 %v4561
        %4765 = vmatpush1.bf16.msra.mxu0 %v4560
        %4766 = vmatprep.subr.bf16.mxu0 %v4559
        %4767 = vmatpush1.bf16.msra.mxu0 %v4558
        %4768 = vmatprep.subr.bf16.mxu0 %v4557
        %4769 = vmatpush1.bf16.msra.mxu0 %v4556
        %4770 = vmatprep.subr.bf16.mxu0 %v4555
        %4771 = vmatpush1.bf16.msra.mxu0 %v4554
        %4772 = vmatprep.subr.bf16.mxu0 %v4553
        %4773 = vmatpush1.bf16.msra.mxu0 %v4552
        %4774 = vmatprep.subr.bf16.mxu0 %v4551
        %4775 = vmatpush1.bf16.msra.mxu0 %v4550
        %4776 = vmatprep.subr.bf16.mxu0 %v4549
        %4777 = vmatpush1.bf16.msra.mxu0 %v4548
        %4778 = vmatprep.subr.bf16.mxu0 %v4579
        %4779 = vmatpush2.bf16.msra.mxu0 %v4578
        %4780 = vmatprep.subr.bf16.mxu0 %v4577
        %4781 = vmatpush2.bf16.msra.mxu0 %v4576
        %4782 = vmatprep.subr.bf16.mxu0 %v4575
        %4783 = vmatpush2.bf16.msra.mxu0 %v4574
        %4784 = vmatprep.subr.bf16.mxu0 %v4573
        %4785 = vmatpush2.bf16.msra.mxu0 %v4572
        %4786 = vmatprep.subr.bf16.mxu0 %v4571
        %4787 = vmatpush2.bf16.msra.mxu0 %v4570
        %4788 = vmatprep.subr.bf16.mxu0 %v4569
        %4789 = vmatpush2.bf16.msra.mxu0 %v4568
        %4790 = vmatprep.subr.bf16.mxu0 %v4567
        %4791 = vmatpush2.bf16.msra.mxu0 %v4566
        %4792 = vmatprep.subr.bf16.mxu0 %v4565
        %4793 = vmatpush2.bf16.msra.mxu0 %v4564
        %4794 = vmatprep.mubr.bf16.mxu0 %v4189
        %4795 = vmatmul.mubr.bf16.gmra.mxu0 %v4172
        %v4796 = vpop.f32.mrf.mxu0
        %v4797 = vadd.f32 %v4754, %v4796
        %v4798 = vpop.f32.mrf.mxu0
        %v4799 = vadd.f32 %v4756, %v4798
        %v4800 = vpop.f32.mrf.mxu0
        %v4801 = vadd.f32 %v4758, %v4800
        %v4802 = vpop.f32.mrf.mxu0
        %v4803 = vadd.f32 %v4760, %v4802
        %4804 = vdwg.mxu0
        %s4805 = sld [smem:[#allocation10 + $0x4]]
        %vm4806 = vcmp.ge.f32.partialorder %v4797, 0.0
        %vm4807 = vcmp.ge.f32.partialorder %v4799, 0.0
        %vm4808 = vcmp.ge.f32.partialorder %v4801, 0.0
        %vm4809 = vcmp.ge.f32.partialorder %v4803, 0.0
        %v4810 = vstv %s4805
        %v4811 = vmul.f32 %v4810, %v4797
        %v4812 = vmul.f32 %v4810, %v4799
        %v4813 = vmul.f32 %v4810, %v4801
        %v4814 = vmul.f32 %v4810, %v4803
        %v4815 = vsel %vm4806, %v4797, %v4811
        %v4816 = vsel %vm4807, %v4799, %v4812
        %v4817 = vsel %vm4808, %v4801, %v4813
        %v4818 = vsel %vm4809, %v4803, %v4814
        %v4819 = vadd.f32 %v2997, %v4815
        %v4820 = vadd.f32 %v2998, %v4816
        %v4821 = vadd.f32 %v2999, %v4817
        %v4822 = vadd.f32 %v3000, %v4818
        %4823 = vst [vmem:[#allocation2 + $0x10] sm:$0xff] %v4819
        %4824 = vst [vmem:[#allocation2 + $0x18] sm:$0xff] %v4820
        %4825 = vst [vmem:[#allocation2 + $0x20] sm:$0xff] %v4821
        %4826 = vst [vmem:[#allocation2 + $0x28] sm:$0xff] %v4822
        %v4827 = vld [vmem:[#allocation2] sm:$0x80]
        %v4828 = vld [vmem:[#allocation2 + $0x8] sm:$0x80]
        %v4829 = vld [vmem:[#allocation2 + $0x10] sm:$0xff]
        %v4830 = vld [vmem:[#allocation2 + $0x18] sm:$0xff]
        %v4831 = vld [vmem:[#allocation2 + $0x20] sm:$0x7f]
        %v4832 = vld [vmem:[#allocation2 + $0x28] sm:$0x7f]
        %v4833 = vld [vmem:[#allocation2 + $0x20] sm:$0xff]
        %v4834 = vld [vmem:[#allocation2 + $0x28] sm:$0xff]
        %v4835 = vld [vmem:[#allocation2 + $0x10] sm:$0xfe]
        %v4836 = vld [vmem:[#allocation2 + $0x18] sm:$0xfe]
        %v4837 = vld [vmem:[#allocation2 + $0x20] sm:$0xff]
        %v4838 = vld [vmem:[#allocation2 + $0x28] sm:$0xff]
        %v4839 = vld [vmem:[#allocation2 + $0x30] sm:$0x1]
        %v4840 = vld [vmem:[#allocation2 + $0x38] sm:$0x1]
        %v4845 = vrot.slane %v4829, 1
        %v4846 = vrot.slane %v4830, 1
        %v4847 = vrot.slane %v4833, 1
        %v4848 = vsel %vm291, %v4845, %v4847
        %v4849 = vrot.slane %v4834, 1
        %v4850 = vsel %vm291, %v4846, %v4849
        %v4863 = vrot.slane %v4835, 2
        %v4864 = vrot.slane %v4836, 2
        %v4865 = vrot.slane %v4837, 2
        %v4866 = vsel %vm310, %v4863, %v4865
        %v4867 = vrot.slane %v4838, 2
        %v4868 = vsel %vm310, %v4864, %v4867
        %v4869 = vrot.slane %v4839, 2
        %v4870 = vsel %vm310, %v4865, %v4869
        %v4871 = vrot.slane %v4840, 2
        %v4872 = vsel %vm310, %v4867, %v4871
        %v4879 = vpack.c.bf16 %v4829, %v4827
        %v4880 = vpack.c.bf16 %v4830, %v4828
        %v4881 = vpack.c.bf16 %v4848, %v4845
        %v4882 = vpack.c.bf16 %v4850, %v4846
        %v4883 = vpack.c.bf16 %v4866, %v4863
        %v4884 = vpack.c.bf16 %v4868, %v4864
        %v4885 = vpack.c.bf16 %v4831, %v4831
        %v4886 = vpack.c.bf16 %v4832, %v4832
        %v4887 = vpack.c.bf16 %v4847, %v4847
        %v4888 = vpack.c.bf16 %v4849, %v4849
        %v4889 = vpack.c.bf16 %v4870, %v4870
        %v4890 = vpack.c.bf16 %v4872, %v4872
        %s4891 = scalar_lea.vmem [#allocation7], 3840
        %v4892 = vld [vmem:[%s4891] sm:$0xff]
        %v4893 = vld [vmem:[%s4891 + $0x8] sm:$0xff]
        %v4894 = vld [vmem:[%s4891 + $0x10] sm:$0xff]
        %v4895 = vld [vmem:[%s4891 + $0x18] sm:$0xff]
        %v4896 = vld [vmem:[%s4891 + $0x20] sm:$0xff]
        %v4897 = vld [vmem:[%s4891 + $0x28] sm:$0xff]
        %v4898 = vld [vmem:[%s4891 + $0x30] sm:$0xff]
        %v4899 = vld [vmem:[%s4891 + $0x38] sm:$0xff]
        %v4900 = vld [vmem:[%s4891 + $0x40] sm:$0xff]
        %v4901 = vld [vmem:[%s4891 + $0x48] sm:$0xff]
        %v4902 = vld [vmem:[%s4891 + $0x50] sm:$0xff]
        %v4903 = vld [vmem:[%s4891 + $0x58] sm:$0xff]
        %v4904 = vld [vmem:[%s4891 + $0x60] sm:$0xff]
        %v4905 = vld [vmem:[%s4891 + $0x68] sm:$0xff]
        %v4906 = vld [vmem:[%s4891 + $0x70] sm:$0xff]
        %v4907 = vld [vmem:[%s4891 + $0x78] sm:$0xff]
        %v4908 = vld [vmem:[%s4891 + $0x80] sm:$0xff]
        %v4909 = vld [vmem:[%s4891 + $0x88] sm:$0xff]
        %v4910 = vld [vmem:[%s4891 + $0x90] sm:$0xff]
        %v4911 = vld [vmem:[%s4891 + $0x98] sm:$0xff]
        %v4912 = vld [vmem:[%s4891 + $0xa0] sm:$0xff]
        %v4913 = vld [vmem:[%s4891 + $0xa8] sm:$0xff]
        %v4914 = vld [vmem:[%s4891 + $0xb0] sm:$0xff]
        %v4915 = vld [vmem:[%s4891 + $0xb8] sm:$0xff]
        %v4916 = vld [vmem:[%s4891 + $0xc0] sm:$0xff]
        %v4917 = vld [vmem:[%s4891 + $0xc8] sm:$0xff]
        %v4918 = vld [vmem:[%s4891 + $0xd0] sm:$0xff]
        %v4919 = vld [vmem:[%s4891 + $0xd8] sm:$0xff]
        %v4920 = vld [vmem:[%s4891 + $0xe0] sm:$0xff]
        %v4921 = vld [vmem:[%s4891 + $0xe8] sm:$0xff]
        %v4922 = vld [vmem:[%s4891 + $0xf0] sm:$0xff]
        %v4923 = vld [vmem:[%s4891 + $0xf8] sm:$0xff]
        %v4924 = vld [vmem:[%s4891 + $0x100] sm:$0xff]
        %v4925 = vld [vmem:[%s4891 + $0x108] sm:$0xff]
        %v4926 = vld [vmem:[%s4891 + $0x110] sm:$0xff]
        %v4927 = vld [vmem:[%s4891 + $0x118] sm:$0xff]
        %v4928 = vld [vmem:[%s4891 + $0x120] sm:$0xff]
        %v4929 = vld [vmem:[%s4891 + $0x128] sm:$0xff]
        %v4930 = vld [vmem:[%s4891 + $0x130] sm:$0xff]
        %v4931 = vld [vmem:[%s4891 + $0x138] sm:$0xff]
        %v4932 = vld [vmem:[%s4891 + $0x140] sm:$0xff]
        %v4933 = vld [vmem:[%s4891 + $0x148] sm:$0xff]
        %v4934 = vld [vmem:[%s4891 + $0x150] sm:$0xff]
        %v4935 = vld [vmem:[%s4891 + $0x158] sm:$0xff]
        %v4936 = vld [vmem:[%s4891 + $0x160] sm:$0xff]
        %v4937 = vld [vmem:[%s4891 + $0x168] sm:$0xff]
        %v4938 = vld [vmem:[%s4891 + $0x170] sm:$0xff]
        %v4939 = vld [vmem:[%s4891 + $0x178] sm:$0xff]
        %v4940 = vld [vmem:[%s4891 + $0x180] sm:$0xff]
        %v4941 = vld [vmem:[%s4891 + $0x188] sm:$0xff]
        %v4942 = vld [vmem:[%s4891 + $0x190] sm:$0xff]
        %v4943 = vld [vmem:[%s4891 + $0x198] sm:$0xff]
        %v4944 = vld [vmem:[%s4891 + $0x1a0] sm:$0xff]
        %v4945 = vld [vmem:[%s4891 + $0x1a8] sm:$0xff]
        %v4946 = vld [vmem:[%s4891 + $0x1b0] sm:$0xff]
        %v4947 = vld [vmem:[%s4891 + $0x1b8] sm:$0xff]
        %v4948 = vld [vmem:[%s4891 + $0x1c0] sm:$0xff]
        %v4949 = vld [vmem:[%s4891 + $0x1c8] sm:$0xff]
        %v4950 = vld [vmem:[%s4891 + $0x1d0] sm:$0xff]
        %v4951 = vld [vmem:[%s4891 + $0x1d8] sm:$0xff]
        %v4952 = vld [vmem:[%s4891 + $0x1e0] sm:$0xff]
        %v4953 = vld [vmem:[%s4891 + $0x1e8] sm:$0xff]
        %v4954 = vld [vmem:[%s4891 + $0x1f0] sm:$0xff]
        %v4955 = vld [vmem:[%s4891 + $0x1f8] sm:$0xff]
        %v4956 = vld [vmem:[%s4891 + $0x200] sm:$0xff]
        %v4957 = vld [vmem:[%s4891 + $0x208] sm:$0xff]
        %v4958 = vld [vmem:[%s4891 + $0x210] sm:$0xff]
        %v4959 = vld [vmem:[%s4891 + $0x218] sm:$0xff]
        %v4960 = vld [vmem:[%s4891 + $0x220] sm:$0xff]
        %v4961 = vld [vmem:[%s4891 + $0x228] sm:$0xff]
        %v4962 = vld [vmem:[%s4891 + $0x230] sm:$0xff]
        %v4963 = vld [vmem:[%s4891 + $0x238] sm:$0xff]
        %v4964 = vld [vmem:[%s4891 + $0x240] sm:$0xff]
        %v4965 = vld [vmem:[%s4891 + $0x248] sm:$0xff]
        %v4966 = vld [vmem:[%s4891 + $0x250] sm:$0xff]
        %v4967 = vld [vmem:[%s4891 + $0x258] sm:$0xff]
        %v4968 = vld [vmem:[%s4891 + $0x260] sm:$0xff]
        %v4969 = vld [vmem:[%s4891 + $0x268] sm:$0xff]
        %v4970 = vld [vmem:[%s4891 + $0x270] sm:$0xff]
        %v4971 = vld [vmem:[%s4891 + $0x278] sm:$0xff]
        %v4972 = vld [vmem:[%s4891 + $0x280] sm:$0xff]
        %v4973 = vld [vmem:[%s4891 + $0x288] sm:$0xff]
        %v4974 = vld [vmem:[%s4891 + $0x290] sm:$0xff]
        %v4975 = vld [vmem:[%s4891 + $0x298] sm:$0xff]
        %v4976 = vld [vmem:[%s4891 + $0x2a0] sm:$0xff]
        %v4977 = vld [vmem:[%s4891 + $0x2a8] sm:$0xff]
        %v4978 = vld [vmem:[%s4891 + $0x2b0] sm:$0xff]
        %v4979 = vld [vmem:[%s4891 + $0x2b8] sm:$0xff]
        %v4980 = vld [vmem:[%s4891 + $0x2c0] sm:$0xff]
        %v4981 = vld [vmem:[%s4891 + $0x2c8] sm:$0xff]
        %v4982 = vld [vmem:[%s4891 + $0x2d0] sm:$0xff]
        %v4983 = vld [vmem:[%s4891 + $0x2d8] sm:$0xff]
        %v4984 = vld [vmem:[%s4891 + $0x2e0] sm:$0xff]
        %v4985 = vld [vmem:[%s4891 + $0x2e8] sm:$0xff]
        %v4986 = vld [vmem:[%s4891 + $0x2f0] sm:$0xff]
        %v4987 = vld [vmem:[%s4891 + $0x2f8] sm:$0xff]
        %s4988 = scalar_lea.vmem [#allocation9], 10
        %v4989 = vld [vmem:[%s4988] sm:$0x3]
        %v4991 = vlaneseq
        %v4992 = vshrl.u32 %v4991, 7
        %v4993 = vsub.s32 0, %v4992
        %v4994 = vrot.slane %v4989, %v4993
        %v4995 = vlaneseq
        %v4996 = vshrl.u32 %v4995, 7
        %v4997 = vsub.s32 1, %v4996
        %v4998 = vrot.slane %v4989, %v4997
        %v5002 = vshrl.u32 %v4879, 16
        %v5004 = vrot.slane %v5002, 3
        %v5005 = vshll.u32 %v4879, 16
        %v5007 = vrot.slane %v5005, 4
        %v5008 = vor.u32 %v5004, %v5007
        %v5010 = vshrl.u32 %v4885, 16
        %v5012 = vrot.slane %v5010, 3
        %v5013 = vshll.u32 %v4885, 16
        %v5015 = vrot.slane %v5013, 4
        %v5016 = vor.u32 %v5012, %v5015
        %v5017 = vsel %vm447, %v5008, %v5016
        %v5019 = vshrl.u32 %v4880, 16
        %v5021 = vrot.slane %v5019, 3
        %v5022 = vshll.u32 %v4880, 16
        %v5024 = vrot.slane %v5022, 4
        %v5025 = vor.u32 %v5021, %v5024
        %v5027 = vshrl.u32 %v4886, 16
        %v5029 = vrot.slane %v5027, 3
        %v5030 = vshll.u32 %v4886, 16
        %v5032 = vrot.slane %v5030, 4
        %v5033 = vor.u32 %v5029, %v5032
        %v5034 = vsel %vm447, %v5025, %v5033
        %v5036 = vshrl.u32 %v4881, 16
        %v5038 = vrot.slane %v5036, 3
        %v5039 = vshll.u32 %v4881, 16
        %v5041 = vrot.slane %v5039, 4
        %v5042 = vor.u32 %v5038, %v5041
        %v5044 = vshrl.u32 %v4887, 16
        %v5046 = vrot.slane %v5044, 3
        %v5047 = vshll.u32 %v4887, 16
        %v5049 = vrot.slane %v5047, 4
        %v5050 = vor.u32 %v5046, %v5049
        %v5051 = vsel %vm447, %v5042, %v5050
        %v5053 = vshrl.u32 %v4882, 16
        %v5055 = vrot.slane %v5053, 3
        %v5056 = vshll.u32 %v4882, 16
        %v5058 = vrot.slane %v5056, 4
        %v5059 = vor.u32 %v5055, %v5058
        %v5061 = vshrl.u32 %v4888, 16
        %v5063 = vrot.slane %v5061, 3
        %v5064 = vshll.u32 %v4888, 16
        %v5066 = vrot.slane %v5064, 4
        %v5067 = vor.u32 %v5063, %v5066
        %v5068 = vsel %vm447, %v5059, %v5067
        %v5070 = vshrl.u32 %v4883, 16
        %v5072 = vrot.slane %v5070, 3
        %v5073 = vshll.u32 %v4883, 16
        %v5075 = vrot.slane %v5073, 4
        %v5076 = vor.u32 %v5072, %v5075
        %v5078 = vshrl.u32 %v4889, 16
        %v5080 = vrot.slane %v5078, 3
        %v5081 = vshll.u32 %v4889, 16
        %v5083 = vrot.slane %v5081, 4
        %v5084 = vor.u32 %v5080, %v5083
        %v5085 = vsel %vm447, %v5076, %v5084
        %v5087 = vshrl.u32 %v4884, 16
        %v5089 = vrot.slane %v5087, 3
        %v5090 = vshll.u32 %v4884, 16
        %v5092 = vrot.slane %v5090, 4
        %v5093 = vor.u32 %v5089, %v5092
        %v5095 = vshrl.u32 %v4890, 16
        %v5097 = vrot.slane %v5095, 3
        %v5098 = vshll.u32 %v4890, 16
        %v5100 = vrot.slane %v5098, 4
        %v5101 = vor.u32 %v5097, %v5100
        %v5102 = vsel %vm447, %v5093, %v5101
        %v5205 = vunpack.c.l.b16 %v4892
        %v5206 = vunpack.c.h.b16 %v4892
        %v5207 = vunpack.c.l.b16 %v4893
        %v5208 = vunpack.c.h.b16 %v4893
        %v5209 = vunpack.c.l.b16 %v4894
        %v5210 = vunpack.c.h.b16 %v4894
        %v5211 = vunpack.c.l.b16 %v4895
        %v5212 = vunpack.c.h.b16 %v4895
        %v5213 = vunpack.c.l.b16 %v4896
        %v5214 = vunpack.c.h.b16 %v4896
        %v5215 = vunpack.c.l.b16 %v4897
        %v5216 = vunpack.c.h.b16 %v4897
        %v5217 = vunpack.c.l.b16 %v4898
        %v5218 = vunpack.c.h.b16 %v4898
        %v5219 = vunpack.c.l.b16 %v4899
        %v5220 = vunpack.c.h.b16 %v4899
        %v5221 = vunpack.c.l.b16 %v4900
        %v5222 = vunpack.c.h.b16 %v4900
        %v5223 = vunpack.c.l.b16 %v4901
        %v5224 = vunpack.c.h.b16 %v4901
        %v5225 = vunpack.c.l.b16 %v4902
        %v5226 = vunpack.c.h.b16 %v4902
        %v5227 = vunpack.c.l.b16 %v4903
        %v5228 = vunpack.c.h.b16 %v4903
        %v5229 = vunpack.c.l.b16 %v4904
        %v5230 = vunpack.c.h.b16 %v4904
        %v5231 = vunpack.c.l.b16 %v4905
        %v5232 = vunpack.c.h.b16 %v4905
        %v5233 = vunpack.c.l.b16 %v4906
        %v5234 = vunpack.c.h.b16 %v4906
        %v5235 = vunpack.c.l.b16 %v4907
        %v5236 = vunpack.c.h.b16 %v4907
        %v5237 = vunpack.c.l.b16 %v4908
        %v5238 = vunpack.c.h.b16 %v4908
        %v5239 = vunpack.c.l.b16 %v4909
        %v5240 = vunpack.c.h.b16 %v4909
        %v5241 = vunpack.c.l.b16 %v4910
        %v5242 = vunpack.c.h.b16 %v4910
        %v5243 = vunpack.c.l.b16 %v4911
        %v5244 = vunpack.c.h.b16 %v4911
        %v5245 = vunpack.c.l.b16 %v4912
        %v5246 = vunpack.c.h.b16 %v4912
        %v5247 = vunpack.c.l.b16 %v4913
        %v5248 = vunpack.c.h.b16 %v4913
        %v5249 = vunpack.c.l.b16 %v4914
        %v5250 = vunpack.c.h.b16 %v4914
        %v5251 = vunpack.c.l.b16 %v4915
        %v5252 = vunpack.c.h.b16 %v4915
        %v5253 = vunpack.c.l.b16 %v4916
        %v5254 = vunpack.c.h.b16 %v4916
        %v5255 = vunpack.c.l.b16 %v4917
        %v5256 = vunpack.c.h.b16 %v4917
        %v5257 = vunpack.c.l.b16 %v4918
        %v5258 = vunpack.c.h.b16 %v4918
        %v5259 = vunpack.c.l.b16 %v4919
        %v5260 = vunpack.c.h.b16 %v4919
        %v5261 = vunpack.c.l.b16 %v4920
        %v5262 = vunpack.c.h.b16 %v4920
        %v5263 = vunpack.c.l.b16 %v4921
        %v5264 = vunpack.c.h.b16 %v4921
        %v5265 = vunpack.c.l.b16 %v4922
        %v5266 = vunpack.c.h.b16 %v4922
        %v5267 = vunpack.c.l.b16 %v4923
        %v5268 = vunpack.c.h.b16 %v4923
        %v5269 = vunpack.c.l.b16 %v4924
        %v5270 = vunpack.c.h.b16 %v4924
        %v5271 = vunpack.c.l.b16 %v4925
        %v5272 = vunpack.c.h.b16 %v4925
        %v5273 = vunpack.c.l.b16 %v4926
        %v5274 = vunpack.c.h.b16 %v4926
        %v5275 = vunpack.c.l.b16 %v4927
        %v5276 = vunpack.c.h.b16 %v4927
        %v5277 = vunpack.c.l.b16 %v4928
        %v5278 = vunpack.c.h.b16 %v4928
        %v5279 = vunpack.c.l.b16 %v4929
        %v5280 = vunpack.c.h.b16 %v4929
        %v5281 = vunpack.c.l.b16 %v4930
        %v5282 = vunpack.c.h.b16 %v4930
        %v5283 = vunpack.c.l.b16 %v4931
        %v5284 = vunpack.c.h.b16 %v4931
        %v5285 = vunpack.c.l.b16 %v4932
        %v5286 = vunpack.c.h.b16 %v4932
        %v5287 = vunpack.c.l.b16 %v4933
        %v5288 = vunpack.c.h.b16 %v4933
        %v5289 = vunpack.c.l.b16 %v4934
        %v5290 = vunpack.c.h.b16 %v4934
        %v5291 = vunpack.c.l.b16 %v4935
        %v5292 = vunpack.c.h.b16 %v4935
        %v5293 = vunpack.c.l.b16 %v4936
        %v5294 = vunpack.c.h.b16 %v4936
        %v5295 = vunpack.c.l.b16 %v4937
        %v5296 = vunpack.c.h.b16 %v4937
        %v5297 = vunpack.c.l.b16 %v4938
        %v5298 = vunpack.c.h.b16 %v4938
        %v5299 = vunpack.c.l.b16 %v4939
        %v5300 = vunpack.c.h.b16 %v4939
        %v5301 = vunpack.c.l.b16 %v4940
        %v5302 = vunpack.c.h.b16 %v4940
        %v5303 = vunpack.c.l.b16 %v4941
        %v5304 = vunpack.c.h.b16 %v4941
        %v5305 = vunpack.c.l.b16 %v4942
        %v5306 = vunpack.c.h.b16 %v4942
        %v5307 = vunpack.c.l.b16 %v4943
        %v5308 = vunpack.c.h.b16 %v4943
        %v5309 = vunpack.c.l.b16 %v4944
        %v5310 = vunpack.c.h.b16 %v4944
        %v5311 = vunpack.c.l.b16 %v4945
        %v5312 = vunpack.c.h.b16 %v4945
        %v5313 = vunpack.c.l.b16 %v4946
        %v5314 = vunpack.c.h.b16 %v4946
        %v5315 = vunpack.c.l.b16 %v4947
        %v5316 = vunpack.c.h.b16 %v4947
        %v5317 = vunpack.c.l.b16 %v4948
        %v5318 = vunpack.c.h.b16 %v4948
        %v5319 = vunpack.c.l.b16 %v4949
        %v5320 = vunpack.c.h.b16 %v4949
        %v5321 = vunpack.c.l.b16 %v4950
        %v5322 = vunpack.c.h.b16 %v4950
        %v5323 = vunpack.c.l.b16 %v4951
        %v5324 = vunpack.c.h.b16 %v4951
        %v5325 = vunpack.c.l.b16 %v4952
        %v5326 = vunpack.c.h.b16 %v4952
        %v5327 = vunpack.c.l.b16 %v4953
        %v5328 = vunpack.c.h.b16 %v4953
        %v5329 = vunpack.c.l.b16 %v4954
        %v5330 = vunpack.c.h.b16 %v4954
        %v5331 = vunpack.c.l.b16 %v4955
        %v5332 = vunpack.c.h.b16 %v4955
        %v5333 = vunpack.c.l.b16 %v4956
        %v5334 = vunpack.c.h.b16 %v4956
        %v5335 = vunpack.c.l.b16 %v4957
        %v5336 = vunpack.c.h.b16 %v4957
        %v5337 = vunpack.c.l.b16 %v4958
        %v5338 = vunpack.c.h.b16 %v4958
        %v5339 = vunpack.c.l.b16 %v4959
        %v5340 = vunpack.c.h.b16 %v4959
        %v5341 = vunpack.c.l.b16 %v4960
        %v5342 = vunpack.c.h.b16 %v4960
        %v5343 = vunpack.c.l.b16 %v4961
        %v5344 = vunpack.c.h.b16 %v4961
        %v5345 = vunpack.c.l.b16 %v4962
        %v5346 = vunpack.c.h.b16 %v4962
        %v5347 = vunpack.c.l.b16 %v4963
        %v5348 = vunpack.c.h.b16 %v4963
        %v5349 = vunpack.c.l.b16 %v4964
        %v5350 = vunpack.c.h.b16 %v4964
        %v5351 = vunpack.c.l.b16 %v4965
        %v5352 = vunpack.c.h.b16 %v4965
        %v5353 = vunpack.c.l.b16 %v4966
        %v5354 = vunpack.c.h.b16 %v4966
        %v5355 = vunpack.c.l.b16 %v4967
        %v5356 = vunpack.c.h.b16 %v4967
        %v5357 = vunpack.c.l.b16 %v4968
        %v5358 = vunpack.c.h.b16 %v4968
        %v5359 = vunpack.c.l.b16 %v4969
        %v5360 = vunpack.c.h.b16 %v4969
        %v5361 = vunpack.c.l.b16 %v4970
        %v5362 = vunpack.c.h.b16 %v4970
        %v5363 = vunpack.c.l.b16 %v4971
        %v5364 = vunpack.c.h.b16 %v4971
        %v5365 = vunpack.c.l.b16 %v4972
        %v5366 = vunpack.c.h.b16 %v4972
        %v5367 = vunpack.c.l.b16 %v4973
        %v5368 = vunpack.c.h.b16 %v4973
        %v5369 = vunpack.c.l.b16 %v4974
        %v5370 = vunpack.c.h.b16 %v4974
        %v5371 = vunpack.c.l.b16 %v4975
        %v5372 = vunpack.c.h.b16 %v4975
        %v5373 = vunpack.c.l.b16 %v4976
        %v5374 = vunpack.c.h.b16 %v4976
        %v5375 = vunpack.c.l.b16 %v4977
        %v5376 = vunpack.c.h.b16 %v4977
        %v5377 = vunpack.c.l.b16 %v4978
        %v5378 = vunpack.c.h.b16 %v4978
        %v5379 = vunpack.c.l.b16 %v4979
        %v5380 = vunpack.c.h.b16 %v4979
        %v5381 = vunpack.c.l.b16 %v4980
        %v5382 = vunpack.c.h.b16 %v4980
        %v5383 = vunpack.c.l.b16 %v4981
        %v5384 = vunpack.c.h.b16 %v4981
        %v5385 = vunpack.c.l.b16 %v4982
        %v5386 = vunpack.c.h.b16 %v4982
        %v5387 = vunpack.c.l.b16 %v4983
        %v5388 = vunpack.c.h.b16 %v4983
        %v5389 = vunpack.c.l.b16 %v4984
        %v5390 = vunpack.c.h.b16 %v4984
        %v5391 = vunpack.c.l.b16 %v4985
        %v5392 = vunpack.c.h.b16 %v4985
        %v5393 = vunpack.c.l.b16 %v4986
        %v5394 = vunpack.c.h.b16 %v4986
        %v5395 = vunpack.c.l.b16 %v4987
        %v5396 = vunpack.c.h.b16 %v4987
        %v5397 = vpack.c.b16 %v5207, %v5205
        %v5398 = vpack.c.b16 %v5208, %v5206
        %v5399 = vpack.c.b16 %v5211, %v5209
        %v5400 = vpack.c.b16 %v5212, %v5210
        %v5401 = vpack.c.b16 %v5215, %v5213
        %v5402 = vpack.c.b16 %v5216, %v5214
        %v5403 = vpack.c.b16 %v5219, %v5217
        %v5404 = vpack.c.b16 %v5220, %v5218
        %v5405 = vpack.c.b16 %v5223, %v5221
        %v5406 = vpack.c.b16 %v5224, %v5222
        %v5407 = vpack.c.b16 %v5227, %v5225
        %v5408 = vpack.c.b16 %v5228, %v5226
        %v5409 = vpack.c.b16 %v5231, %v5229
        %v5410 = vpack.c.b16 %v5232, %v5230
        %v5411 = vpack.c.b16 %v5235, %v5233
        %v5412 = vpack.c.b16 %v5236, %v5234
        %v5413 = vpack.c.b16 %v5239, %v5237
        %v5414 = vpack.c.b16 %v5240, %v5238
        %v5415 = vpack.c.b16 %v5243, %v5241
        %v5416 = vpack.c.b16 %v5244, %v5242
        %v5417 = vpack.c.b16 %v5247, %v5245
        %v5418 = vpack.c.b16 %v5248, %v5246
        %v5419 = vpack.c.b16 %v5251, %v5249
        %v5420 = vpack.c.b16 %v5252, %v5250
        %v5421 = vpack.c.b16 %v5255, %v5253
        %v5422 = vpack.c.b16 %v5256, %v5254
        %v5423 = vpack.c.b16 %v5259, %v5257
        %v5424 = vpack.c.b16 %v5260, %v5258
        %v5425 = vpack.c.b16 %v5263, %v5261
        %v5426 = vpack.c.b16 %v5264, %v5262
        %v5427 = vpack.c.b16 %v5267, %v5265
        %v5428 = vpack.c.b16 %v5268, %v5266
        %v5429 = vpack.c.b16 %v5271, %v5269
        %v5430 = vpack.c.b16 %v5272, %v5270
        %v5431 = vpack.c.b16 %v5275, %v5273
        %v5432 = vpack.c.b16 %v5276, %v5274
        %v5433 = vpack.c.b16 %v5279, %v5277
        %v5434 = vpack.c.b16 %v5280, %v5278
        %v5435 = vpack.c.b16 %v5283, %v5281
        %v5436 = vpack.c.b16 %v5284, %v5282
        %v5437 = vpack.c.b16 %v5287, %v5285
        %v5438 = vpack.c.b16 %v5288, %v5286
        %v5439 = vpack.c.b16 %v5291, %v5289
        %v5440 = vpack.c.b16 %v5292, %v5290
        %v5441 = vpack.c.b16 %v5295, %v5293
        %v5442 = vpack.c.b16 %v5296, %v5294
        %v5443 = vpack.c.b16 %v5299, %v5297
        %v5444 = vpack.c.b16 %v5300, %v5298
        %v5445 = vpack.c.b16 %v5303, %v5301
        %v5446 = vpack.c.b16 %v5304, %v5302
        %v5447 = vpack.c.b16 %v5307, %v5305
        %v5448 = vpack.c.b16 %v5308, %v5306
        %v5449 = vpack.c.b16 %v5311, %v5309
        %v5450 = vpack.c.b16 %v5312, %v5310
        %v5451 = vpack.c.b16 %v5315, %v5313
        %v5452 = vpack.c.b16 %v5316, %v5314
        %v5453 = vpack.c.b16 %v5319, %v5317
        %v5454 = vpack.c.b16 %v5320, %v5318
        %v5455 = vpack.c.b16 %v5323, %v5321
        %v5456 = vpack.c.b16 %v5324, %v5322
        %v5457 = vpack.c.b16 %v5327, %v5325
        %v5458 = vpack.c.b16 %v5328, %v5326
        %v5459 = vpack.c.b16 %v5331, %v5329
        %v5460 = vpack.c.b16 %v5332, %v5330
        %v5461 = vpack.c.b16 %v5335, %v5333
        %v5462 = vpack.c.b16 %v5336, %v5334
        %v5463 = vpack.c.b16 %v5339, %v5337
        %v5464 = vpack.c.b16 %v5340, %v5338
        %v5465 = vpack.c.b16 %v5343, %v5341
        %v5466 = vpack.c.b16 %v5344, %v5342
        %v5467 = vpack.c.b16 %v5347, %v5345
        %v5468 = vpack.c.b16 %v5348, %v5346
        %v5469 = vpack.c.b16 %v5351, %v5349
        %v5470 = vpack.c.b16 %v5352, %v5350
        %v5471 = vpack.c.b16 %v5355, %v5353
        %v5472 = vpack.c.b16 %v5356, %v5354
        %v5473 = vpack.c.b16 %v5359, %v5357
        %v5474 = vpack.c.b16 %v5360, %v5358
        %v5475 = vpack.c.b16 %v5363, %v5361
        %v5476 = vpack.c.b16 %v5364, %v5362
        %v5477 = vpack.c.b16 %v5367, %v5365
        %v5478 = vpack.c.b16 %v5368, %v5366
        %v5479 = vpack.c.b16 %v5371, %v5369
        %v5480 = vpack.c.b16 %v5372, %v5370
        %v5481 = vpack.c.b16 %v5375, %v5373
        %v5482 = vpack.c.b16 %v5376, %v5374
        %v5483 = vpack.c.b16 %v5379, %v5377
        %v5484 = vpack.c.b16 %v5380, %v5378
        %v5485 = vpack.c.b16 %v5383, %v5381
        %v5486 = vpack.c.b16 %v5384, %v5382
        %v5487 = vpack.c.b16 %v5387, %v5385
        %v5488 = vpack.c.b16 %v5388, %v5386
        %v5489 = vpack.c.b16 %v5391, %v5389
        %v5490 = vpack.c.b16 %v5392, %v5390
        %v5491 = vpack.c.b16 %v5395, %v5393
        %v5492 = vpack.c.b16 %v5396, %v5394
        %5589 = vmatprep.subr.bf16.mxu0 %v5412
        %5590 = vmatpush1.bf16.msra.mxu0 %v5411
        %5591 = vmatprep.subr.bf16.mxu0 %v5410
        %5592 = vmatpush1.bf16.msra.mxu0 %v5409
        %5593 = vmatprep.subr.bf16.mxu0 %v5408
        %5594 = vmatpush1.bf16.msra.mxu0 %v5407
        %5595 = vmatprep.subr.bf16.mxu0 %v5406
        %5596 = vmatpush1.bf16.msra.mxu0 %v5405
        %5597 = vmatprep.subr.bf16.mxu0 %v5404
        %5598 = vmatpush1.bf16.msra.mxu0 %v5403
        %5599 = vmatprep.subr.bf16.mxu0 %v5402
        %5600 = vmatpush1.bf16.msra.mxu0 %v5401
        %5601 = vmatprep.subr.bf16.mxu0 %v5400
        %5602 = vmatpush1.bf16.msra.mxu0 %v5399
        %5603 = vmatprep.subr.bf16.mxu0 %v5398
        %5604 = vmatpush1.bf16.msra.mxu0 %v5397
        %5605 = vmatprep.subr.bf16.mxu0 %v5428
        %5606 = vmatpush2.bf16.msra.mxu0 %v5427
        %5607 = vmatprep.subr.bf16.mxu0 %v5426
        %5608 = vmatpush2.bf16.msra.mxu0 %v5425
        %5609 = vmatprep.subr.bf16.mxu0 %v5424
        %5610 = vmatpush2.bf16.msra.mxu0 %v5423
        %5611 = vmatprep.subr.bf16.mxu0 %v5422
        %5612 = vmatpush2.bf16.msra.mxu0 %v5421
        %5613 = vmatprep.subr.bf16.mxu0 %v5420
        %5614 = vmatpush2.bf16.msra.mxu0 %v5419
        %5615 = vmatprep.subr.bf16.mxu0 %v5418
        %5616 = vmatpush2.bf16.msra.mxu0 %v5417
        %5617 = vmatprep.subr.bf16.mxu0 %v5416
        %5618 = vmatpush2.bf16.msra.mxu0 %v5415
        %5619 = vmatprep.subr.bf16.mxu0 %v5414
        %5620 = vmatpush2.bf16.msra.mxu0 %v5413
        %5621 = vmatprep.mubr.bf16.mxu0 %v5034
        %5622 = vmatmul.mubr.bf16.gmra.mxu0 %v5017
        %v5623 = vpop.f32.mrf.mxu0
        %v5624 = vadd.f32 %v4994, %v5623
        %v5625 = vpop.f32.mrf.mxu0
        %v5626 = vadd.f32 %v4998, %v5625
        %v5627 = vpop.f32.mrf.mxu0
        %v5628 = vadd.f32 %v4994, %v5627
        %v5629 = vpop.f32.mrf.mxu0
        %v5630 = vadd.f32 %v4998, %v5629
        %5631 = vdwg.mxu0
        %5632 = vmatprep.subr.bf16.mxu0 %v5444
        %5633 = vmatpush1.bf16.msra.mxu0 %v5443
        %5634 = vmatprep.subr.bf16.mxu0 %v5442
        %5635 = vmatpush1.bf16.msra.mxu0 %v5441
        %5636 = vmatprep.subr.bf16.mxu0 %v5440
        %5637 = vmatpush1.bf16.msra.mxu0 %v5439
        %5638 = vmatprep.subr.bf16.mxu0 %v5438
        %5639 = vmatpush1.bf16.msra.mxu0 %v5437
        %5640 = vmatprep.subr.bf16.mxu0 %v5436
        %5641 = vmatpush1.bf16.msra.mxu0 %v5435
        %5642 = vmatprep.subr.bf16.mxu0 %v5434
        %5643 = vmatpush1.bf16.msra.mxu0 %v5433
        %5644 = vmatprep.subr.bf16.mxu0 %v5432
        %5645 = vmatpush1.bf16.msra.mxu0 %v5431
        %5646 = vmatprep.subr.bf16.mxu0 %v5430
        %5647 = vmatpush1.bf16.msra.mxu0 %v5429
        %5648 = vmatprep.subr.bf16.mxu0 %v5460
        %5649 = vmatpush2.bf16.msra.mxu0 %v5459
        %5650 = vmatprep.subr.bf16.mxu0 %v5458
        %5651 = vmatpush2.bf16.msra.mxu0 %v5457
        %5652 = vmatprep.subr.bf16.mxu0 %v5456
        %5653 = vmatpush2.bf16.msra.mxu0 %v5455
        %5654 = vmatprep.subr.bf16.mxu0 %v5454
        %5655 = vmatpush2.bf16.msra.mxu0 %v5453
        %5656 = vmatprep.subr.bf16.mxu0 %v5452
        %5657 = vmatpush2.bf16.msra.mxu0 %v5451
        %5658 = vmatprep.subr.bf16.mxu0 %v5450
        %5659 = vmatpush2.bf16.msra.mxu0 %v5449
        %5660 = vmatprep.subr.bf16.mxu0 %v5448
        %5661 = vmatpush2.bf16.msra.mxu0 %v5447
        %5662 = vmatprep.subr.bf16.mxu0 %v5446
        %5663 = vmatpush2.bf16.msra.mxu0 %v5445
        %5664 = vmatprep.mubr.bf16.mxu0 %v5068
        %5665 = vmatmul.mubr.bf16.gmra.mxu0 %v5051
        %v5666 = vpop.f32.mrf.mxu0
        %v5667 = vadd.f32 %v5624, %v5666
        %v5668 = vpop.f32.mrf.mxu0
        %v5669 = vadd.f32 %v5626, %v5668
        %v5670 = vpop.f32.mrf.mxu0
        %v5671 = vadd.f32 %v5628, %v5670
        %v5672 = vpop.f32.mrf.mxu0
        %v5673 = vadd.f32 %v5630, %v5672
        %5674 = vdwg.mxu0
        %5675 = vmatprep.subr.bf16.mxu0 %v5476
        %5676 = vmatpush1.bf16.msra.mxu0 %v5475
        %5677 = vmatprep.subr.bf16.mxu0 %v5474
        %5678 = vmatpush1.bf16.msra.mxu0 %v5473
        %5679 = vmatprep.subr.bf16.mxu0 %v5472
        %5680 = vmatpush1.bf16.msra.mxu0 %v5471
        %5681 = vmatprep.subr.bf16.mxu0 %v5470
        %5682 = vmatpush1.bf16.msra.mxu0 %v5469
        %5683 = vmatprep.subr.bf16.mxu0 %v5468
        %5684 = vmatpush1.bf16.msra.mxu0 %v5467
        %5685 = vmatprep.subr.bf16.mxu0 %v5466
        %5686 = vmatpush1.bf16.msra.mxu0 %v5465
        %5687 = vmatprep.subr.bf16.mxu0 %v5464
        %5688 = vmatpush1.bf16.msra.mxu0 %v5463
        %5689 = vmatprep.subr.bf16.mxu0 %v5462
        %5690 = vmatpush1.bf16.msra.mxu0 %v5461
        %5691 = vmatprep.subr.bf16.mxu0 %v5492
        %5692 = vmatpush2.bf16.msra.mxu0 %v5491
        %5693 = vmatprep.subr.bf16.mxu0 %v5490
        %5694 = vmatpush2.bf16.msra.mxu0 %v5489
        %5695 = vmatprep.subr.bf16.mxu0 %v5488
        %5696 = vmatpush2.bf16.msra.mxu0 %v5487
        %5697 = vmatprep.subr.bf16.mxu0 %v5486
        %5698 = vmatpush2.bf16.msra.mxu0 %v5485
        %5699 = vmatprep.subr.bf16.mxu0 %v5484
        %5700 = vmatpush2.bf16.msra.mxu0 %v5483
        %5701 = vmatprep.subr.bf16.mxu0 %v5482
        %5702 = vmatpush2.bf16.msra.mxu0 %v5481
        %5703 = vmatprep.subr.bf16.mxu0 %v5480
        %5704 = vmatpush2.bf16.msra.mxu0 %v5479
        %5705 = vmatprep.subr.bf16.mxu0 %v5478
        %5706 = vmatpush2.bf16.msra.mxu0 %v5477
        %5707 = vmatprep.mubr.bf16.mxu0 %v5102
        %5708 = vmatmul.mubr.bf16.gmra.mxu0 %v5085
        %v5709 = vpop.f32.mrf.mxu0
        %v5710 = vadd.f32 %v5667, %v5709
        %v5711 = vpop.f32.mrf.mxu0
        %v5712 = vadd.f32 %v5669, %v5711
        %v5713 = vpop.f32.mrf.mxu0
        %v5714 = vadd.f32 %v5671, %v5713
        %v5715 = vpop.f32.mrf.mxu0
        %v5716 = vadd.f32 %v5673, %v5715
        %5717 = vdwg.mxu0
        %5718 = vst [vmem:[%s256] sm:$0xff] %v5710
        %5719 = vst [vmem:[%s256 + $0x8] sm:$0xff] %v5712
        %5720 = vst [vmem:[%s256 + $0x10] sm:$0xff] %v5714
        %5721 = vst [vmem:[%s256 + $0x18] sm:$0xff] %v5716
        %s5722 = sand.u32 %s120, 1
        %s5723 = scalar_lea.sflag [#allocation5], %s5722
        %s5724 = sand.u32 %s120, 1
        %s5725 = smul.addr %s5724, 32
        %s5726 = scalar_lea.vmem [#allocation11], %s5725
        // Predicated region
        $region53: #{tpu_custom_call.1} parent=35 // pred_check
          %p5727 = pneg %p130
        $region54: #{tpu_custom_call.1} parent=35 // pred_check_branch
          %5729 = sbr.rel (%p5727) target = $region56
        $region55: #{tpu_custom_call.1} parent=35 // pred_region
          %s5731 = ssub.s32 512, 512
          %5732 = vsyncadd %s5723, %s5731
          %s5733 = smul.addr %s23, 4
          %s5734 = smul.addr %s5733, 128
          %s5735 = scalar_lea.hbm %s4, %s5734
          %s5736 = sshll.u32 %s5726, 4
          %s5737 = int_to_ptr.vmem [resolvable:$true] %s5736
          %5742 = dma.vmem_to_hbm [thread:$0]  %s5737, 512, %s5735, %s5723, 256, 256, 16
        $region56: #{tpu_custom_call.1} parent=35 // pred_fallthru
          _
      $region36: #{tpu_custom_call.1} parent=5 // pred_fallthru
        _
      %p5743 = scmp.le.s32.totalorder 2, %s18
      // Predicated region
      $region57: #{tpu_custom_call.1} parent=5 // pred_check
        %p5744 = pneg %p5743
      $region58: #{tpu_custom_call.1} parent=5 // pred_check_branch
        %5746 = sbr.rel (%p5744) target = $region60
      $region59: #{tpu_custom_call.1} parent=5 // pred_region
        %s5747 = ssub.s32 %s18, 2
        // Predicated region
        $region61: #{tpu_custom_call.1} parent=59 // pred_check
          %p5748 = pneg %p136
        $region62: #{tpu_custom_call.1} parent=59 // pred_check_branch
          %5750 = sbr.rel (%p5748) target = $region64
        $region63: #{tpu_custom_call.1} parent=59 // pred_region
          %s5751 = sand.u32 %s121, 1
          %s5752 = scalar_lea.sflag [#allocation5], %s5751
          %s5753 = sand.u32 %s121, 1
          %s5754 = smul.addr %s5753, 32
          %s5755 = scalar_lea.vmem [#allocation11], %s5754
          %5756 = dma.done %s5752, 512
        $region64: #{tpu_custom_call.1} parent=59 // pred_fallthru
          _
      $region60: #{tpu_custom_call.1} parent=5 // pred_fallthru
        _
    $region6: #{tpu_custom_call.1} parent=1 // loop_footer
      %s22 = sadd.s32 1, %s18
    $region7: #{tpu_custom_call.1} parent=1 // loop_footer_branch
      %17 = sbr.rel target = $region3
    $region8: #{tpu_custom_call.1} parent=1 // loop_exit
      _
    %5757 = vsyncpa [#allocation4], 1
    %s5758 = scalar_lea.sflag [#allocation4], 1
    %5759 = vsyncpa %s5758, 1
    %5760 = vsyncpa [#allocation8], 1
    %5761 = vsyncpa [#allocation5], 1
    %s5762 = scalar_lea.sflag [#allocation5], 1
    %5763 = vsyncpa %s5762, 1
    %5764 = vsyncpa [#allocation6], 1
    %s5765 = scalar_lea.sflag [#allocation6], 1
    %5766 = vsyncpa %s5765, 1

</llo_original>
